<compile_context>
chip_gen: v7x
topology: tpu7x:2x2x1
jax: 0.10.0
libtpu: 0.0.40
codegen_flags: <defaults>
</compile_context>

<pallas_src>
import functools

import jax
import jax.numpy as jnp
from jax import lax
from jax.experimental import pallas as pl
from jax.experimental.pallas import tpu as pltpu

EPS = 1e-5          # nn.BatchNorm2d default eps
LANE = 128          # intermediate channel dims padded to the lane width


# ----------------------------------------------------------------------------- config


@functools.lru_cache(maxsize=None)
def _chip_config():
    """(row-tile cap, scoped-VMEM limit) sized per TPU generation."""
    tile_cap, vmem_limit = 1024, 48 * 1024 * 1024            # v7x-safe (64 MiB phys)
    try:
        info = pltpu.get_tpu_info()
        vmem = getattr(info, "vmem_capacity_bytes", None)
        if vmem is not None and vmem >= 100 * 1024 * 1024:    # v5e / v6e: 128 MiB
            tile_cap, vmem_limit = 2048, 80 * 1024 * 1024
    except Exception:                                          # unknown backend
        pass
    return tile_cap, vmem_limit


def _round_up(x, m):
    return (x + m - 1) // m * m


def _pick_tile(m, cap, bytes_per_row, vmem_budget):
    """Largest multiple-of-8 divisor of m that is <= cap and fits the VMEM budget."""
    if m % 8 != 0:
        # TODO(synk): pad M and mask the stats reductions for awkward row counts.
        return m
    fit = max(8, (vmem_budget // max(bytes_per_row, 1)) // 8 * 8)
    cap = max(8, min(cap, fit))
    best, t = 8, 8
    while t <= min(cap, m):
        if m % t == 0:
            best = t
        t += 8
    return best


def _pick_row_tile(h, w, cap_rows=256):
    """Row tile for the 3x3 stage: divides h, keeps TH*W modest, >= 2 tiles if possible."""
    divs = [d for d in range(1, h + 1) if h % d == 0]
    ok = [d for d in divs if d * w <= cap_rows] or [1]
    multi = [d for d in ok if d < h]
    return max(multi) if multi else max(ok)


def _parallel(n_axes, vmem_limit):
    return pltpu.CompilerParams(
        dimension_semantics=("parallel",) * n_axes, vmem_limit_bytes=vmem_limit)


# ----------------------------------------------------------------------------- kernels


def _write_stats(st_ref, acc):
    # Merged per-tile BN partials from the f32 accumulator: [sum; sum_of_squares].
    s = jnp.sum(acc, axis=0, keepdims=True)
    ss = jnp.sum(acc * acc, axis=0, keepdims=True)
    st_ref[...] = jnp.concatenate([s, ss], axis=0).reshape(st_ref.shape)


def _conv1x1_stats_kernel(x_ref, w_ref, y_ref, st_ref):
    # x: (TM, Cin) f32 (cast to bf16 here -> no extra bf16 HBM copy of the input)
    # w: (Cin, Co) bf16 resident.  y: (TM, Co) bf16.  st: (1, 2, Co) f32.
    acc = jnp.dot(x_ref[...].astype(jnp.bfloat16), w_ref[...],
                  preferred_element_type=jnp.float32)
    y_ref[...] = acc.astype(jnp.bfloat16)
    _write_stats(st_ref, acc)


def _bn_relu_conv1x1_stats_kernel(x_ref, sc_ref, w_ref, y_ref, st_ref):
    # Fused: normalize previous stage (scale/shift) + ReLU + 1x1 conv + stats.
    a = jnp.maximum(
        x_ref[...].astype(jnp.float32) * sc_ref[0:1, :] + sc_ref[1:2, :], 0.0)
    acc = jnp.dot(a.astype(jnp.bfloat16), w_ref[...],
                  preferred_element_type=jnp.float32)
    y_ref[...] = acc.astype(jnp.bfloat16)
    _write_stats(st_ref, acc)


def _bn_relu_conv3x3_stats_kernel(xc_ref, xa_ref, xb_ref, sc_ref, w_ref,
                                  y_ref, st_ref, x3_ref, acc_ref,
                                  *, TH, W, C, Cout):
    # Row-tiled 3x3 conv:
    #   xc: (1, TH, W, C) center rows, xa/xb: (1, 1, W, C) halo rows (clamped maps)
    #   sc: (2, C) BN1 scale/shift   w: (3, 3C, Cout) dx-merged weights (resident)
    #   x3: (TH+2, W, 3C) bf16 scratch holding [left, center, right] shifted bands
    #   acc: (TH*W, Cout) f32 scratch accumulator.
    t = pl.program_id(1)
    n_th = pl.num_programs(1)
    scale = sc_ref[0:1, :]
    shift = sc_ref[1:2, :]

    def norm(v):
        return jnp.maximum(
            v.astype(jnp.float32) * scale + shift, 0.0).astype(jnp.bfloat16)

    # center band (input channel lanes C:2C), rows 1..TH of the haloed tile
    x3_ref[1:TH + 1, :, C:2 * C] = norm(xc_ref[0])

    # top / bottom halo rows (zero at the image boundary)
    @pl.when(t == 0)
    def _():
        x3_ref[0:1, :, C:2 * C] = jnp.zeros((1, W, C), jnp.bfloat16)

    @pl.when(t > 0)
    def _():
        x3_ref[0:1, :, C:2 * C] = norm(xa_ref[0])

    @pl.when(t == n_th - 1)
    def _():
        x3_ref[TH + 1:TH + 2, :, C:2 * C] = jnp.zeros((1, W, C), jnp.bfloat16)

    @pl.when(t < n_th - 1)
    def _():
        x3_ref[TH + 1:TH + 2, :, C:2 * C] = norm(xb_ref[0])

    # horizontal shifts: left (dx=0) / right (dx=2) input-channel bands
    cb = x3_ref[:, :, C:2 * C]                        # (TH+2, W, C)
    zcol = jnp.zeros((TH + 2, 1, C), jnp.bfloat16)
    x3_ref[:, :, 0:C] = jnp.concatenate([zcol, cb[:, :W - 1, :]], axis=1)
    x3_ref[:, :, 2 * C:3 * C] = jnp.concatenate([cb[:, 1:, :], zcol], axis=1)

    # 3 deep MXU matmuls (K = 3C), accumulated in the VMEM f32 scratch
    acc_ref[...] = jnp.dot(x3_ref[0:TH].reshape(TH * W, 3 * C), w_ref[0],
                           preferred_element_type=jnp.float32)
    acc_ref[...] += jnp.dot(x3_ref[1:TH + 1].reshape(TH * W, 3 * C), w_ref[1],
                            preferred_element_type=jnp.float32)
    acc_ref[...] += jnp.dot(x3_ref[2:TH + 2].reshape(TH * W, 3 * C), w_ref[2],
                            preferred_element_type=jnp.float32)

    acc = acc_ref[...]
    y_ref[...] = acc.astype(jnp.bfloat16).reshape(1, TH, W, Cout)
    _write_stats(st_ref, acc)


def _bn_add_relu_kernel(y_ref, sc_ref, res_ref, o_ref, *, c_out, apply_relu):
    # Final: normalize conv3 output + residual add (+ ReLU); writes unpadded lanes.
    yn = y_ref[...].astype(jnp.float32) * sc_ref[0:1, :] + sc_ref[1:2, :]
    out = yn[:, :c_out] + res_ref[...]
    if apply_relu:
        out = jnp.maximum(out, 0.0)
    o_ref[...] = out


# ----------------------------------------------------------------------------- wrapper


def _fold_bn(st, gamma, beta, m_total):
    """Reduce (sum, sumsq) partials and fold BN into per-channel scale/shift."""
    st = st.reshape(-1, 2, st.shape[-1])
    mean = jnp.sum(st[:, 0, :], axis=0) / m_total
    var = jnp.maximum(jnp.sum(st[:, 1, :], axis=0) / m_total - mean * mean, 0.0)
    scale = gamma * lax.rsqrt(var + EPS)
    shift = beta - mean * scale
    return jnp.stack([scale, shift], axis=0)        # (2, C) f32


@functools.partial(jax.jit, static_argnames=("before_relu",))
def bottleneck_forward(x_nchw, params, before_relu=False):
    """Pallas Bottleneck forward. x_nchw: (N, Cin, H, W) with Cin == planes*4."""
    N, Cin, H, W = x_nchw.shape
    planes = params["w1"].shape[1]
    Cout = 4 * planes
    assert Cin == Cout, "downsample path not implemented (needs inplanes == 4*planes)"
    M = N * H * W
    Cm_p = _round_up(planes, LANE)
    Co_p = _round_up(Cout, LANE)

    tile_cap, vmem_limit = _chip_config()
    bpr = 2 * max(Cin * 4 + Cm_p * 2,               # stage 1 per-row bytes
                  Cm_p * 2 + Co_p * 2,              # stage 3
                  Co_p * 2 + Cout * 8)              # stage 4
    TM = _pick_tile(M, tile_cap, bpr, vmem_limit // 2)
    G = M // TM
    TH = _pick_row_tile(H, W)
    n_th = H // TH

    # ---- layout: NHWC; residual kept unpadded f32; intermediates lane-dense bf16
    x2d = jnp.transpose(x_nchw, (0, 2, 3, 1)).astype(jnp.float32).reshape(M, Cin)

    w1 = jnp.pad(params["w1"], ((0, 0), (0, Cm_p - planes))).astype(jnp.bfloat16)
    w2r = jnp.pad(params["w2"],
                  ((0, 0), (0, 0), (0, Cm_p - planes), (0, Cm_p - planes))
                  ).astype(jnp.bfloat16).reshape(3, 3 * Cm_p, Cm_p)   # (dy, dx*Cin, Cout)
    w3 = jnp.pad(params["w3"],
                 ((0, Cm_p - planes), (0, Co_p - Cout))).astype(jnp.bfloat16)

    def pad1(v, c):
        return jnp.pad(v, (0, c - v.shape[0]))

    g1, b1 = pad1(params["g1"], Cm_p), pad1(params["b1"], Cm_p)
    g2, b2 = pad1(params["g2"], Cm_p), pad1(params["b2"], Cm_p)
    g3, b3 = pad1(params["g3"], Co_p), pad1(params["b3"], Co_p)

    # ---- stage 1: conv1 (1x1) + BN1 partial stats -----------------------------
    y1, st1 = pl.pallas_call(
        _conv1x1_stats_kernel,
        grid=(G,),
        in_specs=[pl.BlockSpec((TM, Cin), lambda i: (i, 0)),
                  pl.BlockSpec((Cin, Cm_p), lambda i: (0, 0))],
        out_specs=(pl.BlockSpec((TM, Cm_p), lambda i: (i, 0)),
                   pl.BlockSpec((1, 2, Cm_p), lambda i: (i, 0, 0))),
        out_shape=(jax.ShapeDtypeStruct((M, Cm_p), jnp.bfloat16),
                   jax.ShapeDtypeStruct((G, 2, Cm_p), jnp.float32)),
        compiler_params=_parallel(1, vmem_limit),
        cost_estimate=pl.CostEstimate(
            flops=2 * M * Cin * Cm_p, transcendentals=0,
            bytes_accessed=M * (4 * Cin + 2 * Cm_p) + 2 * Cin * Cm_p),
    )(x2d, w1)
    sc1 = _fold_bn(st1, g1, b1, M)

    # ---- stage 2: BN1+ReLU fused with conv2 (3x3, pad=1) + BN2 partial stats --
    y1_4d = y1.reshape(N, H, W, Cm_p)
    k2 = functools.partial(_bn_relu_conv3x3_stats_kernel,
                           TH=TH, W=W, C=Cm_p, Cout=Cm_p)
    y2, st2 = pl.pallas_call(
        k2,
        grid=(N, n_th),
        in_specs=[
            pl.BlockSpec((1, TH, W, Cm_p), lambda n, t: (n, t, 0, 0)),
            pl.BlockSpec((1, 1, W, Cm_p),
                         lambda n, t: (n, jnp.maximum(t * TH - 1, 0), 0, 0)),
            pl.BlockSpec((1, 1, W, Cm_p),
                         lambda n, t: (n, jnp.minimum((t + 1) * TH, H - 1), 0, 0)),
            pl.BlockSpec((2, Cm_p), lambda n, t: (0, 0)),
            pl.BlockSpec((3, 3 * Cm_p, Cm_p), lambda n, t: (0, 0, 0)),
        ],
        out_specs=(pl.BlockSpec((1, TH, W, Cm_p), lambda n, t: (n, t, 0, 0)),
                   pl.BlockSpec((1, 1, 2, Cm_p), lambda n, t: (n, t, 0, 0))),
        out_shape=(jax.ShapeDtypeStruct((N, H, W, Cm_p), jnp.bfloat16),
                   jax.ShapeDtypeStruct((N, n_th, 2, Cm_p), jnp.float32)),
        scratch_shapes=[pltpu.VMEM((TH + 2, W, 3 * Cm_p), jnp.bfloat16),
                        pltpu.VMEM((TH * W, Cm_p), jnp.float32)],
        compiler_params=_parallel(2, vmem_limit),
        cost_estimate=pl.CostEstimate(
            flops=2 * M * 9 * Cm_p * Cm_p, transcendentals=0,
            bytes_accessed=4 * M * Cm_p + 2 * 9 * Cm_p * Cm_p),
    )(y1_4d, y1_4d, y1_4d, sc1, w2r)
    sc2 = _fold_bn(st2, g2, b2, M)

    # ---- stage 3: BN2+ReLU fused with conv3 (1x1) + BN3 partial stats ---------
    y3, st3 = pl.pallas_call(
        _bn_relu_conv1x1_stats_kernel,
        grid=(G,),
        in_specs=[pl.BlockSpec((TM, Cm_p), lambda i: (i, 0)),
                  pl.BlockSpec((2, Cm_p), lambda i: (0, 0)),
                  pl.BlockSpec((Cm_p, Co_p), lambda i: (0, 0))],
        out_specs=(pl.BlockSpec((TM, Co_p), lambda i: (i, 0)),
                   pl.BlockSpec((1, 2, Co_p), lambda i: (i, 0, 0))),
        out_shape=(jax.ShapeDtypeStruct((M, Co_p), jnp.bfloat16),
                   jax.ShapeDtypeStruct((G, 2, Co_p), jnp.float32)),
        compiler_params=_parallel(1, vmem_limit),
        cost_estimate=pl.CostEstimate(
            flops=2 * M * Cm_p * Co_p, transcendentals=0,
            bytes_accessed=2 * M * (Cm_p + Co_p) + 2 * Cm_p * Co_p),
    )(y2.reshape(M, Cm_p), sc2, w3)
    sc3 = _fold_bn(st3, g3, b3, M)

    # ---- stage 4: BN3 + residual add + ReLU (unpadded NHWC output) ------------
    k4 = functools.partial(_bn_add_relu_kernel, c_out=Cout,
                           apply_relu=not before_relu)
    out2d = pl.pallas_call(
        k4,
        grid=(G,),
        in_specs=[pl.BlockSpec((TM, Co_p), lambda i: (i, 0)),
                  pl.BlockSpec((2, Co_p), lambda i: (0, 0)),
                  pl.BlockSpec((TM, Cout), lambda i: (i, 0))],
        out_specs=pl.BlockSpec((TM, Cout), lambda i: (i, 0)),
        out_shape=jax.ShapeDtypeStruct((M, Cout), jnp.float32),
        compiler_params=_parallel(1, vmem_limit),
        cost_estimate=pl.CostEstimate(
            flops=4 * M * Co_p, transcendentals=0,
            bytes_accessed=2 * M * Co_p + 8 * M * Cout),
    )(y3, sc3, x2d)

    return jnp.transpose(out2d.reshape(N, H, W, Cout), (0, 3, 1, 2))   # NCHW


# ----------------------------------------------------------------------------- reference


def bottleneck_reference(x_nchw, params, before_relu=False):
    """Pure-JAX reference mirroring kernel numerics (bf16 MXU, f32 acc + f32 BN stats)."""
    x = jnp.transpose(x_nchw, (0, 2, 3, 1)).astype(jnp.float32)
    dn = ("NHWC", "HWIO", "NHWC")

    def conv(a, w, padding):
        return lax.conv_general_dilated(
            a.astype(jnp.bfloat16), w.astype(jnp.bfloat16), (1, 1), padding,
            dimension_numbers=dn, preferred_element_type=jnp.float32)

    def bn_fold(yf, g, b):
        mean = jnp.mean(yf, axis=(0, 1, 2))
        var = jnp.maximum(jnp.mean(yf * yf, axis=(0, 1, 2)) - mean * mean, 0.0)
        scale = g * lax.rsqrt(var + EPS)
        shift = b - mean * scale
        return scale, shift

    y1 = conv(x, params["w1"][None, None], "VALID")
    s1, h1 = bn_fold(y1, params["g1"], params["b1"])
    a1 = jnp.maximum(y1.astype(jnp.bfloat16).astype(jnp.float32) * s1 + h1, 0.0)
    y2 = conv(a1, params["w2"], "SAME")
    s2, h2 = bn_fold(y2, params["g2"], params["b2"])
    a2 = jnp.maximum(y2.astype(jnp.bfloat16).astype(jnp.float32) * s2 + h2, 0.0)
    y3 = conv(a2, params["w3"][None, None], "VALID")
    s3, h3 = bn_fold(y3, params["g3"], params["b3"])
    out = y3.astype(jnp.bfloat16).astype(jnp.float32) * s3 + h3 + x
    if not before_relu:
        out = jnp.maximum(out, 0.0)
    return jnp.transpose(out, (0, 3, 1, 2))


# ----------------------------------------------------------------------------- main


def make_params(key, inplanes, planes):
    ks = jax.random.split(key, 9)
    # conv weights stored channels-last: (Cin, Cout) / (kh, kw, Cin, Cout).
    return {
        "w1": 0.2 * jax.random.normal(ks[0], (inplanes, planes), jnp.float32),
        "w2": 0.2 * jax.random.normal(ks[1], (3, 3, planes, planes), jnp.float32),
        "w3": 0.2 * jax.random.normal(ks[2], (planes, 4 * planes), jnp.float32),
        "g1": 1.0 + 0.1 * jax.random.normal(ks[3], (planes,), jnp.float32),
        "b1": 0.1 * jax.random.normal(ks[4], (planes,), jnp.float32),
        "g2": 1.0 + 0.1 * jax.random.normal(ks[5], (planes,), jnp.float32),
        "b2": 0.1 * jax.random.normal(ks[6], (planes,), jnp.float32),
        "g3": 1.0 + 0.1 * jax.random.normal(ks[7], (4 * planes,), jnp.float32),
        "b3": 0.1 * jax.random.normal(ks[8], (4 * planes,), jnp.float32),
    }


if __name__ == "__main__":
    key = jax.random.PRNGKey(0)
    kx, kp = jax.random.split(key)

    N, planes, H, W = 2, 4, 16, 16
    inplanes = planes * 4               # residual add requires inplanes == 4*planes
    x = jax.random.normal(kx, (N, inplanes, H, W), jnp.float32)   # NCHW like PyTorch
    params = make_params(kp, inplanes, planes)

    out = jax.block_until_ready(bottleneck_forward(x, params))
    ref = jax.block_until_ready(bottleneck_reference(x, params))

    assert out.shape == (N, 4 * planes, H, W)
    err = float(jnp.max(jnp.abs(out - ref)))
    assert jnp.allclose(out, ref, atol=2e-2, rtol=2e-2), f"max abs err {err}"

    print("KERNEL_OK")
</pallas_src>

<mosaic_0001>
module attributes {stable_mosaic.version = 11 : i64} {
  func.func @_conv1x1_stats_kernel(%arg0: i32, %arg1: memref<512x16xf32, #tpu.memory_space<vmem>>, %arg2: memref<16x128xbf16, #tpu.memory_space<vmem>>, %arg3: memref<512x128xbf16, #tpu.memory_space<vmem>>, %arg4: memref<1x2x128xf32, #tpu.memory_space<vmem>>) attributes {dimension_semantics = [#tpu.dimension_semantics<parallel>], iteration_bounds = array<i64: 1>, scalar_prefetch = 0 : i64, scratch_operands = 0 : i64, tpu.core_type = #tpu.core_type<tc>, window_params = [{transform_indices = @transform_0, window_bounds = array<i64: 512, 16>}, {pipeline_mode = #tpu.pipeline_mode<synchronous>, transform_indices = @transform_1, window_bounds = array<i64: 16, 128>}, {transform_indices = @transform_2, window_bounds = array<i64: 512, 128>}, {transform_indices = @transform_3, window_bounds = array<i64: 1, 2, 128>}]} {
    %c0 = arith.constant 0 : index
    %c0_0 = arith.constant 0 : index
    %0 = vector.load %arg1[%c0, %c0_0] : memref<512x16xf32, #tpu.memory_space<vmem>>, vector<512x16xf32>
    %1 = arith.truncf %0 : vector<512x16xf32> to vector<512x16xbf16>
    %c0_1 = arith.constant 0 : index
    %c0_2 = arith.constant 0 : index
    %2 = vector.load %arg2[%c0_1, %c0_2] : memref<16x128xbf16, #tpu.memory_space<vmem>>, vector<16x128xbf16>
    %cst = arith.constant dense<0.000000e+00> : vector<512x128xf32>
    %3 = tpu.matmul %1, %2, %cst {dimension_numbers = #tpu.dot_dimension_numbers<[1], [0], [0], [1], [0, 0, 1, 1], [], []>} : vector<512x16xbf16>, vector<16x128xbf16>, vector<512x128xf32> -> vector<512x128xf32>
    %4 = arith.truncf %3 : vector<512x128xf32> to vector<512x128xbf16>
    %c0_3 = arith.constant 0 : index
    %c0_4 = arith.constant 0 : index
    %5 = vector.load %arg3[%c0_3, %c0_4] : memref<512x128xbf16, #tpu.memory_space<vmem>>, vector<512x128xbf16>
    tpu.vector_store %arg3[%c0_3, %c0_4], %4 {strides = array<i32>} : memref<512x128xbf16, #tpu.memory_space<vmem>>, vector<512x128xbf16>,
    %cst_5 = arith.constant dense<0.000000e+00> : vector<128xf32>
    %6 = vector.multi_reduction <add>, %3, %cst_5 [0] : vector<512x128xf32> to vector<128xf32>
    %7 = vector.shape_cast %6 : vector<128xf32> to vector<1x128xf32>
    %8 = arith.mulf %3, %3 : vector<512x128xf32>
    %cst_6 = arith.constant dense<0.000000e+00> : vector<128xf32>
    %9 = vector.multi_reduction <add>, %8, %cst_6 [0] : vector<512x128xf32> to vector<128xf32>
    %10 = vector.shape_cast %9 : vector<128xf32> to vector<1x128xf32>
    %11 = tpu.concatenate %7, %10 in 0 : vector<1x128xf32>, vector<1x128xf32> -> vector<2x128xf32>
    %12 = vector.shape_cast %11 : vector<2x128xf32> to vector<1x2x128xf32>
    %c0_7 = arith.constant 0 : index
    %c0_8 = arith.constant 0 : index
    %c0_9 = arith.constant 0 : index
    %13 = vector.load %arg4[%c0_7, %c0_8, %c0_9] : memref<1x2x128xf32, #tpu.memory_space<vmem>>, vector<1x2x128xf32>
    tpu.vector_store %arg4[%c0_7, %c0_8, %c0_9], %12 {strides = array<i32>} : memref<1x2x128xf32, #tpu.memory_space<vmem>>, vector<1x2x128xf32>,
    return
  }
  func.func @transform_0(%arg0: i32) -> (i32, i32) {
    %c0_i32 = arith.constant 0 : i32
    %c0_i32_0 = arith.constant 0 : i32
    return %arg0, %c0_i32 : i32, i32
  }
  func.func @transform_1(%arg0: i32) -> (i32, i32) {
    %c0_i32 = arith.constant 0 : i32
    %c0_i32_0 = arith.constant 0 : i32
    %c0_i32_1 = arith.constant 0 : i32
    return %c0_i32, %c0_i32_0 : i32, i32
  }
  func.func @transform_2(%arg0: i32) -> (i32, i32) {
    %c0_i32 = arith.constant 0 : i32
    %c0_i32_0 = arith.constant 0 : i32
    return %arg0, %c0_i32 : i32, i32
  }
  func.func @transform_3(%arg0: i32) -> (i32, i32, i32) {
    %c0_i32 = arith.constant 0 : i32
    %c0_i32_0 = arith.constant 0 : i32
    %c0_i32_1 = arith.constant 0 : i32
    return %arg0, %c0_i32, %c0_i32_0 : i32, i32, i32
  }
}

module attributes {stable_mosaic.version = 11 : i64} {
  func.func @_bn_relu_conv3x3_stats_kernel(%arg0: i32, %arg1: i32, %arg2: memref<1x8x16x128xbf16, #tpu.memory_space<vmem>>, %arg3: memref<1x1x16x128xbf16, #tpu.memory_space<vmem>>, %arg4: memref<1x1x16x128xbf16, #tpu.memory_space<vmem>>, %arg5: memref<2x128xf32, #tpu.memory_space<vmem>>, %arg6: memref<3x384x128xbf16, #tpu.memory_space<vmem>>, %arg7: memref<1x8x16x128xbf16, #tpu.memory_space<vmem>>, %arg8: memref<1x1x2x128xf32, #tpu.memory_space<vmem>>, %arg9: memref<10x16x384xbf16, #tpu.memory_space<vmem>>, %arg10: memref<128x128xf32, #tpu.memory_space<vmem>>) attributes {dimension_semantics = [#tpu.dimension_semantics<parallel>, #tpu.dimension_semantics<parallel>], iteration_bounds = array<i64: 2, 2>, scalar_prefetch = 0 : i64, scratch_operands = 2 : i64, tpu.core_type = #tpu.core_type<tc>, window_params = [{transform_indices = @transform_0, window_bounds = array<i64: 1, 8, 16, 128>}, {transform_indices = @transform_1, window_bounds = array<i64: 1, 1, 16, 128>}, {transform_indices = @transform_2, window_bounds = array<i64: 1, 1, 16, 128>}, {pipeline_mode = #tpu.pipeline_mode<synchronous>, transform_indices = @transform_3, window_bounds = array<i64: 2, 128>}, {pipeline_mode = #tpu.pipeline_mode<synchronous>, transform_indices = @transform_4, window_bounds = array<i64: 3, 384, 128>}, {transform_indices = @transform_5, window_bounds = array<i64: 1, 8, 16, 128>}, {transform_indices = @transform_6, window_bounds = array<i64: 1, 1, 2, 128>}]} {
    %c0 = arith.constant 0 : index
    %c0_0 = arith.constant 0 : index
    %0 = vector.load %arg5[%c0, %c0_0] : memref<2x128xf32, #tpu.memory_space<vmem>>, vector<1x128xf32>
    %c1 = arith.constant 1 : index
    %c0_1 = arith.constant 0 : index
    %1 = vector.load %arg5[%c1, %c0_1] : memref<2x128xf32, #tpu.memory_space<vmem>>, vector<1x128xf32>
    %c0_2 = arith.constant 0 : index
    %c0_3 = arith.constant 0 : index
    %c0_4 = arith.constant 0 : index
    %c0_5 = arith.constant 0 : index
    %2 = vector.load %arg2[%c0_2, %c0_3, %c0_4, %c0_5] : memref<1x8x16x128xbf16, #tpu.memory_space<vmem>>, vector<1x8x16x128xbf16>
    %3 = vector.shape_cast %2 : vector<1x8x16x128xbf16> to vector<8x16x128xbf16>
    %4 = arith.extf %3 : vector<8x16x128xbf16> to vector<8x16x128xf32>
    %5 = vector.shape_cast %0 : vector<1x128xf32> to vector<1x1x128xf32>
    %6 = vector.broadcast %5 : vector<1x1x128xf32> to vector<8x16x128xf32>
    %7 = arith.mulf %4, %6 : vector<8x16x128xf32>
    %8 = vector.shape_cast %1 : vector<1x128xf32> to vector<1x1x128xf32>
    %9 = vector.broadcast %8 : vector<1x1x128xf32> to vector<8x16x128xf32>
    %10 = arith.addf %7, %9 : vector<8x16x128xf32>
    %cst = arith.constant 0.000000e+00 : f32
    %11 = vector.broadcast %cst : f32 to vector<8x16x128xf32>
    %12 = arith.maximumf %10, %11 : vector<8x16x128xf32>
    %13 = arith.truncf %12 : vector<8x16x128xf32> to vector<8x16x128xbf16>
    %c1_6 = arith.constant 1 : index
    %c0_7 = arith.constant 0 : index
    %c128 = arith.constant 128 : index
    %14 = vector.load %arg9[%c1_6, %c0_7, %c128] : memref<10x16x384xbf16, #tpu.memory_space<vmem>>, vector<8x16x128xbf16>
    tpu.vector_store %arg9[%c1_6, %c0_7, %c128], %13 {strides = array<i32>} : memref<10x16x384xbf16, #tpu.memory_space<vmem>>, vector<8x16x128xbf16>,
    %c0_i32 = arith.constant 0 : i32
    %15 = arith.cmpi eq, %arg1, %c0_i32 : i32
    %16 = arith.extui %15 : i1 to i32
    %c0_i32_8 = arith.constant 0 : i32
    %17 = arith.cmpi ne, %16, %c0_i32_8 : i32
    scf.if %17 {
      %cst_65 = arith.constant 0.000000e+00 : bf16
      %69 = vector.broadcast %cst_65 : bf16 to vector<1x16x128xbf16>
      %c0_66 = arith.constant 0 : index
      %c0_67 = arith.constant 0 : index
      %c128_68 = arith.constant 128 : index
      %70 = vector.load %arg9[%c0_66, %c0_67, %c128_68] : memref<10x16x384xbf16, #tpu.memory_space<vmem>>, vector<1x16x128xbf16>
      tpu.vector_store %arg9[%c0_66, %c0_67, %c128_68], %69 {strides = array<i32>} : memref<10x16x384xbf16, #tpu.memory_space<vmem>>, vector<1x16x128xbf16>,
    } else {
    }
    %c0_i32_9 = arith.constant 0 : i32
    %18 = arith.cmpi sgt, %arg1, %c0_i32_9 : i32
    %19 = arith.extui %18 : i1 to i32
    %c0_i32_10 = arith.constant 0 : i32
    %20 = arith.cmpi ne, %19, %c0_i32_10 : i32
    scf.if %20 {
      %c0_65 = arith.constant 0 : index
      %c0_66 = arith.constant 0 : index
      %c0_67 = arith.constant 0 : index
      %c0_68 = arith.constant 0 : index
      %69 = vector.load %arg3[%c0_65, %c0_66, %c0_67, %c0_68] : memref<1x1x16x128xbf16, #tpu.memory_space<vmem>>, vector<1x1x16x128xbf16>
      %70 = vector.shape_cast %69 : vector<1x1x16x128xbf16> to vector<1x16x128xbf16>
      %71 = arith.extf %70 : vector<1x16x128xbf16> to vector<1x16x128xf32>
      %72 = vector.shape_cast %0 : vector<1x128xf32> to vector<1x1x128xf32>
      %73 = vector.broadcast %72 : vector<1x1x128xf32> to vector<1x16x128xf32>
      %74 = arith.mulf %71, %73 : vector<1x16x128xf32>
      %75 = vector.shape_cast %1 : vector<1x128xf32> to vector<1x1x128xf32>
      %76 = vector.broadcast %75 : vector<1x1x128xf32> to vector<1x16x128xf32>
      %77 = arith.addf %74, %76 : vector<1x16x128xf32>
      %cst_69 = arith.constant 0.000000e+00 : f32
      %78 = vector.broadcast %cst_69 : f32 to vector<1x16x128xf32>
      %79 = arith.maximumf %77, %78 : vector<1x16x128xf32>
      %80 = arith.truncf %79 : vector<1x16x128xf32> to vector<1x16x128xbf16>
      %c0_70 = arith.constant 0 : index
      %c0_71 = arith.constant 0 : index
      %c128_72 = arith.constant 128 : index
      %81 = vector.load %arg9[%c0_70, %c0_71, %c128_72] : memref<10x16x384xbf16, #tpu.memory_space<vmem>>, vector<1x16x128xbf16>
      tpu.vector_store %arg9[%c0_70, %c0_71, %c128_72], %80 {strides = array<i32>} : memref<10x16x384xbf16, #tpu.memory_space<vmem>>, vector<1x16x128xbf16>,
    } else {
    }
    %c1_i32 = arith.constant 1 : i32
    %21 = arith.cmpi eq, %arg1, %c1_i32 : i32
    %22 = arith.extui %21 : i1 to i32
    %c0_i32_11 = arith.constant 0 : i32
    %23 = arith.cmpi ne, %22, %c0_i32_11 : i32
    scf.if %23 {
      %cst_65 = arith.constant 0.000000e+00 : bf16
      %69 = vector.broadcast %cst_65 : bf16 to vector<1x16x128xbf16>
      %c9 = arith.constant 9 : index
      %c0_66 = arith.constant 0 : index
      %c128_67 = arith.constant 128 : index
      %70 = vector.load %arg9[%c9, %c0_66, %c128_67] : memref<10x16x384xbf16, #tpu.memory_space<vmem>>, vector<1x16x128xbf16>
      tpu.vector_store %arg9[%c9, %c0_66, %c128_67], %69 {strides = array<i32>} : memref<10x16x384xbf16, #tpu.memory_space<vmem>>, vector<1x16x128xbf16>,
    } else {
    }
    %c1_i32_12 = arith.constant 1 : i32
    %24 = arith.cmpi slt, %arg1, %c1_i32_12 : i32
    %25 = arith.extui %24 : i1 to i32
    %c0_i32_13 = arith.constant 0 : i32
    %26 = arith.cmpi ne, %25, %c0_i32_13 : i32
    scf.if %26 {
      %c0_65 = arith.constant 0 : index
      %c0_66 = arith.constant 0 : index
      %c0_67 = arith.constant 0 : index
      %c0_68 = arith.constant 0 : index
      %69 = vector.load %arg4[%c0_65, %c0_66, %c0_67, %c0_68] : memref<1x1x16x128xbf16, #tpu.memory_space<vmem>>, vector<1x1x16x128xbf16>
      %70 = vector.shape_cast %69 : vector<1x1x16x128xbf16> to vector<1x16x128xbf16>
      %71 = arith.extf %70 : vector<1x16x128xbf16> to vector<1x16x128xf32>
      %72 = vector.shape_cast %0 : vector<1x128xf32> to vector<1x1x128xf32>
      %73 = vector.broadcast %72 : vector<1x1x128xf32> to vector<1x16x128xf32>
      %74 = arith.mulf %71, %73 : vector<1x16x128xf32>
      %75 = vector.shape_cast %1 : vector<1x128xf32> to vector<1x1x128xf32>
      %76 = vector.broadcast %75 : vector<1x1x128xf32> to vector<1x16x128xf32>
      %77 = arith.addf %74, %76 : vector<1x16x128xf32>
      %cst_69 = arith.constant 0.000000e+00 : f32
      %78 = vector.broadcast %cst_69 : f32 to vector<1x16x128xf32>
      %79 = arith.maximumf %77, %78 : vector<1x16x128xf32>
      %80 = arith.truncf %79 : vector<1x16x128xf32> to vector<1x16x128xbf16>
      %c9 = arith.constant 9 : index
      %c0_70 = arith.constant 0 : index
      %c128_71 = arith.constant 128 : index
      %81 = vector.load %arg9[%c9, %c0_70, %c128_71] : memref<10x16x384xbf16, #tpu.memory_space<vmem>>, vector<1x16x128xbf16>
      tpu.vector_store %arg9[%c9, %c0_70, %c128_71], %80 {strides = array<i32>} : memref<10x16x384xbf16, #tpu.memory_space<vmem>>, vector<1x16x128xbf16>,
    } else {
    }
    %c0_14 = arith.constant 0 : index
    %c0_15 = arith.constant 0 : index
    %c128_16 = arith.constant 128 : index
    %27 = vector.load %arg9[%c0_14, %c0_15, %c128_16] : memref<10x16x384xbf16, #tpu.memory_space<vmem>>, vector<10x16x128xbf16>
    %cst_17 = arith.constant 0.000000e+00 : bf16
    %28 = vector.broadcast %cst_17 : bf16 to vector<10x1x128xbf16>
    %29 = vector.extract_strided_slice %27 {offsets = [0, 0, 0], sizes = [10, 15, 128], strides = [1, 1, 1]} : vector<10x16x128xbf16> to vector<10x15x128xbf16>
    %30 = tpu.concatenate %28, %29 in 1 : vector<10x1x128xbf16>, vector<10x15x128xbf16> -> vector<10x16x128xbf16>
    %c0_18 = arith.constant 0 : index
    %c0_19 = arith.constant 0 : index
    %c0_20 = arith.constant 0 : index
    %31 = vector.load %arg9[%c0_18, %c0_19, %c0_20] : memref<10x16x384xbf16, #tpu.memory_space<vmem>>, vector<10x16x128xbf16>
    tpu.vector_store %arg9[%c0_18, %c0_19, %c0_20], %30 {strides = array<i32>} : memref<10x16x384xbf16, #tpu.memory_space<vmem>>, vector<10x16x128xbf16>,
    %32 = vector.extract_strided_slice %27 {offsets = [0, 1, 0], sizes = [10, 15, 128], strides = [1, 1, 1]} : vector<10x16x128xbf16> to vector<10x15x128xbf16>
    %33 = tpu.concatenate %32, %28 in 1 : vector<10x15x128xbf16>, vector<10x1x128xbf16> -> vector<10x16x128xbf16>
    %c0_21 = arith.constant 0 : index
    %c0_22 = arith.constant 0 : index
    %c256 = arith.constant 256 : index
    %34 = vector.load %arg9[%c0_21, %c0_22, %c256] : memref<10x16x384xbf16, #tpu.memory_space<vmem>>, vector<10x16x128xbf16>
    tpu.vector_store %arg9[%c0_21, %c0_22, %c256], %33 {strides = array<i32>} : memref<10x16x384xbf16, #tpu.memory_space<vmem>>, vector<10x16x128xbf16>,
    %c0_23 = arith.constant 0 : index
    %c0_24 = arith.constant 0 : index
    %c0_25 = arith.constant 0 : index
    %35 = vector.load %arg9[%c0_23, %c0_24, %c0_25] : memref<10x16x384xbf16, #tpu.memory_space<vmem>>, vector<8x16x384xbf16>
    %36 = vector.shape_cast %35 : vector<8x16x384xbf16> to vector<128x384xbf16>
    %c0_26 = arith.constant 0 : index
    %c0_27 = arith.constant 0 : index
    %c0_28 = arith.constant 0 : index
    %37 = vector.load %arg6[%c0_26, %c0_27, %c0_28] : memref<3x384x128xbf16, #tpu.memory_space<vmem>>, vector<1x384x128xbf16>
    %38 = vector.shape_cast %37 : vector<1x384x128xbf16> to vector<384x128xbf16>
    %cst_29 = arith.constant dense<0.000000e+00> : vector<128x128xf32>
    %39 = tpu.matmul %36, %38, %cst_29 {dimension_numbers = #tpu.dot_dimension_numbers<[1], [0], [0], [1], [0, 0, 1, 1], [], []>} : vector<128x384xbf16>, vector<384x128xbf16>, vector<128x128xf32> -> vector<128x128xf32>
    %c0_30 = arith.constant 0 : index
    %c0_31 = arith.constant 0 : index
    %40 = vector.load %arg10[%c0_30, %c0_31] : memref<128x128xf32, #tpu.memory_space<vmem>>, vector<128x128xf32>
    tpu.vector_store %arg10[%c0_30, %c0_31], %39 {strides = array<i32>} : memref<128x128xf32, #tpu.memory_space<vmem>>, vector<128x128xf32>,
    %c0_32 = arith.constant 0 : index
    %c0_33 = arith.constant 0 : index
    %41 = vector.load %arg10[%c0_32, %c0_33] : memref<128x128xf32, #tpu.memory_space<vmem>>, vector<128x128xf32>
    %c1_34 = arith.constant 1 : index
    %c0_35 = arith.constant 0 : index
    %c0_36 = arith.constant 0 : index
    %42 = vector.load %arg9[%c1_34, %c0_35, %c0_36] : memref<10x16x384xbf16, #tpu.memory_space<vmem>>, vector<8x16x384xbf16>
    %43 = vector.shape_cast %42 : vector<8x16x384xbf16> to vector<128x384xbf16>
    %c1_37 = arith.constant 1 : index
    %c0_38 = arith.constant 0 : index
    %c0_39 = arith.constant 0 : index
    %44 = vector.load %arg6[%c1_37, %c0_38, %c0_39] : memref<3x384x128xbf16, #tpu.memory_space<vmem>>, vector<1x384x128xbf16>
    %45 = vector.shape_cast %44 : vector<1x384x128xbf16> to vector<384x128xbf16>
    %cst_40 = arith.constant dense<0.000000e+00> : vector<128x128xf32>
    %46 = tpu.matmul %43, %45, %cst_40 {dimension_numbers = #tpu.dot_dimension_numbers<[1], [0], [0], [1], [0, 0, 1, 1], [], []>} : vector<128x384xbf16>, vector<384x128xbf16>, vector<128x128xf32> -> vector<128x128xf32>
    %47 = arith.addf %41, %46 : vector<128x128xf32>
    %c0_41 = arith.constant 0 : index
    %c0_42 = arith.constant 0 : index
    %48 = vector.load %arg10[%c0_41, %c0_42] : memref<128x128xf32, #tpu.memory_space<vmem>>, vector<128x128xf32>
    tpu.vector_store %arg10[%c0_41, %c0_42], %47 {strides = array<i32>} : memref<128x128xf32, #tpu.memory_space<vmem>>, vector<128x128xf32>,
    %c0_43 = arith.constant 0 : index
    %c0_44 = arith.constant 0 : index
    %49 = vector.load %arg10[%c0_43, %c0_44] : memref<128x128xf32, #tpu.memory_space<vmem>>, vector<128x128xf32>
    %c2 = arith.constant 2 : index
    %c0_45 = arith.constant 0 : index
    %c0_46 = arith.constant 0 : index
    %50 = vector.load %arg9[%c2, %c0_45, %c0_46] : memref<10x16x384xbf16, #tpu.memory_space<vmem>>, vector<8x16x384xbf16>
    %51 = vector.shape_cast %50 : vector<8x16x384xbf16> to vector<128x384xbf16>
    %c2_47 = arith.constant 2 : index
    %c0_48 = arith.constant 0 : index
    %c0_49 = arith.constant 0 : index
    %52 = vector.load %arg6[%c2_47, %c0_48, %c0_49] : memref<3x384x128xbf16, #tpu.memory_space<vmem>>, vector<1x384x128xbf16>
    %53 = vector.shape_cast %52 : vector<1x384x128xbf16> to vector<384x128xbf16>
    %cst_50 = arith.constant dense<0.000000e+00> : vector<128x128xf32>
    %54 = tpu.matmul %51, %53, %cst_50 {dimension_numbers = #tpu.dot_dimension_numbers<[1], [0], [0], [1], [0, 0, 1, 1], [], []>} : vector<128x384xbf16>, vector<384x128xbf16>, vector<128x128xf32> -> vector<128x128xf32>
    %55 = arith.addf %49, %54 : vector<128x128xf32>
    %c0_51 = arith.constant 0 : index
    %c0_52 = arith.constant 0 : index
    %56 = vector.load %arg10[%c0_51, %c0_52] : memref<128x128xf32, #tpu.memory_space<vmem>>, vector<128x128xf32>
    tpu.vector_store %arg10[%c0_51, %c0_52], %55 {strides = array<i32>} : memref<128x128xf32, #tpu.memory_space<vmem>>, vector<128x128xf32>,
    %c0_53 = arith.constant 0 : index
    %c0_54 = arith.constant 0 : index
    %57 = vector.load %arg10[%c0_53, %c0_54] : memref<128x128xf32, #tpu.memory_space<vmem>>, vector<128x128xf32>
    %58 = arith.truncf %57 : vector<128x128xf32> to vector<128x128xbf16>
    %59 = vector.shape_cast %58 : vector<128x128xbf16> to vector<1x8x16x128xbf16>
    %c0_55 = arith.constant 0 : index
    %c0_56 = arith.constant 0 : index
    %c0_57 = arith.constant 0 : index
    %c0_58 = arith.constant 0 : index
    %60 = vector.load %arg7[%c0_55, %c0_56, %c0_57, %c0_58] : memref<1x8x16x128xbf16, #tpu.memory_space<vmem>>, vector<1x8x16x128xbf16>
    tpu.vector_store %arg7[%c0_55, %c0_56, %c0_57, %c0_58], %59 {strides = array<i32>} : memref<1x8x16x128xbf16, #tpu.memory_space<vmem>>, vector<1x8x16x128xbf16>,
    %cst_59 = arith.constant dense<0.000000e+00> : vector<128xf32>
    %61 = vector.multi_reduction <add>, %57, %cst_59 [0] : vector<128x128xf32> to vector<128xf32>
    %62 = vector.shape_cast %61 : vector<128xf32> to vector<1x128xf32>
    %63 = arith.mulf %57, %57 : vector<128x128xf32>
    %cst_60 = arith.constant dense<0.000000e+00> : vector<128xf32>
    %64 = vector.multi_reduction <add>, %63, %cst_60 [0] : vector<128x128xf32> to vector<128xf32>
    %65 = vector.shape_cast %64 : vector<128xf32> to vector<1x128xf32>
    %66 = tpu.concatenate %62, %65 in 0 : vector<1x128xf32>, vector<1x128xf32> -> vector<2x128xf32>
    %67 = vector.shape_cast %66 : vector<2x128xf32> to vector<1x1x2x128xf32>
    %c0_61 = arith.constant 0 : index
    %c0_62 = arith.constant 0 : index
    %c0_63 = arith.constant 0 : index
    %c0_64 = arith.constant 0 : index
    %68 = vector.load %arg8[%c0_61, %c0_62, %c0_63, %c0_64] : memref<1x1x2x128xf32, #tpu.memory_space<vmem>>, vector<1x1x2x128xf32>
    tpu.vector_store %arg8[%c0_61, %c0_62, %c0_63, %c0_64], %67 {strides = array<i32>} : memref<1x1x2x128xf32, #tpu.memory_space<vmem>>, vector<1x1x2x128xf32>,
    return
  }
  func.func @transform_0(%arg0: i32, %arg1: i32) -> (i32, i32, i32, i32) {
    %c0_i32 = arith.constant 0 : i32
    %c0_i32_0 = arith.constant 0 : i32
    %c0_i32_1 = arith.constant 0 : i32
    return %arg0, %arg1, %c0_i32, %c0_i32_0 : i32, i32, i32, i32
  }
  func.func @transform_1(%arg0: i32, %arg1: i32) -> (i32, i32, i32, i32) {
    %c8_i32 = arith.constant 8 : i32
    %0 = arith.muli %arg1, %c8_i32 : i32
    %c1_i32 = arith.constant 1 : i32
    %1 = arith.subi %0, %c1_i32 : i32
    %c0_i32 = arith.constant 0 : i32
    %2 = arith.maxsi %1, %c0_i32 : i32
    %c0_i32_0 = arith.constant 0 : i32
    %c0_i32_1 = arith.constant 0 : i32
    %c0_i32_2 = arith.constant 0 : i32
    return %arg0, %2, %c0_i32_0, %c0_i32_1 : i32, i32, i32, i32
  }
  func.func @transform_2(%arg0: i32, %arg1: i32) -> (i32, i32, i32, i32) {
    %c1_i32 = arith.constant 1 : i32
    %0 = arith.addi %arg1, %c1_i32 : i32
    %c8_i32 = arith.constant 8 : i32
    %1 = arith.muli %0, %c8_i32 : i32
    %c15_i32 = arith.constant 15 : i32
    %2 = arith.minsi %1, %c15_i32 : i32
    %c0_i32 = arith.constant 0 : i32
    %c0_i32_0 = arith.constant 0 : i32
    %c0_i32_1 = arith.constant 0 : i32
    return %arg0, %2, %c0_i32, %c0_i32_0 : i32, i32, i32, i32
  }
  func.func @transform_3(%arg0: i32, %arg1: i32) -> (i32, i32) {
    %c0_i32 = arith.constant 0 : i32
    %c0_i32_0 = arith.constant 0 : i32
    %c0_i32_1 = arith.constant 0 : i32
    return %c0_i32, %c0_i32_0 : i32, i32
  }
  func.func @transform_4(%arg0: i32, %arg1: i32) -> (i32, i32, i32) {
    %c0_i32 = arith.constant 0 : i32
    %c0_i32_0 = arith.constant 0 : i32
    %c0_i32_1 = arith.constant 0 : i32
    %c0_i32_2 = arith.constant 0 : i32
    return %c0_i32, %c0_i32_0, %c0_i32_1 : i32, i32, i32
  }
  func.func @transform_5(%arg0: i32, %arg1: i32) -> (i32, i32, i32, i32) {
    %c0_i32 = arith.constant 0 : i32
    %c0_i32_0 = arith.constant 0 : i32
    %c0_i32_1 = arith.constant 0 : i32
    return %arg0, %arg1, %c0_i32, %c0_i32_0 : i32, i32, i32, i32
  }
  func.func @transform_6(%arg0: i32, %arg1: i32) -> (i32, i32, i32, i32) {
    %c0_i32 = arith.constant 0 : i32
    %c0_i32_0 = arith.constant 0 : i32
    %c0_i32_1 = arith.constant 0 : i32
    return %arg0, %arg1, %c0_i32, %c0_i32_0 : i32, i32, i32, i32
  }
}

module attributes {stable_mosaic.version = 11 : i64} {
  func.func @_bn_add_relu_kernel(%arg0: i32, %arg1: memref<512x128xbf16, #tpu.memory_space<vmem>>, %arg2: memref<2x128xf32, #tpu.memory_space<vmem>>, %arg3: memref<512x16xf32, #tpu.memory_space<vmem>>, %arg4: memref<512x16xf32, #tpu.memory_space<vmem>>) attributes {dimension_semantics = [#tpu.dimension_semantics<parallel>], iteration_bounds = array<i64: 1>, scalar_prefetch = 0 : i64, scratch_operands = 0 : i64, tpu.core_type = #tpu.core_type<tc>, window_params = [{transform_indices = @transform_0, window_bounds = array<i64: 512, 128>}, {pipeline_mode = #tpu.pipeline_mode<synchronous>, transform_indices = @transform_1, window_bounds = array<i64: 2, 128>}, {transform_indices = @transform_2, window_bounds = array<i64: 512, 16>}, {transform_indices = @transform_3, window_bounds = array<i64: 512, 16>}]} {
    %c0 = arith.constant 0 : index
    %c0_0 = arith.constant 0 : index
    %0 = vector.load %arg1[%c0, %c0_0] : memref<512x128xbf16, #tpu.memory_space<vmem>>, vector<512x128xbf16>
    %1 = arith.extf %0 : vector<512x128xbf16> to vector<512x128xf32>
    %c0_1 = arith.constant 0 : index
    %c0_2 = arith.constant 0 : index
    %2 = vector.load %arg2[%c0_1, %c0_2] : memref<2x128xf32, #tpu.memory_space<vmem>>, vector<1x128xf32>
    %3 = vector.broadcast %2 : vector<1x128xf32> to vector<512x128xf32>
    %4 = arith.mulf %1, %3 : vector<512x128xf32>
    %c1 = arith.constant 1 : index
    %c0_3 = arith.constant 0 : index
    %5 = vector.load %arg2[%c1, %c0_3] : memref<2x128xf32, #tpu.memory_space<vmem>>, vector<1x128xf32>
    %6 = vector.broadcast %5 : vector<1x128xf32> to vector<512x128xf32>
    %7 = arith.addf %4, %6 : vector<512x128xf32>
    %8 = vector.extract_strided_slice %7 {offsets = [0, 0], sizes = [512, 16], strides = [1, 1]} : vector<512x128xf32> to vector<512x16xf32>
    %c0_4 = arith.constant 0 : index
    %c0_5 = arith.constant 0 : index
    %9 = vector.load %arg3[%c0_4, %c0_5] : memref<512x16xf32, #tpu.memory_space<vmem>>, vector<512x16xf32>
    %10 = arith.addf %8, %9 : vector<512x16xf32>
    %cst = arith.constant 0.000000e+00 : f32
    %11 = vector.broadcast %cst : f32 to vector<512x16xf32>
    %12 = arith.maximumf %10, %11 : vector<512x16xf32>
    %c0_6 = arith.constant 0 : index
    %c0_7 = arith.constant 0 : index
    %13 = vector.load %arg4[%c0_6, %c0_7] : memref<512x16xf32, #tpu.memory_space<vmem>>, vector<512x16xf32>
    tpu.vector_store %arg4[%c0_6, %c0_7], %12 {strides = array<i32>} : memref<512x16xf32, #tpu.memory_space<vmem>>, vector<512x16xf32>,
    return
  }
  func.func @transform_0(%arg0: i32) -> (i32, i32) {
    %c0_i32 = arith.constant 0 : i32
    %c0_i32_0 = arith.constant 0 : i32
    return %arg0, %c0_i32 : i32, i32
  }
  func.func @transform_1(%arg0: i32) -> (i32, i32) {
    %c0_i32 = arith.constant 0 : i32
    %c0_i32_0 = arith.constant 0 : i32
    %c0_i32_1 = arith.constant 0 : i32
    return %c0_i32, %c0_i32_0 : i32, i32
  }
  func.func @transform_2(%arg0: i32) -> (i32, i32) {
    %c0_i32 = arith.constant 0 : i32
    %c0_i32_0 = arith.constant 0 : i32
    return %arg0, %c0_i32 : i32, i32
  }
  func.func @transform_3(%arg0: i32) -> (i32, i32) {
    %c0_i32 = arith.constant 0 : i32
    %c0_i32_0 = arith.constant 0 : i32
    return %arg0, %c0_i32 : i32, i32
  }
}

module attributes {stable_mosaic.version = 11 : i64} {
  func.func @_bn_relu_conv1x1_stats_kernel(%arg0: i32, %arg1: memref<512x128xbf16, #tpu.memory_space<vmem>>, %arg2: memref<2x128xf32, #tpu.memory_space<vmem>>, %arg3: memref<128x128xbf16, #tpu.memory_space<vmem>>, %arg4: memref<512x128xbf16, #tpu.memory_space<vmem>>, %arg5: memref<1x2x128xf32, #tpu.memory_space<vmem>>) attributes {dimension_semantics = [#tpu.dimension_semantics<parallel>], iteration_bounds = array<i64: 1>, scalar_prefetch = 0 : i64, scratch_operands = 0 : i64, tpu.core_type = #tpu.core_type<tc>, window_params = [{transform_indices = @transform_0, window_bounds = array<i64: 512, 128>}, {pipeline_mode = #tpu.pipeline_mode<synchronous>, transform_indices = @transform_1, window_bounds = array<i64: 2, 128>}, {pipeline_mode = #tpu.pipeline_mode<synchronous>, transform_indices = @transform_2, window_bounds = array<i64: 128, 128>}, {transform_indices = @transform_3, window_bounds = array<i64: 512, 128>}, {transform_indices = @transform_4, window_bounds = array<i64: 1, 2, 128>}]} {
    %c0 = arith.constant 0 : index
    %c0_0 = arith.constant 0 : index
    %0 = vector.load %arg1[%c0, %c0_0] : memref<512x128xbf16, #tpu.memory_space<vmem>>, vector<512x128xbf16>
    %1 = arith.extf %0 : vector<512x128xbf16> to vector<512x128xf32>
    %c0_1 = arith.constant 0 : index
    %c0_2 = arith.constant 0 : index
    %2 = vector.load %arg2[%c0_1, %c0_2] : memref<2x128xf32, #tpu.memory_space<vmem>>, vector<1x128xf32>
    %3 = vector.broadcast %2 : vector<1x128xf32> to vector<512x128xf32>
    %4 = arith.mulf %1, %3 : vector<512x128xf32>
    %c1 = arith.constant 1 : index
    %c0_3 = arith.constant 0 : index
    %5 = vector.load %arg2[%c1, %c0_3] : memref<2x128xf32, #tpu.memory_space<vmem>>, vector<1x128xf32>
    %6 = vector.broadcast %5 : vector<1x128xf32> to vector<512x128xf32>
    %7 = arith.addf %4, %6 : vector<512x128xf32>
    %cst = arith.constant 0.000000e+00 : f32
    %8 = vector.broadcast %cst : f32 to vector<512x128xf32>
    %9 = arith.maximumf %7, %8 : vector<512x128xf32>
    %10 = arith.truncf %9 : vector<512x128xf32> to vector<512x128xbf16>
    %c0_4 = arith.constant 0 : index
    %c0_5 = arith.constant 0 : index
    %11 = vector.load %arg3[%c0_4, %c0_5] : memref<128x128xbf16, #tpu.memory_space<vmem>>, vector<128x128xbf16>
    %cst_6 = arith.constant dense<0.000000e+00> : vector<512x128xf32>
    %12 = tpu.matmul %10, %11, %cst_6 {dimension_numbers = #tpu.dot_dimension_numbers<[1], [0], [0], [1], [0, 0, 1, 1], [], []>} : vector<512x128xbf16>, vector<128x128xbf16>, vector<512x128xf32> -> vector<512x128xf32>
    %13 = arith.truncf %12 : vector<512x128xf32> to vector<512x128xbf16>
    %c0_7 = arith.constant 0 : index
    %c0_8 = arith.constant 0 : index
    %14 = vector.load %arg4[%c0_7, %c0_8] : memref<512x128xbf16, #tpu.memory_space<vmem>>, vector<512x128xbf16>
    tpu.vector_store %arg4[%c0_7, %c0_8], %13 {strides = array<i32>} : memref<512x128xbf16, #tpu.memory_space<vmem>>, vector<512x128xbf16>,
    %cst_9 = arith.constant dense<0.000000e+00> : vector<128xf32>
    %15 = vector.multi_reduction <add>, %12, %cst_9 [0] : vector<512x128xf32> to vector<128xf32>
    %16 = vector.shape_cast %15 : vector<128xf32> to vector<1x128xf32>
    %17 = arith.mulf %12, %12 : vector<512x128xf32>
    %cst_10 = arith.constant dense<0.000000e+00> : vector<128xf32>
    %18 = vector.multi_reduction <add>, %17, %cst_10 [0] : vector<512x128xf32> to vector<128xf32>
    %19 = vector.shape_cast %18 : vector<128xf32> to vector<1x128xf32>
    %20 = tpu.concatenate %16, %19 in 0 : vector<1x128xf32>, vector<1x128xf32> -> vector<2x128xf32>
    %21 = vector.shape_cast %20 : vector<2x128xf32> to vector<1x2x128xf32>
    %c0_11 = arith.constant 0 : index
    %c0_12 = arith.constant 0 : index
    %c0_13 = arith.constant 0 : index
    %22 = vector.load %arg5[%c0_11, %c0_12, %c0_13] : memref<1x2x128xf32, #tpu.memory_space<vmem>>, vector<1x2x128xf32>
    tpu.vector_store %arg5[%c0_11, %c0_12, %c0_13], %21 {strides = array<i32>} : memref<1x2x128xf32, #tpu.memory_space<vmem>>, vector<1x2x128xf32>,
    return
  }
  func.func @transform_0(%arg0: i32) -> (i32, i32) {
    %c0_i32 = arith.constant 0 : i32
    %c0_i32_0 = arith.constant 0 : i32
    return %arg0, %c0_i32 : i32, i32
  }
  func.func @transform_1(%arg0: i32) -> (i32, i32) {
    %c0_i32 = arith.constant 0 : i32
    %c0_i32_0 = arith.constant 0 : i32
    %c0_i32_1 = arith.constant 0 : i32
    return %c0_i32, %c0_i32_0 : i32, i32
  }
  func.func @transform_2(%arg0: i32) -> (i32, i32) {
    %c0_i32 = arith.constant 0 : i32
    %c0_i32_0 = arith.constant 0 : i32
    %c0_i32_1 = arith.constant 0 : i32
    return %c0_i32, %c0_i32_0 : i32, i32
  }
  func.func @transform_3(%arg0: i32) -> (i32, i32) {
    %c0_i32 = arith.constant 0 : i32
    %c0_i32_0 = arith.constant 0 : i32
    return %arg0, %c0_i32 : i32, i32
  }
  func.func @transform_4(%arg0: i32) -> (i32, i32, i32) {
    %c0_i32 = arith.constant 0 : i32
    %c0_i32_0 = arith.constant 0 : i32
    %c0_i32_1 = arith.constant 0 : i32
    return %arg0, %c0_i32, %c0_i32_0 : i32, i32, i32
  }
}

</mosaic_0001>

<llo_original>
// kernel: bottleneck_forward.7
$region0: #{bottleneck_forward.7}
  #allocation0 [shape = 'u32[]', space=smem, size = 0x4, offset = 0x4, fixed_abs, tag = 'smem constant byte address 0x4 - core index']
  #allocation1 [shape = 'u32[144,128]{1,0:T(1,128)}', space=vmem, size = 0x12000, scoped, tag = 'internal scratch']
  %s0 = inlined_call_operand.vmem [shape: bf16[512,128], index: 0, kind: input, shape index: {}]
  %s1 = inlined_call_operand.vmem [shape: f32[2,128], index: 1, kind: input, shape index: {}]
  %s2 = inlined_call_operand.vmem [shape: f32[512,16], index: 2, kind: input, shape index: {}]
  %s3 = inlined_call_operand.vmem [shape: f32[512,16], index: 3, kind: output, shape index: {}]
  %s4 = sld [smem:[#allocation0]]
  $region22: #{bottleneck_forward.7} parent=0
    _
  %s6 = ssub.s32 1, %s4
  %s7 = scalar_select 0, %s6, %s4
  // Predicated region
  $region2: #{bottleneck_forward.7} parent=0 // pred_check
    _
  $region3: #{bottleneck_forward.7} parent=0 // pred_check_branch
    %9 = sbr.rel (0) target = $region5
  $region4: #{bottleneck_forward.7} parent=0 // pred_region
    _
  $region5: #{bottleneck_forward.7} parent=0 // pred_fallthru
    _
  // Predicated region
  $region6: #{bottleneck_forward.7} parent=0 // pred_check
    _
  $region7: #{bottleneck_forward.7} parent=0 // pred_check_branch
    %11 = sbr.rel (0) target = $region9
  $region8: #{bottleneck_forward.7} parent=0 // pred_region
    _
  $region9: #{bottleneck_forward.7} parent=0 // pred_fallthru
    _
  // Predicated region
  $region10: #{bottleneck_forward.7} parent=0 // pred_check
    _
  $region11: #{bottleneck_forward.7} parent=0 // pred_check_branch
    %13 = sbr.rel (0) target = $region13
  $region12: #{bottleneck_forward.7} parent=0 // pred_region
    _
  $region13: #{bottleneck_forward.7} parent=0 // pred_fallthru
    _
  %v14 = vld [vmem:[%s0] sm:$0xf]
  %v15 = vld [vmem:[%s0 + $0x4] sm:$0xf]
  %v16 = vld [vmem:[%s0 + $0x8] sm:$0xf]
  %v17 = vld [vmem:[%s0 + $0xc] sm:$0xf]
  %v18 = vld [vmem:[%s0 + $0x10] sm:$0xf]
  %v19 = vld [vmem:[%s0 + $0x14] sm:$0xf]
  %v20 = vld [vmem:[%s0 + $0x18] sm:$0xf]
  %v21 = vld [vmem:[%s0 + $0x1c] sm:$0xf]
  %v22 = vld [vmem:[%s0 + $0x20] sm:$0xf]
  %v23 = vld [vmem:[%s0 + $0x24] sm:$0xf]
  %v24 = vld [vmem:[%s0 + $0x28] sm:$0xf]
  %v25 = vld [vmem:[%s0 + $0x2c] sm:$0xf]
  %v26 = vld [vmem:[%s0 + $0x30] sm:$0xf]
  %v27 = vld [vmem:[%s0 + $0x34] sm:$0xf]
  %v28 = vld [vmem:[%s0 + $0x38] sm:$0xf]
  %v29 = vld [vmem:[%s0 + $0x3c] sm:$0xf]
  %v30 = vld [vmem:[%s0 + $0x40] sm:$0xf]
  %v31 = vld [vmem:[%s0 + $0x44] sm:$0xf]
  %v32 = vld [vmem:[%s0 + $0x48] sm:$0xf]
  %v33 = vld [vmem:[%s0 + $0x4c] sm:$0xf]
  %v34 = vld [vmem:[%s0 + $0x50] sm:$0xf]
  %v35 = vld [vmem:[%s0 + $0x54] sm:$0xf]
  %v36 = vld [vmem:[%s0 + $0x58] sm:$0xf]
  %v37 = vld [vmem:[%s0 + $0x5c] sm:$0xf]
  %v38 = vld [vmem:[%s0 + $0x60] sm:$0xf]
  %v39 = vld [vmem:[%s0 + $0x64] sm:$0xf]
  %v40 = vld [vmem:[%s0 + $0x68] sm:$0xf]
  %v41 = vld [vmem:[%s0 + $0x6c] sm:$0xf]
  %v42 = vld [vmem:[%s0 + $0x70] sm:$0xf]
  %v43 = vld [vmem:[%s0 + $0x74] sm:$0xf]
  %v44 = vld [vmem:[%s0 + $0x78] sm:$0xf]
  %v45 = vld [vmem:[%s0 + $0x7c] sm:$0xf]
  %v46 = vld [vmem:[%s0 + $0x80] sm:$0xf]
  %v47 = vld [vmem:[%s0 + $0x84] sm:$0xf]
  %v48 = vld [vmem:[%s0 + $0x88] sm:$0xf]
  %v49 = vld [vmem:[%s0 + $0x8c] sm:$0xf]
  %v50 = vld [vmem:[%s0 + $0x90] sm:$0xf]
  %v51 = vld [vmem:[%s0 + $0x94] sm:$0xf]
  %v52 = vld [vmem:[%s0 + $0x98] sm:$0xf]
  %v53 = vld [vmem:[%s0 + $0x9c] sm:$0xf]
  %v54 = vld [vmem:[%s0 + $0xa0] sm:$0xf]
  %v55 = vld [vmem:[%s0 + $0xa4] sm:$0xf]
  %v56 = vld [vmem:[%s0 + $0xa8] sm:$0xf]
  %v57 = vld [vmem:[%s0 + $0xac] sm:$0xf]
  %v58 = vld [vmem:[%s0 + $0xb0] sm:$0xf]
  %v59 = vld [vmem:[%s0 + $0xb4] sm:$0xf]
  %v60 = vld [vmem:[%s0 + $0xb8] sm:$0xf]
  %v61 = vld [vmem:[%s0 + $0xbc] sm:$0xf]
  %v62 = vld [vmem:[%s0 + $0xc0] sm:$0xf]
  %v63 = vld [vmem:[%s0 + $0xc4] sm:$0xf]
  %v64 = vld [vmem:[%s0 + $0xc8] sm:$0xf]
  %v65 = vld [vmem:[%s0 + $0xcc] sm:$0xf]
  %v66 = vld [vmem:[%s0 + $0xd0] sm:$0xf]
  %v67 = vld [vmem:[%s0 + $0xd4] sm:$0xf]
  %v68 = vld [vmem:[%s0 + $0xd8] sm:$0xf]
  %v69 = vld [vmem:[%s0 + $0xdc] sm:$0xf]
  %v70 = vld [vmem:[%s0 + $0xe0] sm:$0xf]
  %v71 = vld [vmem:[%s0 + $0xe4] sm:$0xf]
  %v72 = vld [vmem:[%s0 + $0xe8] sm:$0xf]
  %v73 = vld [vmem:[%s0 + $0xec] sm:$0xf]
  %v74 = vld [vmem:[%s0 + $0xf0] sm:$0xf]
  %v75 = vld [vmem:[%s0 + $0xf4] sm:$0xf]
  %v76 = vld [vmem:[%s0 + $0xf8] sm:$0xf]
  %v77 = vld [vmem:[%s0 + $0xfc] sm:$0xf]
  %v78 = vunpack.c.l.bf16 %v14
  %v79 = vunpack.c.l.bf16 %v15
  %v80 = vunpack.c.l.bf16 %v16
  %v81 = vunpack.c.l.bf16 %v17
  %v82 = vunpack.c.l.bf16 %v18
  %v83 = vunpack.c.l.bf16 %v19
  %v84 = vunpack.c.l.bf16 %v20
  %v85 = vunpack.c.l.bf16 %v21
  %v86 = vunpack.c.l.bf16 %v22
  %v87 = vunpack.c.l.bf16 %v23
  %v88 = vunpack.c.l.bf16 %v24
  %v89 = vunpack.c.l.bf16 %v25
  %v90 = vunpack.c.l.bf16 %v26
  %v91 = vunpack.c.l.bf16 %v27
  %v92 = vunpack.c.l.bf16 %v28
  %v93 = vunpack.c.l.bf16 %v29
  %v94 = vunpack.c.l.bf16 %v30
  %v95 = vunpack.c.l.bf16 %v31
  %v96 = vunpack.c.l.bf16 %v32
  %v97 = vunpack.c.l.bf16 %v33
  %v98 = vunpack.c.l.bf16 %v34
  %v99 = vunpack.c.l.bf16 %v35
  %v100 = vunpack.c.l.bf16 %v36
  %v101 = vunpack.c.l.bf16 %v37
  %v102 = vunpack.c.l.bf16 %v38
  %v103 = vunpack.c.l.bf16 %v39
  %v104 = vunpack.c.l.bf16 %v40
  %v105 = vunpack.c.l.bf16 %v41
  %v106 = vunpack.c.l.bf16 %v42
  %v107 = vunpack.c.l.bf16 %v43
  %v108 = vunpack.c.l.bf16 %v44
  %v109 = vunpack.c.l.bf16 %v45
  %v110 = vunpack.c.l.bf16 %v46
  %v111 = vunpack.c.l.bf16 %v47
  %v112 = vunpack.c.l.bf16 %v48
  %v113 = vunpack.c.l.bf16 %v49
  %v114 = vunpack.c.l.bf16 %v50
  %v115 = vunpack.c.l.bf16 %v51
  %v116 = vunpack.c.l.bf16 %v52
  %v117 = vunpack.c.l.bf16 %v53
  %v118 = vunpack.c.l.bf16 %v54
  %v119 = vunpack.c.l.bf16 %v55
  %v120 = vunpack.c.l.bf16 %v56
  %v121 = vunpack.c.l.bf16 %v57
  %v122 = vunpack.c.l.bf16 %v58
  %v123 = vunpack.c.l.bf16 %v59
  %v124 = vunpack.c.l.bf16 %v60
  %v125 = vunpack.c.l.bf16 %v61
  %v126 = vunpack.c.l.bf16 %v62
  %v127 = vunpack.c.l.bf16 %v63
  %v128 = vunpack.c.l.bf16 %v64
  %v129 = vunpack.c.l.bf16 %v65
  %v130 = vunpack.c.l.bf16 %v66
  %v131 = vunpack.c.l.bf16 %v67
  %v132 = vunpack.c.l.bf16 %v68
  %v133 = vunpack.c.l.bf16 %v69
  %v134 = vunpack.c.l.bf16 %v70
  %v135 = vunpack.c.l.bf16 %v71
  %v136 = vunpack.c.l.bf16 %v72
  %v137 = vunpack.c.l.bf16 %v73
  %v138 = vunpack.c.l.bf16 %v74
  %v139 = vunpack.c.l.bf16 %v75
  %v140 = vunpack.c.l.bf16 %v76
  %v141 = vunpack.c.l.bf16 %v77
  %v142 = vld [vmem:[%s1] sm:$0x1]
  %v143 = vlaneseq
  %v144 = vshrl.u32 %v143, 7
  %v145 = vsub.s32 0, %v144
  %v146 = vrot.slane %v142, %v145
  %v147 = vmul.f32 %v78, %v146
  %v148 = vmul.f32 %v79, %v146
  %v149 = vmul.f32 %v80, %v146
  %v150 = vmul.f32 %v81, %v146
  %v151 = vmul.f32 %v82, %v146
  %v152 = vmul.f32 %v83, %v146
  %v153 = vmul.f32 %v84, %v146
  %v154 = vmul.f32 %v85, %v146
  %v155 = vmul.f32 %v86, %v146
  %v156 = vmul.f32 %v87, %v146
  %v157 = vmul.f32 %v88, %v146
  %v158 = vmul.f32 %v89, %v146
  %v159 = vmul.f32 %v90, %v146
  %v160 = vmul.f32 %v91, %v146
  %v161 = vmul.f32 %v92, %v146
  %v162 = vmul.f32 %v93, %v146
  %v163 = vmul.f32 %v94, %v146
  %v164 = vmul.f32 %v95, %v146
  %v165 = vmul.f32 %v96, %v146
  %v166 = vmul.f32 %v97, %v146
  %v167 = vmul.f32 %v98, %v146
  %v168 = vmul.f32 %v99, %v146
  %v169 = vmul.f32 %v100, %v146
  %v170 = vmul.f32 %v101, %v146
  %v171 = vmul.f32 %v102, %v146
  %v172 = vmul.f32 %v103, %v146
  %v173 = vmul.f32 %v104, %v146
  %v174 = vmul.f32 %v105, %v146
  %v175 = vmul.f32 %v106, %v146
  %v176 = vmul.f32 %v107, %v146
  %v177 = vmul.f32 %v108, %v146
  %v178 = vmul.f32 %v109, %v146
  %v179 = vmul.f32 %v110, %v146
  %v180 = vmul.f32 %v111, %v146
  %v181 = vmul.f32 %v112, %v146
  %v182 = vmul.f32 %v113, %v146
  %v183 = vmul.f32 %v114, %v146
  %v184 = vmul.f32 %v115, %v146
  %v185 = vmul.f32 %v116, %v146
  %v186 = vmul.f32 %v117, %v146
  %v187 = vmul.f32 %v118, %v146
  %v188 = vmul.f32 %v119, %v146
  %v189 = vmul.f32 %v120, %v146
  %v190 = vmul.f32 %v121, %v146
  %v191 = vmul.f32 %v122, %v146
  %v192 = vmul.f32 %v123, %v146
  %v193 = vmul.f32 %v124, %v146
  %v194 = vmul.f32 %v125, %v146
  %v195 = vmul.f32 %v126, %v146
  %v196 = vmul.f32 %v127, %v146
  %v197 = vmul.f32 %v128, %v146
  %v198 = vmul.f32 %v129, %v146
  %v199 = vmul.f32 %v130, %v146
  %v200 = vmul.f32 %v131, %v146
  %v201 = vmul.f32 %v132, %v146
  %v202 = vmul.f32 %v133, %v146
  %v203 = vmul.f32 %v134, %v146
  %v204 = vmul.f32 %v135, %v146
  %v205 = vmul.f32 %v136, %v146
  %v206 = vmul.f32 %v137, %v146
  %v207 = vmul.f32 %v138, %v146
  %v208 = vmul.f32 %v139, %v146
  %v209 = vmul.f32 %v140, %v146
  %v210 = vmul.f32 %v141, %v146
  %v211 = vld [vmem:[%s1 + $0x1] sm:$0x1]
  %v212 = vlaneseq
  %v213 = vshrl.u32 %v212, 7
  %v214 = vsub.s32 0, %v213
  %v215 = vrot.slane %v211, %v214
  %v216 = vadd.f32 %v147, %v215
  %v217 = vadd.f32 %v148, %v215
  %v218 = vadd.f32 %v149, %v215
  %v219 = vadd.f32 %v150, %v215
  %v220 = vadd.f32 %v151, %v215
  %v221 = vadd.f32 %v152, %v215
  %v222 = vadd.f32 %v153, %v215
  %v223 = vadd.f32 %v154, %v215
  %v224 = vadd.f32 %v155, %v215
  %v225 = vadd.f32 %v156, %v215
  %v226 = vadd.f32 %v157, %v215
  %v227 = vadd.f32 %v158, %v215
  %v228 = vadd.f32 %v159, %v215
  %v229 = vadd.f32 %v160, %v215
  %v230 = vadd.f32 %v161, %v215
  %v231 = vadd.f32 %v162, %v215
  %v232 = vadd.f32 %v163, %v215
  %v233 = vadd.f32 %v164, %v215
  %v234 = vadd.f32 %v165, %v215
  %v235 = vadd.f32 %v166, %v215
  %v236 = vadd.f32 %v167, %v215
  %v237 = vadd.f32 %v168, %v215
  %v238 = vadd.f32 %v169, %v215
  %v239 = vadd.f32 %v170, %v215
  %v240 = vadd.f32 %v171, %v215
  %v241 = vadd.f32 %v172, %v215
  %v242 = vadd.f32 %v173, %v215
  %v243 = vadd.f32 %v174, %v215
  %v244 = vadd.f32 %v175, %v215
  %v245 = vadd.f32 %v176, %v215
  %v246 = vadd.f32 %v177, %v215
  %v247 = vadd.f32 %v178, %v215
  %v248 = vadd.f32 %v179, %v215
  %v249 = vadd.f32 %v180, %v215
  %v250 = vadd.f32 %v181, %v215
  %v251 = vadd.f32 %v182, %v215
  %v252 = vadd.f32 %v183, %v215
  %v253 = vadd.f32 %v184, %v215
  %v254 = vadd.f32 %v185, %v215
  %v255 = vadd.f32 %v186, %v215
  %v256 = vadd.f32 %v187, %v215
  %v257 = vadd.f32 %v188, %v215
  %v258 = vadd.f32 %v189, %v215
  %v259 = vadd.f32 %v190, %v215
  %v260 = vadd.f32 %v191, %v215
  %v261 = vadd.f32 %v192, %v215
  %v262 = vadd.f32 %v193, %v215
  %v263 = vadd.f32 %v194, %v215
  %v264 = vadd.f32 %v195, %v215
  %v265 = vadd.f32 %v196, %v215
  %v266 = vadd.f32 %v197, %v215
  %v267 = vadd.f32 %v198, %v215
  %v268 = vadd.f32 %v199, %v215
  %v269 = vadd.f32 %v200, %v215
  %v270 = vadd.f32 %v201, %v215
  %v271 = vadd.f32 %v202, %v215
  %v272 = vadd.f32 %v203, %v215
  %v273 = vadd.f32 %v204, %v215
  %v274 = vadd.f32 %v205, %v215
  %v275 = vadd.f32 %v206, %v215
  %v276 = vadd.f32 %v207, %v215
  %v277 = vadd.f32 %v208, %v215
  %v278 = vadd.f32 %v209, %v215
  %v279 = vadd.f32 %v210, %v215
  %v280 = vld [vmem:[%s2] sm:$0xff]
  %v281 = vld [vmem:[%s2 + $0x8] sm:$0xff]
  %v282 = vld [vmem:[%s2 + $0x10] sm:$0xff]
  %v283 = vld [vmem:[%s2 + $0x18] sm:$0xff]
  %v284 = vld [vmem:[%s2 + $0x20] sm:$0xff]
  %v285 = vld [vmem:[%s2 + $0x28] sm:$0xff]
  %v286 = vld [vmem:[%s2 + $0x30] sm:$0xff]
  %v287 = vld [vmem:[%s2 + $0x38] sm:$0xff]
  %v288 = vld [vmem:[%s2 + $0x40] sm:$0xff]
  %v289 = vld [vmem:[%s2 + $0x48] sm:$0xff]
  %v290 = vld [vmem:[%s2 + $0x50] sm:$0xff]
  %v291 = vld [vmem:[%s2 + $0x58] sm:$0xff]
  %v292 = vld [vmem:[%s2 + $0x60] sm:$0xff]
  %v293 = vld [vmem:[%s2 + $0x68] sm:$0xff]
  %v294 = vld [vmem:[%s2 + $0x70] sm:$0xff]
  %v295 = vld [vmem:[%s2 + $0x78] sm:$0xff]
  %v296 = vld [vmem:[%s2 + $0x80] sm:$0xff]
  %v297 = vld [vmem:[%s2 + $0x88] sm:$0xff]
  %v298 = vld [vmem:[%s2 + $0x90] sm:$0xff]
  %v299 = vld [vmem:[%s2 + $0x98] sm:$0xff]
  %v300 = vld [vmem:[%s2 + $0xa0] sm:$0xff]
  %v301 = vld [vmem:[%s2 + $0xa8] sm:$0xff]
  %v302 = vld [vmem:[%s2 + $0xb0] sm:$0xff]
  %v303 = vld [vmem:[%s2 + $0xb8] sm:$0xff]
  %v304 = vld [vmem:[%s2 + $0xc0] sm:$0xff]
  %v305 = vld [vmem:[%s2 + $0xc8] sm:$0xff]
  %v306 = vld [vmem:[%s2 + $0xd0] sm:$0xff]
  %v307 = vld [vmem:[%s2 + $0xd8] sm:$0xff]
  %v308 = vld [vmem:[%s2 + $0xe0] sm:$0xff]
  %v309 = vld [vmem:[%s2 + $0xe8] sm:$0xff]
  %v310 = vld [vmem:[%s2 + $0xf0] sm:$0xff]
  %v311 = vld [vmem:[%s2 + $0xf8] sm:$0xff]
  %v312 = vld [vmem:[%s2 + $0x100] sm:$0xff]
  %v313 = vld [vmem:[%s2 + $0x108] sm:$0xff]
  %v314 = vld [vmem:[%s2 + $0x110] sm:$0xff]
  %v315 = vld [vmem:[%s2 + $0x118] sm:$0xff]
  %v316 = vld [vmem:[%s2 + $0x120] sm:$0xff]
  %v317 = vld [vmem:[%s2 + $0x128] sm:$0xff]
  %v318 = vld [vmem:[%s2 + $0x130] sm:$0xff]
  %v319 = vld [vmem:[%s2 + $0x138] sm:$0xff]
  %v320 = vld [vmem:[%s2 + $0x140] sm:$0xff]
  %v321 = vld [vmem:[%s2 + $0x148] sm:$0xff]
  %v322 = vld [vmem:[%s2 + $0x150] sm:$0xff]
  %v323 = vld [vmem:[%s2 + $0x158] sm:$0xff]
  %v324 = vld [vmem:[%s2 + $0x160] sm:$0xff]
  %v325 = vld [vmem:[%s2 + $0x168] sm:$0xff]
  %v326 = vld [vmem:[%s2 + $0x170] sm:$0xff]
  %v327 = vld [vmem:[%s2 + $0x178] sm:$0xff]
  %v328 = vld [vmem:[%s2 + $0x180] sm:$0xff]
  %v329 = vld [vmem:[%s2 + $0x188] sm:$0xff]
  %v330 = vld [vmem:[%s2 + $0x190] sm:$0xff]
  %v331 = vld [vmem:[%s2 + $0x198] sm:$0xff]
  %v332 = vld [vmem:[%s2 + $0x1a0] sm:$0xff]
  %v333 = vld [vmem:[%s2 + $0x1a8] sm:$0xff]
  %v334 = vld [vmem:[%s2 + $0x1b0] sm:$0xff]
  %v335 = vld [vmem:[%s2 + $0x1b8] sm:$0xff]
  %v336 = vld [vmem:[%s2 + $0x1c0] sm:$0xff]
  %v337 = vld [vmem:[%s2 + $0x1c8] sm:$0xff]
  %v338 = vld [vmem:[%s2 + $0x1d0] sm:$0xff]
  %v339 = vld [vmem:[%s2 + $0x1d8] sm:$0xff]
  %v340 = vld [vmem:[%s2 + $0x1e0] sm:$0xff]
  %v341 = vld [vmem:[%s2 + $0x1e8] sm:$0xff]
  %v342 = vld [vmem:[%s2 + $0x1f0] sm:$0xff]
  %v343 = vld [vmem:[%s2 + $0x1f8] sm:$0xff]
  %v344 = vadd.f32 %v216, %v280
  %v345 = vadd.f32 %v217, %v281
  %v346 = vadd.f32 %v218, %v282
  %v347 = vadd.f32 %v219, %v283
  %v348 = vadd.f32 %v220, %v284
  %v349 = vadd.f32 %v221, %v285
  %v350 = vadd.f32 %v222, %v286
  %v351 = vadd.f32 %v223, %v287
  %v352 = vadd.f32 %v224, %v288
  %v353 = vadd.f32 %v225, %v289
  %v354 = vadd.f32 %v226, %v290
  %v355 = vadd.f32 %v227, %v291
  %v356 = vadd.f32 %v228, %v292
  %v357 = vadd.f32 %v229, %v293
  %v358 = vadd.f32 %v230, %v294
  %v359 = vadd.f32 %v231, %v295
  %v360 = vadd.f32 %v232, %v296
  %v361 = vadd.f32 %v233, %v297
  %v362 = vadd.f32 %v234, %v298
  %v363 = vadd.f32 %v235, %v299
  %v364 = vadd.f32 %v236, %v300
  %v365 = vadd.f32 %v237, %v301
  %v366 = vadd.f32 %v238, %v302
  %v367 = vadd.f32 %v239, %v303
  %v368 = vadd.f32 %v240, %v304
  %v369 = vadd.f32 %v241, %v305
  %v370 = vadd.f32 %v242, %v306
  %v371 = vadd.f32 %v243, %v307
  %v372 = vadd.f32 %v244, %v308
  %v373 = vadd.f32 %v245, %v309
  %v374 = vadd.f32 %v246, %v310
  %v375 = vadd.f32 %v247, %v311
  %v376 = vadd.f32 %v248, %v312
  %v377 = vadd.f32 %v249, %v313
  %v378 = vadd.f32 %v250, %v314
  %v379 = vadd.f32 %v251, %v315
  %v380 = vadd.f32 %v252, %v316
  %v381 = vadd.f32 %v253, %v317
  %v382 = vadd.f32 %v254, %v318
  %v383 = vadd.f32 %v255, %v319
  %v384 = vadd.f32 %v256, %v320
  %v385 = vadd.f32 %v257, %v321
  %v386 = vadd.f32 %v258, %v322
  %v387 = vadd.f32 %v259, %v323
  %v388 = vadd.f32 %v260, %v324
  %v389 = vadd.f32 %v261, %v325
  %v390 = vadd.f32 %v262, %v326
  %v391 = vadd.f32 %v263, %v327
  %v392 = vadd.f32 %v264, %v328
  %v393 = vadd.f32 %v265, %v329
  %v394 = vadd.f32 %v266, %v330
  %v395 = vadd.f32 %v267, %v331
  %v396 = vadd.f32 %v268, %v332
  %v397 = vadd.f32 %v269, %v333
  %v398 = vadd.f32 %v270, %v334
  %v399 = vadd.f32 %v271, %v335
  %v400 = vadd.f32 %v272, %v336
  %v401 = vadd.f32 %v273, %v337
  %v402 = vadd.f32 %v274, %v338
  %v403 = vadd.f32 %v275, %v339
  %v404 = vadd.f32 %v276, %v340
  %v405 = vadd.f32 %v277, %v341
  %v406 = vadd.f32 %v278, %v342
  %v407 = vadd.f32 %v279, %v343
  %v408 = vmax.f32 %v344, 0.0
  %v409 = vmax.f32 %v345, 0.0
  %v410 = vmax.f32 %v346, 0.0
  %v411 = vmax.f32 %v347, 0.0
  %v412 = vmax.f32 %v348, 0.0
  %v413 = vmax.f32 %v349, 0.0
  %v414 = vmax.f32 %v350, 0.0
  %v415 = vmax.f32 %v351, 0.0
  %v416 = vmax.f32 %v352, 0.0
  %v417 = vmax.f32 %v353, 0.0
  %v418 = vmax.f32 %v354, 0.0
  %v419 = vmax.f32 %v355, 0.0
  %v420 = vmax.f32 %v356, 0.0
  %v421 = vmax.f32 %v357, 0.0
  %v422 = vmax.f32 %v358, 0.0
  %v423 = vmax.f32 %v359, 0.0
  %v424 = vmax.f32 %v360, 0.0
  %v425 = vmax.f32 %v361, 0.0
  %v426 = vmax.f32 %v362, 0.0
  %v427 = vmax.f32 %v363, 0.0
  %v428 = vmax.f32 %v364, 0.0
  %v429 = vmax.f32 %v365, 0.0
  %v430 = vmax.f32 %v366, 0.0
  %v431 = vmax.f32 %v367, 0.0
  %v432 = vmax.f32 %v368, 0.0
  %v433 = vmax.f32 %v369, 0.0
  %v434 = vmax.f32 %v370, 0.0
  %v435 = vmax.f32 %v371, 0.0
  %v436 = vmax.f32 %v372, 0.0
  %v437 = vmax.f32 %v373, 0.0
  %v438 = vmax.f32 %v374, 0.0
  %v439 = vmax.f32 %v375, 0.0
  %v440 = vmax.f32 %v376, 0.0
  %v441 = vmax.f32 %v377, 0.0
  %v442 = vmax.f32 %v378, 0.0
  %v443 = vmax.f32 %v379, 0.0
  %v444 = vmax.f32 %v380, 0.0
  %v445 = vmax.f32 %v381, 0.0
  %v446 = vmax.f32 %v382, 0.0
  %v447 = vmax.f32 %v383, 0.0
  %v448 = vmax.f32 %v384, 0.0
  %v449 = vmax.f32 %v385, 0.0
  %v450 = vmax.f32 %v386, 0.0
  %v451 = vmax.f32 %v387, 0.0
  %v452 = vmax.f32 %v388, 0.0
  %v453 = vmax.f32 %v389, 0.0
  %v454 = vmax.f32 %v390, 0.0
  %v455 = vmax.f32 %v391, 0.0
  %v456 = vmax.f32 %v392, 0.0
  %v457 = vmax.f32 %v393, 0.0
  %v458 = vmax.f32 %v394, 0.0
  %v459 = vmax.f32 %v395, 0.0
  %v460 = vmax.f32 %v396, 0.0
  %v461 = vmax.f32 %v397, 0.0
  %v462 = vmax.f32 %v398, 0.0
  %v463 = vmax.f32 %v399, 0.0
  %v464 = vmax.f32 %v400, 0.0
  %v465 = vmax.f32 %v401, 0.0
  %v466 = vmax.f32 %v402, 0.0
  %v467 = vmax.f32 %v403, 0.0
  %v468 = vmax.f32 %v404, 0.0
  %v469 = vmax.f32 %v405, 0.0
  %v470 = vmax.f32 %v406, 0.0
  %v471 = vmax.f32 %v407, 0.0
  %vm472 = vcmask 130048
  %473 = vst.msk [vmem:[%s3] sm:$0xff] %vm472, %v408
  %474 = vst.msk [vmem:[%s3 + $0x8] sm:$0xff] %vm472, %v409
  %475 = vst.msk [vmem:[%s3 + $0x10] sm:$0xff] %vm472, %v410
  %476 = vst.msk [vmem:[%s3 + $0x18] sm:$0xff] %vm472, %v411
  %477 = vst.msk [vmem:[%s3 + $0x20] sm:$0xff] %vm472, %v412
  %478 = vst.msk [vmem:[%s3 + $0x28] sm:$0xff] %vm472, %v413
  %479 = vst.msk [vmem:[%s3 + $0x30] sm:$0xff] %vm472, %v414
  %480 = vst.msk [vmem:[%s3 + $0x38] sm:$0xff] %vm472, %v415
  %481 = vst.msk [vmem:[%s3 + $0x40] sm:$0xff] %vm472, %v416
  %482 = vst.msk [vmem:[%s3 + $0x48] sm:$0xff] %vm472, %v417
  %483 = vst.msk [vmem:[%s3 + $0x50] sm:$0xff] %vm472, %v418
  %484 = vst.msk [vmem:[%s3 + $0x58] sm:$0xff] %vm472, %v419
  %485 = vst.msk [vmem:[%s3 + $0x60] sm:$0xff] %vm472, %v420
  %486 = vst.msk [vmem:[%s3 + $0x68] sm:$0xff] %vm472, %v421
  %487 = vst.msk [vmem:[%s3 + $0x70] sm:$0xff] %vm472, %v422
  %488 = vst.msk [vmem:[%s3 + $0x78] sm:$0xff] %vm472, %v423
  %489 = vst.msk [vmem:[%s3 + $0x80] sm:$0xff] %vm472, %v424
  %490 = vst.msk [vmem:[%s3 + $0x88] sm:$0xff] %vm472, %v425
  %491 = vst.msk [vmem:[%s3 + $0x90] sm:$0xff] %vm472, %v426
  %492 = vst.msk [vmem:[%s3 + $0x98] sm:$0xff] %vm472, %v427
  %493 = vst.msk [vmem:[%s3 + $0xa0] sm:$0xff] %vm472, %v428
  %494 = vst.msk [vmem:[%s3 + $0xa8] sm:$0xff] %vm472, %v429
  %495 = vst.msk [vmem:[%s3 + $0xb0] sm:$0xff] %vm472, %v430
  %496 = vst.msk [vmem:[%s3 + $0xb8] sm:$0xff] %vm472, %v431
  %497 = vst.msk [vmem:[%s3 + $0xc0] sm:$0xff] %vm472, %v432
  %498 = vst.msk [vmem:[%s3 + $0xc8] sm:$0xff] %vm472, %v433
  %499 = vst.msk [vmem:[%s3 + $0xd0] sm:$0xff] %vm472, %v434
  %500 = vst.msk [vmem:[%s3 + $0xd8] sm:$0xff] %vm472, %v435
  %501 = vst.msk [vmem:[%s3 + $0xe0] sm:$0xff] %vm472, %v436
  %502 = vst.msk [vmem:[%s3 + $0xe8] sm:$0xff] %vm472, %v437
  %503 = vst.msk [vmem:[%s3 + $0xf0] sm:$0xff] %vm472, %v438
  %504 = vst.msk [vmem:[%s3 + $0xf8] sm:$0xff] %vm472, %v439
  %505 = vst.msk [vmem:[%s3 + $0x100] sm:$0xff] %vm472, %v440
  %506 = vst.msk [vmem:[%s3 + $0x108] sm:$0xff] %vm472, %v441
  %507 = vst.msk [vmem:[%s3 + $0x110] sm:$0xff] %vm472, %v442
  %508 = vst.msk [vmem:[%s3 + $0x118] sm:$0xff] %vm472, %v443
  %509 = vst.msk [vmem:[%s3 + $0x120] sm:$0xff] %vm472, %v444
  %510 = vst.msk [vmem:[%s3 + $0x128] sm:$0xff] %vm472, %v445
  %511 = vst.msk [vmem:[%s3 + $0x130] sm:$0xff] %vm472, %v446
  %512 = vst.msk [vmem:[%s3 + $0x138] sm:$0xff] %vm472, %v447
  %513 = vst.msk [vmem:[%s3 + $0x140] sm:$0xff] %vm472, %v448
  %514 = vst.msk [vmem:[%s3 + $0x148] sm:$0xff] %vm472, %v449
  %515 = vst.msk [vmem:[%s3 + $0x150] sm:$0xff] %vm472, %v450
  %516 = vst.msk [vmem:[%s3 + $0x158] sm:$0xff] %vm472, %v451
  %517 = vst.msk [vmem:[%s3 + $0x160] sm:$0xff] %vm472, %v452
  %518 = vst.msk [vmem:[%s3 + $0x168] sm:$0xff] %vm472, %v453
  %519 = vst.msk [vmem:[%s3 + $0x170] sm:$0xff] %vm472, %v454
  %520 = vst.msk [vmem:[%s3 + $0x178] sm:$0xff] %vm472, %v455
  %521 = vst.msk [vmem:[%s3 + $0x180] sm:$0xff] %vm472, %v456
  %522 = vst.msk [vmem:[%s3 + $0x188] sm:$0xff] %vm472, %v457
  %523 = vst.msk [vmem:[%s3 + $0x190] sm:$0xff] %vm472, %v458
  %524 = vst.msk [vmem:[%s3 + $0x198] sm:$0xff] %vm472, %v459
  %525 = vst.msk [vmem:[%s3 + $0x1a0] sm:$0xff] %vm472, %v460
  %526 = vst.msk [vmem:[%s3 + $0x1a8] sm:$0xff] %vm472, %v461
  %527 = vst.msk [vmem:[%s3 + $0x1b0] sm:$0xff] %vm472, %v462
  %528 = vst.msk [vmem:[%s3 + $0x1b8] sm:$0xff] %vm472, %v463
  %529 = vst.msk [vmem:[%s3 + $0x1c0] sm:$0xff] %vm472, %v464
  %530 = vst.msk [vmem:[%s3 + $0x1c8] sm:$0xff] %vm472, %v465
  %531 = vst.msk [vmem:[%s3 + $0x1d0] sm:$0xff] %vm472, %v466
  %532 = vst.msk [vmem:[%s3 + $0x1d8] sm:$0xff] %vm472, %v467
  %533 = vst.msk [vmem:[%s3 + $0x1e0] sm:$0xff] %vm472, %v468
  %534 = vst.msk [vmem:[%s3 + $0x1e8] sm:$0xff] %vm472, %v469
  %535 = vst.msk [vmem:[%s3 + $0x1f0] sm:$0xff] %vm472, %v470
  %536 = vst.msk [vmem:[%s3 + $0x1f8] sm:$0xff] %vm472, %v471
  // Predicated region
  $region14: #{bottleneck_forward.7} parent=0 // pred_check
    _
  $region15: #{bottleneck_forward.7} parent=0 // pred_check_branch
    %538 = sbr.rel (0) target = $region17
  $region16: #{bottleneck_forward.7} parent=0 // pred_region
    _
  $region17: #{bottleneck_forward.7} parent=0 // pred_fallthru
    _
  // Predicated region
  $region18: #{bottleneck_forward.7} parent=0 // pred_check
    _
  $region19: #{bottleneck_forward.7} parent=0 // pred_check_branch
    %540 = sbr.rel (0) target = $region21
  $region20: #{bottleneck_forward.7} parent=0 // pred_region
    _
  $region21: #{bottleneck_forward.7} parent=0 // pred_fallthru
    _

// kernel: bottleneck_forward.4
$region0: #{bottleneck_forward.4}
  #allocation0 [shape = 'u32[]', space=smem, size = 0x4, offset = 0x4, fixed_abs, tag = 'smem constant byte address 0x4 - core index']
  #allocation1 [shape = 'u32[144,128]{1,0:T(1,128)}', space=vmem, size = 0x12000, scoped, tag = 'internal scratch']
  %s0 = inlined_call_operand.vmem [shape: f32[512,16], index: 0, kind: input, shape index: {}]
  %s1 = inlined_call_operand.vmem [shape: bf16[16,128], index: 1, kind: input, shape index: {}]
  %s2 = inlined_call_operand.vmem [shape: bf16[512,128], index: 2, kind: output, shape index: {0}]
  %s3 = inlined_call_operand.vmem [shape: f32[1,2,128], index: 3, kind: output, shape index: {1}]
  %4 = xla_tuple %s2, %s3
  %s5 = sld [smem:[#allocation0]]
  $region26: #{bottleneck_forward.4} parent=0
    _
  %s7 = ssub.s32 1, %s5
  %s8 = scalar_select 0, %s7, %s5
  // Predicated region
  $region2: #{bottleneck_forward.4} parent=0 // pred_check
    _
  $region3: #{bottleneck_forward.4} parent=0 // pred_check_branch
    %10 = sbr.rel (0) target = $region5
  $region4: #{bottleneck_forward.4} parent=0 // pred_region
    _
  $region5: #{bottleneck_forward.4} parent=0 // pred_fallthru
    _
  // Predicated region
  $region6: #{bottleneck_forward.4} parent=0 // pred_check
    _
  $region7: #{bottleneck_forward.4} parent=0 // pred_check_branch
    %12 = sbr.rel (0) target = $region9
  $region8: #{bottleneck_forward.4} parent=0 // pred_region
    _
  $region9: #{bottleneck_forward.4} parent=0 // pred_fallthru
    _
  %v14 = vld [vmem:[%s0] sm:$0xff]
  %v15 = vld [vmem:[%s0 + $0x8] sm:$0xff]
  %v16 = vld [vmem:[%s0 + $0x10] sm:$0xff]
  %v17 = vld [vmem:[%s0 + $0x18] sm:$0xff]
  %v18 = vld [vmem:[%s0 + $0x20] sm:$0xff]
  %v19 = vld [vmem:[%s0 + $0x28] sm:$0xff]
  %v20 = vld [vmem:[%s0 + $0x30] sm:$0xff]
  %v21 = vld [vmem:[%s0 + $0x38] sm:$0xff]
  %v22 = vld [vmem:[%s0 + $0x40] sm:$0xff]
  %v23 = vld [vmem:[%s0 + $0x48] sm:$0xff]
  %v24 = vld [vmem:[%s0 + $0x50] sm:$0xff]
  %v25 = vld [vmem:[%s0 + $0x58] sm:$0xff]
  %v26 = vld [vmem:[%s0 + $0x60] sm:$0xff]
  %v27 = vld [vmem:[%s0 + $0x68] sm:$0xff]
  %v28 = vld [vmem:[%s0 + $0x70] sm:$0xff]
  %v29 = vld [vmem:[%s0 + $0x78] sm:$0xff]
  %v30 = vld [vmem:[%s0 + $0x80] sm:$0xff]
  %v31 = vld [vmem:[%s0 + $0x88] sm:$0xff]
  %v32 = vld [vmem:[%s0 + $0x90] sm:$0xff]
  %v33 = vld [vmem:[%s0 + $0x98] sm:$0xff]
  %v34 = vld [vmem:[%s0 + $0xa0] sm:$0xff]
  %v35 = vld [vmem:[%s0 + $0xa8] sm:$0xff]
  %v36 = vld [vmem:[%s0 + $0xb0] sm:$0xff]
  %v37 = vld [vmem:[%s0 + $0xb8] sm:$0xff]
  %v38 = vld [vmem:[%s0 + $0xc0] sm:$0xff]
  %v39 = vld [vmem:[%s0 + $0xc8] sm:$0xff]
  %v40 = vld [vmem:[%s0 + $0xd0] sm:$0xff]
  %v41 = vld [vmem:[%s0 + $0xd8] sm:$0xff]
  %v42 = vld [vmem:[%s0 + $0xe0] sm:$0xff]
  %v43 = vld [vmem:[%s0 + $0xe8] sm:$0xff]
  %v44 = vld [vmem:[%s0 + $0xf0] sm:$0xff]
  %v45 = vld [vmem:[%s0 + $0xf8] sm:$0xff]
  %v46 = vld [vmem:[%s0 + $0x100] sm:$0xff]
  %v47 = vld [vmem:[%s0 + $0x108] sm:$0xff]
  %v48 = vld [vmem:[%s0 + $0x110] sm:$0xff]
  %v49 = vld [vmem:[%s0 + $0x118] sm:$0xff]
  %v50 = vld [vmem:[%s0 + $0x120] sm:$0xff]
  %v51 = vld [vmem:[%s0 + $0x128] sm:$0xff]
  %v52 = vld [vmem:[%s0 + $0x130] sm:$0xff]
  %v53 = vld [vmem:[%s0 + $0x138] sm:$0xff]
  %v54 = vld [vmem:[%s0 + $0x140] sm:$0xff]
  %v55 = vld [vmem:[%s0 + $0x148] sm:$0xff]
  %v56 = vld [vmem:[%s0 + $0x150] sm:$0xff]
  %v57 = vld [vmem:[%s0 + $0x158] sm:$0xff]
  %v58 = vld [vmem:[%s0 + $0x160] sm:$0xff]
  %v59 = vld [vmem:[%s0 + $0x168] sm:$0xff]
  %v60 = vld [vmem:[%s0 + $0x170] sm:$0xff]
  %v61 = vld [vmem:[%s0 + $0x178] sm:$0xff]
  %v62 = vld [vmem:[%s0 + $0x180] sm:$0xff]
  %v63 = vld [vmem:[%s0 + $0x188] sm:$0xff]
  %v64 = vld [vmem:[%s0 + $0x190] sm:$0xff]
  %v65 = vld [vmem:[%s0 + $0x198] sm:$0xff]
  %v66 = vld [vmem:[%s0 + $0x1a0] sm:$0xff]
  %v67 = vld [vmem:[%s0 + $0x1a8] sm:$0xff]
  %v68 = vld [vmem:[%s0 + $0x1b0] sm:$0xff]
  %v69 = vld [vmem:[%s0 + $0x1b8] sm:$0xff]
  %v70 = vld [vmem:[%s0 + $0x1c0] sm:$0xff]
  %v71 = vld [vmem:[%s0 + $0x1c8] sm:$0xff]
  %v72 = vld [vmem:[%s0 + $0x1d0] sm:$0xff]
  %v73 = vld [vmem:[%s0 + $0x1d8] sm:$0xff]
  %v74 = vld [vmem:[%s0 + $0x1e0] sm:$0xff]
  %v75 = vld [vmem:[%s0 + $0x1e8] sm:$0xff]
  %v76 = vld [vmem:[%s0 + $0x1f0] sm:$0xff]
  %v77 = vld [vmem:[%s0 + $0x1f8] sm:$0xff]
  %v78 = vpack.c.bf16 %v15, %v14
  %v79 = vpack.c.bf16 %v17, %v16
  %v80 = vpack.c.bf16 %v19, %v18
  %v81 = vpack.c.bf16 %v21, %v20
  %v82 = vpack.c.bf16 %v23, %v22
  %v83 = vpack.c.bf16 %v25, %v24
  %v84 = vpack.c.bf16 %v27, %v26
  %v85 = vpack.c.bf16 %v29, %v28
  %v86 = vpack.c.bf16 %v31, %v30
  %v87 = vpack.c.bf16 %v33, %v32
  %v88 = vpack.c.bf16 %v35, %v34
  %v89 = vpack.c.bf16 %v37, %v36
  %v90 = vpack.c.bf16 %v39, %v38
  %v91 = vpack.c.bf16 %v41, %v40
  %v92 = vpack.c.bf16 %v43, %v42
  %v93 = vpack.c.bf16 %v45, %v44
  %v94 = vpack.c.bf16 %v47, %v46
  %v95 = vpack.c.bf16 %v49, %v48
  %v96 = vpack.c.bf16 %v51, %v50
  %v97 = vpack.c.bf16 %v53, %v52
  %v98 = vpack.c.bf16 %v55, %v54
  %v99 = vpack.c.bf16 %v57, %v56
  %v100 = vpack.c.bf16 %v59, %v58
  %v101 = vpack.c.bf16 %v61, %v60
  %v102 = vpack.c.bf16 %v63, %v62
  %v103 = vpack.c.bf16 %v65, %v64
  %v104 = vpack.c.bf16 %v67, %v66
  %v105 = vpack.c.bf16 %v69, %v68
  %v106 = vpack.c.bf16 %v71, %v70
  %v107 = vpack.c.bf16 %v73, %v72
  %v108 = vpack.c.bf16 %v75, %v74
  %v109 = vpack.c.bf16 %v77, %v76
  %v110 = vld [vmem:[%s1] sm:$0xf]
  %v111 = vld [vmem:[%s1 + $0x4] sm:$0xf]
  %v114 = vunpack.c.l.b16 %v110
  %v115 = vunpack.c.l.b16 %v111
  %v116 = vpack.c.b16 %v115, %v114
  %vm118 = vcmask 130048
  %v120 = vsel %vm118, %v78, 0
  %v123 = vsel %vm118, %v79, 0
  %v126 = vsel %vm118, %v80, 0
  %v129 = vsel %vm118, %v81, 0
  %v132 = vsel %vm118, %v82, 0
  %v135 = vsel %vm118, %v83, 0
  %v138 = vsel %vm118, %v84, 0
  %v141 = vsel %vm118, %v85, 0
  %v144 = vsel %vm118, %v86, 0
  %v147 = vsel %vm118, %v87, 0
  %v150 = vsel %vm118, %v88, 0
  %v153 = vsel %vm118, %v89, 0
  %v156 = vsel %vm118, %v90, 0
  %v159 = vsel %vm118, %v91, 0
  %v162 = vsel %vm118, %v92, 0
  %v165 = vsel %vm118, %v93, 0
  %v168 = vsel %vm118, %v94, 0
  %v171 = vsel %vm118, %v95, 0
  %v174 = vsel %vm118, %v96, 0
  %v177 = vsel %vm118, %v97, 0
  %v180 = vsel %vm118, %v98, 0
  %v183 = vsel %vm118, %v99, 0
  %v186 = vsel %vm118, %v100, 0
  %v189 = vsel %vm118, %v101, 0
  %v192 = vsel %vm118, %v102, 0
  %v195 = vsel %vm118, %v103, 0
  %v198 = vsel %vm118, %v104, 0
  %v201 = vsel %vm118, %v105, 0
  %v204 = vsel %vm118, %v106, 0
  %v207 = vsel %vm118, %v107, 0
  %v210 = vsel %vm118, %v108, 0
  %v213 = vsel %vm118, %v109, 0
  %215 = vmatprep.subr.bf16.mxu0 0
  %216 = vmatpush1.bf16.msra.mxu0 %v116
  %217 = vmatprep.subr.bf16.mxu0 0
  %218 = vmatpush1.bf16.msra.mxu0 0
  %219 = vmatprep.subr.bf16.mxu0 0
  %220 = vmatpush1.bf16.msra.mxu0 0
  %221 = vmatprep.subr.bf16.mxu0 0
  %222 = vmatpush1.bf16.msra.mxu0 0
  %223 = vmatprep.subr.bf16.mxu0 0
  %224 = vmatpush1.bf16.msra.mxu0 0
  %225 = vmatprep.subr.bf16.mxu0 0
  %226 = vmatpush1.bf16.msra.mxu0 0
  %227 = vmatprep.subr.bf16.mxu0 0
  %228 = vmatpush1.bf16.msra.mxu0 0
  %229 = vmatprep.subr.bf16.mxu0 0
  %230 = vmatpush1.bf16.msra.mxu0 0
  %231 = vmatprep.subr.bf16.mxu0 0
  %232 = vmatpush1.bf16.msra.mxu0 0
  %233 = vmatprep.subr.bf16.mxu0 0
  %234 = vmatpush1.bf16.msra.mxu0 0
  %235 = vmatprep.subr.bf16.mxu0 0
  %236 = vmatpush1.bf16.msra.mxu0 0
  %237 = vmatprep.subr.bf16.mxu0 0
  %238 = vmatpush1.bf16.msra.mxu0 0
  %239 = vmatprep.subr.bf16.mxu0 0
  %240 = vmatpush1.bf16.msra.mxu0 0
  %241 = vmatprep.subr.bf16.mxu0 0
  %242 = vmatpush1.bf16.msra.mxu0 0
  %243 = vmatprep.subr.bf16.mxu0 0
  %244 = vmatpush1.bf16.msra.mxu0 0
  %245 = vmatprep.subr.bf16.mxu0 0
  %246 = vmatpush1.bf16.msra.mxu0 0
  %247 = vmatprep.mubr.bf16.mxu0 0
  %248 = vmatmul.mubr.bf16.gmra.mrb[0].mxu0 %v120
  %v249 = vpop.f32.mrb[0].mxu0
  %v250 = vadd.f32 0.0, %v249
  %v251 = vpop.f32.mrb[0].mxu0
  %v252 = vpop.f32.mrb[0].mxu0
  %v253 = vadd.f32 0.0, %v252
  %v254 = vpop.f32.mrb[0].mxu0
  %255 = vmatprep.mubr.bf16.mxu0 0
  %256 = vmatmul.mubr.bf16.gmra.mrb[0].mxu0 %v123
  %v257 = vpop.f32.mrb[0].mxu0
  %v258 = vadd.f32 0.0, %v257
  %v259 = vpop.f32.mrb[0].mxu0
  %v260 = vpop.f32.mrb[0].mxu0
  %v261 = vadd.f32 0.0, %v260
  %v262 = vpop.f32.mrb[0].mxu0
  %263 = vmatprep.mubr.bf16.mxu0 0
  %264 = vmatmul.mubr.bf16.gmra.mrb[0].mxu0 %v126
  %v265 = vpop.f32.mrb[0].mxu0
  %v266 = vadd.f32 0.0, %v265
  %v267 = vpop.f32.mrb[0].mxu0
  %v268 = vpop.f32.mrb[0].mxu0
  %v269 = vadd.f32 0.0, %v268
  %v270 = vpop.f32.mrb[0].mxu0
  %271 = vmatprep.mubr.bf16.mxu0 0
  %272 = vmatmul.mubr.bf16.gmra.mrb[0].mxu0 %v129
  %v273 = vpop.f32.mrb[0].mxu0
  %v274 = vadd.f32 0.0, %v273
  %v275 = vpop.f32.mrb[0].mxu0
  %v276 = vpop.f32.mrb[0].mxu0
  %v277 = vadd.f32 0.0, %v276
  %v278 = vpop.f32.mrb[0].mxu0
  %279 = vmatprep.mubr.bf16.mxu0 0
  %280 = vmatmul.mubr.bf16.gmra.mrb[0].mxu0 %v132
  %v281 = vpop.f32.mrb[0].mxu0
  %v282 = vadd.f32 0.0, %v281
  %v283 = vpop.f32.mrb[0].mxu0
  %v284 = vpop.f32.mrb[0].mxu0
  %v285 = vadd.f32 0.0, %v284
  %v286 = vpop.f32.mrb[0].mxu0
  %287 = vmatprep.mubr.bf16.mxu0 0
  %288 = vmatmul.mubr.bf16.gmra.mrb[0].mxu0 %v135
  %v289 = vpop.f32.mrb[0].mxu0
  %v290 = vadd.f32 0.0, %v289
  %v291 = vpop.f32.mrb[0].mxu0
  %v292 = vpop.f32.mrb[0].mxu0
  %v293 = vadd.f32 0.0, %v292
  %v294 = vpop.f32.mrb[0].mxu0
  %295 = vmatprep.mubr.bf16.mxu0 0
  %296 = vmatmul.mubr.bf16.gmra.mrb[0].mxu0 %v138
  %v297 = vpop.f32.mrb[0].mxu0
  %v298 = vadd.f32 0.0, %v297
  %v299 = vpop.f32.mrb[0].mxu0
  %v300 = vpop.f32.mrb[0].mxu0
  %v301 = vadd.f32 0.0, %v300
  %v302 = vpop.f32.mrb[0].mxu0
  %303 = vmatprep.mubr.bf16.mxu0 0
  %304 = vmatmul.mubr.bf16.gmra.mrb[0].mxu0 %v141
  %v305 = vpop.f32.mrb[0].mxu0
  %v306 = vadd.f32 0.0, %v305
  %v307 = vpop.f32.mrb[0].mxu0
  %v308 = vpop.f32.mrb[0].mxu0
  %v309 = vadd.f32 0.0, %v308
  %v310 = vpop.f32.mrb[0].mxu0
  %311 = vmatprep.mubr.bf16.mxu0 0
  %312 = vmatmul.mubr.bf16.gmra.mrb[0].mxu0 %v144
  %v313 = vpop.f32.mrb[0].mxu0
  %v314 = vadd.f32 0.0, %v313
  %v315 = vpop.f32.mrb[0].mxu0
  %v316 = vpop.f32.mrb[0].mxu0
  %v317 = vadd.f32 0.0, %v316
  %v318 = vpop.f32.mrb[0].mxu0
  %319 = vmatprep.mubr.bf16.mxu0 0
  %320 = vmatmul.mubr.bf16.gmra.mrb[0].mxu0 %v147
  %v321 = vpop.f32.mrb[0].mxu0
  %v322 = vadd.f32 0.0, %v321
  %v323 = vpop.f32.mrb[0].mxu0
  %v324 = vpop.f32.mrb[0].mxu0
  %v325 = vadd.f32 0.0, %v324
  %v326 = vpop.f32.mrb[0].mxu0
  %327 = vmatprep.mubr.bf16.mxu0 0
  %328 = vmatmul.mubr.bf16.gmra.mrb[0].mxu0 %v150
  %v329 = vpop.f32.mrb[0].mxu0
  %v330 = vadd.f32 0.0, %v329
  %v331 = vpop.f32.mrb[0].mxu0
  %v332 = vpop.f32.mrb[0].mxu0
  %v333 = vadd.f32 0.0, %v332
  %v334 = vpop.f32.mrb[0].mxu0
  %335 = vmatprep.mubr.bf16.mxu0 0
  %336 = vmatmul.mubr.bf16.gmra.mrb[0].mxu0 %v153
  %v337 = vpop.f32.mrb[0].mxu0
  %v338 = vadd.f32 0.0, %v337
  %v339 = vpop.f32.mrb[0].mxu0
  %v340 = vpop.f32.mrb[0].mxu0
  %v341 = vadd.f32 0.0, %v340
  %v342 = vpop.f32.mrb[0].mxu0
  %343 = vmatprep.mubr.bf16.mxu0 0
  %344 = vmatmul.mubr.bf16.gmra.mrb[0].mxu0 %v156
  %v345 = vpop.f32.mrb[0].mxu0
  %v346 = vadd.f32 0.0, %v345
  %v347 = vpop.f32.mrb[0].mxu0
  %v348 = vpop.f32.mrb[0].mxu0
  %v349 = vadd.f32 0.0, %v348
  %v350 = vpop.f32.mrb[0].mxu0
  %351 = vmatprep.mubr.bf16.mxu0 0
  %352 = vmatmul.mubr.bf16.gmra.mrb[0].mxu0 %v159
  %v353 = vpop.f32.mrb[0].mxu0
  %v354 = vadd.f32 0.0, %v353
  %v355 = vpop.f32.mrb[0].mxu0
  %v356 = vpop.f32.mrb[0].mxu0
  %v357 = vadd.f32 0.0, %v356
  %v358 = vpop.f32.mrb[0].mxu0
  %359 = vmatprep.mubr.bf16.mxu0 0
  %360 = vmatmul.mubr.bf16.gmra.mrb[0].mxu0 %v162
  %v361 = vpop.f32.mrb[0].mxu0
  %v362 = vadd.f32 0.0, %v361
  %v363 = vpop.f32.mrb[0].mxu0
  %v364 = vpop.f32.mrb[0].mxu0
  %v365 = vadd.f32 0.0, %v364
  %v366 = vpop.f32.mrb[0].mxu0
  %367 = vmatprep.mubr.bf16.mxu0 0
  %368 = vmatmul.mubr.bf16.gmra.mrb[0].mxu0 %v165
  %v369 = vpop.f32.mrb[0].mxu0
  %v370 = vadd.f32 0.0, %v369
  %v371 = vpop.f32.mrb[0].mxu0
  %v372 = vpop.f32.mrb[0].mxu0
  %v373 = vadd.f32 0.0, %v372
  %v374 = vpop.f32.mrb[0].mxu0
  %375 = vmatprep.mubr.bf16.mxu0 0
  %376 = vmatmul.mubr.bf16.gmra.mrb[0].mxu0 %v168
  %v377 = vpop.f32.mrb[0].mxu0
  %v378 = vadd.f32 0.0, %v377
  %v379 = vpop.f32.mrb[0].mxu0
  %v380 = vpop.f32.mrb[0].mxu0
  %v381 = vadd.f32 0.0, %v380
  %v382 = vpop.f32.mrb[0].mxu0
  %383 = vmatprep.mubr.bf16.mxu0 0
  %384 = vmatmul.mubr.bf16.gmra.mrb[0].mxu0 %v171
  %v385 = vpop.f32.mrb[0].mxu0
  %v386 = vadd.f32 0.0, %v385
  %v387 = vpop.f32.mrb[0].mxu0
  %v388 = vpop.f32.mrb[0].mxu0
  %v389 = vadd.f32 0.0, %v388
  %v390 = vpop.f32.mrb[0].mxu0
  %391 = vmatprep.mubr.bf16.mxu0 0
  %392 = vmatmul.mubr.bf16.gmra.mrb[0].mxu0 %v174
  %v393 = vpop.f32.mrb[0].mxu0
  %v394 = vadd.f32 0.0, %v393
  %v395 = vpop.f32.mrb[0].mxu0
  %v396 = vpop.f32.mrb[0].mxu0
  %v397 = vadd.f32 0.0, %v396
  %v398 = vpop.f32.mrb[0].mxu0
  %399 = vmatprep.mubr.bf16.mxu0 0
  %400 = vmatmul.mubr.bf16.gmra.mrb[0].mxu0 %v177
  %v401 = vpop.f32.mrb[0].mxu0
  %v402 = vadd.f32 0.0, %v401
  %v403 = vpop.f32.mrb[0].mxu0
  %v404 = vpop.f32.mrb[0].mxu0
  %v405 = vadd.f32 0.0, %v404
  %v406 = vpop.f32.mrb[0].mxu0
  %407 = vmatprep.mubr.bf16.mxu0 0
  %408 = vmatmul.mubr.bf16.gmra.mrb[0].mxu0 %v180
  %v409 = vpop.f32.mrb[0].mxu0
  %v410 = vadd.f32 0.0, %v409
  %v411 = vpop.f32.mrb[0].mxu0
  %v412 = vpop.f32.mrb[0].mxu0
  %v413 = vadd.f32 0.0, %v412
  %v414 = vpop.f32.mrb[0].mxu0
  %415 = vmatprep.mubr.bf16.mxu0 0
  %416 = vmatmul.mubr.bf16.gmra.mrb[0].mxu0 %v183
  %v417 = vpop.f32.mrb[0].mxu0
  %v418 = vadd.f32 0.0, %v417
  %v419 = vpop.f32.mrb[0].mxu0
  %v420 = vpop.f32.mrb[0].mxu0
  %v421 = vadd.f32 0.0, %v420
  %v422 = vpop.f32.mrb[0].mxu0
  %423 = vmatprep.mubr.bf16.mxu0 0
  %424 = vmatmul.mubr.bf16.gmra.mrb[0].mxu0 %v186
  %v425 = vpop.f32.mrb[0].mxu0
  %v426 = vadd.f32 0.0, %v425
  %v427 = vpop.f32.mrb[0].mxu0
  %v428 = vpop.f32.mrb[0].mxu0
  %v429 = vadd.f32 0.0, %v428
  %v430 = vpop.f32.mrb[0].mxu0
  %431 = vmatprep.mubr.bf16.mxu0 0
  %432 = vmatmul.mubr.bf16.gmra.mrb[0].mxu0 %v189
  %v433 = vpop.f32.mrb[0].mxu0
  %v434 = vadd.f32 0.0, %v433
  %v435 = vpop.f32.mrb[0].mxu0
  %v436 = vpop.f32.mrb[0].mxu0
  %v437 = vadd.f32 0.0, %v436
  %v438 = vpop.f32.mrb[0].mxu0
  %439 = vmatprep.mubr.bf16.mxu0 0
  %440 = vmatmul.mubr.bf16.gmra.mrb[0].mxu0 %v192
  %v441 = vpop.f32.mrb[0].mxu0
  %v442 = vadd.f32 0.0, %v441
  %v443 = vpop.f32.mrb[0].mxu0
  %v444 = vpop.f32.mrb[0].mxu0
  %v445 = vadd.f32 0.0, %v444
  %v446 = vpop.f32.mrb[0].mxu0
  %447 = vmatprep.mubr.bf16.mxu0 0
  %448 = vmatmul.mubr.bf16.gmra.mrb[0].mxu0 %v195
  %v449 = vpop.f32.mrb[0].mxu0
  %v450 = vadd.f32 0.0, %v449
  %v451 = vpop.f32.mrb[0].mxu0
  %v452 = vpop.f32.mrb[0].mxu0
  %v453 = vadd.f32 0.0, %v452
  %v454 = vpop.f32.mrb[0].mxu0
  %455 = vmatprep.mubr.bf16.mxu0 0
  %456 = vmatmul.mubr.bf16.gmra.mrb[0].mxu0 %v198
  %v457 = vpop.f32.mrb[0].mxu0
  %v458 = vadd.f32 0.0, %v457
  %v459 = vpop.f32.mrb[0].mxu0
  %v460 = vpop.f32.mrb[0].mxu0
  %v461 = vadd.f32 0.0, %v460
  %v462 = vpop.f32.mrb[0].mxu0
  %463 = vmatprep.mubr.bf16.mxu0 0
  %464 = vmatmul.mubr.bf16.gmra.mrb[0].mxu0 %v201
  %v465 = vpop.f32.mrb[0].mxu0
  %v466 = vadd.f32 0.0, %v465
  %v467 = vpop.f32.mrb[0].mxu0
  %v468 = vpop.f32.mrb[0].mxu0
  %v469 = vadd.f32 0.0, %v468
  %v470 = vpop.f32.mrb[0].mxu0
  %471 = vmatprep.mubr.bf16.mxu0 0
  %472 = vmatmul.mubr.bf16.gmra.mrb[0].mxu0 %v204
  %v473 = vpop.f32.mrb[0].mxu0
  %v474 = vadd.f32 0.0, %v473
  %v475 = vpop.f32.mrb[0].mxu0
  %v476 = vpop.f32.mrb[0].mxu0
  %v477 = vadd.f32 0.0, %v476
  %v478 = vpop.f32.mrb[0].mxu0
  %479 = vmatprep.mubr.bf16.mxu0 0
  %480 = vmatmul.mubr.bf16.gmra.mrb[0].mxu0 %v207
  %v481 = vpop.f32.mrb[0].mxu0
  %v482 = vadd.f32 0.0, %v481
  %v483 = vpop.f32.mrb[0].mxu0
  %v484 = vpop.f32.mrb[0].mxu0
  %v485 = vadd.f32 0.0, %v484
  %v486 = vpop.f32.mrb[0].mxu0
  %487 = vmatprep.mubr.bf16.mxu0 0
  %488 = vmatmul.mubr.bf16.gmra.mrb[0].mxu0 %v210
  %v489 = vpop.f32.mrb[0].mxu0
  %v490 = vadd.f32 0.0, %v489
  %v491 = vpop.f32.mrb[0].mxu0
  %v492 = vpop.f32.mrb[0].mxu0
  %v493 = vadd.f32 0.0, %v492
  %v494 = vpop.f32.mrb[0].mxu0
  %495 = vmatprep.mubr.bf16.mxu0 0
  %496 = vmatmul.mubr.bf16.gmra.mrb[0].mxu0 %v213
  %v497 = vpop.f32.mrb[0].mxu0
  %v498 = vadd.f32 0.0, %v497
  %v499 = vpop.f32.mrb[0].mxu0
  %v500 = vpop.f32.mrb[0].mxu0
  %v501 = vadd.f32 0.0, %v500
  %v502 = vpop.f32.mrb[0].mxu0
  %503 = vdwg.mxu0
  %v504 = vpack.c.bf16 %v253, %v250
  %v505 = vpack.c.bf16 %v261, %v258
  %v506 = vpack.c.bf16 %v269, %v266
  %v507 = vpack.c.bf16 %v277, %v274
  %v508 = vpack.c.bf16 %v285, %v282
  %v509 = vpack.c.bf16 %v293, %v290
  %v510 = vpack.c.bf16 %v301, %v298
  %v511 = vpack.c.bf16 %v309, %v306
  %v512 = vpack.c.bf16 %v317, %v314
  %v513 = vpack.c.bf16 %v325, %v322
  %v514 = vpack.c.bf16 %v333, %v330
  %v515 = vpack.c.bf16 %v341, %v338
  %v516 = vpack.c.bf16 %v349, %v346
  %v517 = vpack.c.bf16 %v357, %v354
  %v518 = vpack.c.bf16 %v365, %v362
  %v519 = vpack.c.bf16 %v373, %v370
  %v520 = vpack.c.bf16 %v381, %v378
  %v521 = vpack.c.bf16 %v389, %v386
  %v522 = vpack.c.bf16 %v397, %v394
  %v523 = vpack.c.bf16 %v405, %v402
  %v524 = vpack.c.bf16 %v413, %v410
  %v525 = vpack.c.bf16 %v421, %v418
  %v526 = vpack.c.bf16 %v429, %v426
  %v527 = vpack.c.bf16 %v437, %v434
  %v528 = vpack.c.bf16 %v445, %v442
  %v529 = vpack.c.bf16 %v453, %v450
  %v530 = vpack.c.bf16 %v461, %v458
  %v531 = vpack.c.bf16 %v469, %v466
  %v532 = vpack.c.bf16 %v477, %v474
  %v533 = vpack.c.bf16 %v485, %v482
  %v534 = vpack.c.bf16 %v493, %v490
  %v535 = vpack.c.bf16 %v501, %v498
  %v568 = vunpack.c.l.b16 %v504
  %v569 = vunpack.c.h.b16 %v504
  %v570 = vunpack.c.l.b16 %v505
  %v571 = vunpack.c.h.b16 %v505
  %v572 = vunpack.c.l.b16 %v506
  %v573 = vunpack.c.h.b16 %v506
  %v574 = vunpack.c.l.b16 %v507
  %v575 = vunpack.c.h.b16 %v507
  %v576 = vunpack.c.l.b16 %v508
  %v577 = vunpack.c.h.b16 %v508
  %v578 = vunpack.c.l.b16 %v509
  %v579 = vunpack.c.h.b16 %v509
  %v580 = vunpack.c.l.b16 %v510
  %v581 = vunpack.c.h.b16 %v510
  %v582 = vunpack.c.l.b16 %v511
  %v583 = vunpack.c.h.b16 %v511
  %v584 = vunpack.c.l.b16 %v512
  %v585 = vunpack.c.h.b16 %v512
  %v586 = vunpack.c.l.b16 %v513
  %v587 = vunpack.c.h.b16 %v513
  %v588 = vunpack.c.l.b16 %v514
  %v589 = vunpack.c.h.b16 %v514
  %v590 = vunpack.c.l.b16 %v515
  %v591 = vunpack.c.h.b16 %v515
  %v592 = vunpack.c.l.b16 %v516
  %v593 = vunpack.c.h.b16 %v516
  %v594 = vunpack.c.l.b16 %v517
  %v595 = vunpack.c.h.b16 %v517
  %v596 = vunpack.c.l.b16 %v518
  %v597 = vunpack.c.h.b16 %v518
  %v598 = vunpack.c.l.b16 %v519
  %v599 = vunpack.c.h.b16 %v519
  %v600 = vunpack.c.l.b16 %v520
  %v601 = vunpack.c.h.b16 %v520
  %v602 = vunpack.c.l.b16 %v521
  %v603 = vunpack.c.h.b16 %v521
  %v604 = vunpack.c.l.b16 %v522
  %v605 = vunpack.c.h.b16 %v522
  %v606 = vunpack.c.l.b16 %v523
  %v607 = vunpack.c.h.b16 %v523
  %v608 = vunpack.c.l.b16 %v524
  %v609 = vunpack.c.h.b16 %v524
  %v610 = vunpack.c.l.b16 %v525
  %v611 = vunpack.c.h.b16 %v525
  %v612 = vunpack.c.l.b16 %v526
  %v613 = vunpack.c.h.b16 %v526
  %v614 = vunpack.c.l.b16 %v527
  %v615 = vunpack.c.h.b16 %v527
  %v616 = vunpack.c.l.b16 %v528
  %v617 = vunpack.c.h.b16 %v528
  %v618 = vunpack.c.l.b16 %v529
  %v619 = vunpack.c.h.b16 %v529
  %v620 = vunpack.c.l.b16 %v530
  %v621 = vunpack.c.h.b16 %v530
  %v622 = vunpack.c.l.b16 %v531
  %v623 = vunpack.c.h.b16 %v531
  %v624 = vunpack.c.l.b16 %v532
  %v625 = vunpack.c.h.b16 %v532
  %v626 = vunpack.c.l.b16 %v533
  %v627 = vunpack.c.h.b16 %v533
  %v628 = vunpack.c.l.b16 %v534
  %v629 = vunpack.c.h.b16 %v534
  %v630 = vunpack.c.l.b16 %v535
  %v631 = vunpack.c.h.b16 %v535
  %v632 = vpack.c.b16 %v568, %v568
  %v633 = vpack.c.b16 %v569, %v569
  %v634 = vpack.c.b16 %v570, %v570
  %v635 = vpack.c.b16 %v571, %v571
  %v636 = vpack.c.b16 %v572, %v572
  %v637 = vpack.c.b16 %v573, %v573
  %v638 = vpack.c.b16 %v574, %v574
  %v639 = vpack.c.b16 %v575, %v575
  %v640 = vpack.c.b16 %v576, %v576
  %v641 = vpack.c.b16 %v577, %v577
  %v642 = vpack.c.b16 %v578, %v578
  %v643 = vpack.c.b16 %v579, %v579
  %v644 = vpack.c.b16 %v580, %v580
  %v645 = vpack.c.b16 %v581, %v581
  %v646 = vpack.c.b16 %v582, %v582
  %v647 = vpack.c.b16 %v583, %v583
  %v648 = vpack.c.b16 %v584, %v584
  %v649 = vpack.c.b16 %v585, %v585
  %v650 = vpack.c.b16 %v586, %v586
  %v651 = vpack.c.b16 %v587, %v587
  %v652 = vpack.c.b16 %v588, %v588
  %v653 = vpack.c.b16 %v589, %v589
  %v654 = vpack.c.b16 %v590, %v590
  %v655 = vpack.c.b16 %v591, %v591
  %v656 = vpack.c.b16 %v592, %v592
  %v657 = vpack.c.b16 %v593, %v593
  %v658 = vpack.c.b16 %v594, %v594
  %v659 = vpack.c.b16 %v595, %v595
  %v660 = vpack.c.b16 %v596, %v596
  %v661 = vpack.c.b16 %v597, %v597
  %v662 = vpack.c.b16 %v598, %v598
  %v663 = vpack.c.b16 %v599, %v599
  %v664 = vpack.c.b16 %v600, %v600
  %v665 = vpack.c.b16 %v601, %v601
  %v666 = vpack.c.b16 %v602, %v602
  %v667 = vpack.c.b16 %v603, %v603
  %v668 = vpack.c.b16 %v604, %v604
  %v669 = vpack.c.b16 %v605, %v605
  %v670 = vpack.c.b16 %v606, %v606
  %v671 = vpack.c.b16 %v607, %v607
  %v672 = vpack.c.b16 %v608, %v608
  %v673 = vpack.c.b16 %v609, %v609
  %v674 = vpack.c.b16 %v610, %v610
  %v675 = vpack.c.b16 %v611, %v611
  %v676 = vpack.c.b16 %v612, %v612
  %v677 = vpack.c.b16 %v613, %v613
  %v678 = vpack.c.b16 %v614, %v614
  %v679 = vpack.c.b16 %v615, %v615
  %v680 = vpack.c.b16 %v616, %v616
  %v681 = vpack.c.b16 %v617, %v617
  %v682 = vpack.c.b16 %v618, %v618
  %v683 = vpack.c.b16 %v619, %v619
  %v684 = vpack.c.b16 %v620, %v620
  %v685 = vpack.c.b16 %v621, %v621
  %v686 = vpack.c.b16 %v622, %v622
  %v687 = vpack.c.b16 %v623, %v623
  %v688 = vpack.c.b16 %v624, %v624
  %v689 = vpack.c.b16 %v625, %v625
  %v690 = vpack.c.b16 %v626, %v626
  %v691 = vpack.c.b16 %v627, %v627
  %v692 = vpack.c.b16 %v628, %v628
  %v693 = vpack.c.b16 %v629, %v629
  %v694 = vpack.c.b16 %v630, %v630
  %v695 = vpack.c.b16 %v631, %v631
  %760 = vst [vmem:[%s2] sm:$0xf] %v632
  %761 = vst [vmem:[%s2 + $0x4] sm:$0xf] %v633
  %762 = vst [vmem:[%s2 + $0x8] sm:$0xf] %v634
  %763 = vst [vmem:[%s2 + $0xc] sm:$0xf] %v635
  %764 = vst [vmem:[%s2 + $0x10] sm:$0xf] %v636
  %765 = vst [vmem:[%s2 + $0x14] sm:$0xf] %v637
  %766 = vst [vmem:[%s2 + $0x18] sm:$0xf] %v638
  %767 = vst [vmem:[%s2 + $0x1c] sm:$0xf] %v639
  %768 = vst [vmem:[%s2 + $0x20] sm:$0xf] %v640
  %769 = vst [vmem:[%s2 + $0x24] sm:$0xf] %v641
  %770 = vst [vmem:[%s2 + $0x28] sm:$0xf] %v642
  %771 = vst [vmem:[%s2 + $0x2c] sm:$0xf] %v643
  %772 = vst [vmem:[%s2 + $0x30] sm:$0xf] %v644
  %773 = vst [vmem:[%s2 + $0x34] sm:$0xf] %v645
  %774 = vst [vmem:[%s2 + $0x38] sm:$0xf] %v646
  %775 = vst [vmem:[%s2 + $0x3c] sm:$0xf] %v647
  %776 = vst [vmem:[%s2 + $0x40] sm:$0xf] %v648
  %777 = vst [vmem:[%s2 + $0x44] sm:$0xf] %v649
  %778 = vst [vmem:[%s2 + $0x48] sm:$0xf] %v650
  %779 = vst [vmem:[%s2 + $0x4c] sm:$0xf] %v651
  %780 = vst [vmem:[%s2 + $0x50] sm:$0xf] %v652
  %781 = vst [vmem:[%s2 + $0x54] sm:$0xf] %v653
  %782 = vst [vmem:[%s2 + $0x58] sm:$0xf] %v654
  %783 = vst [vmem:[%s2 + $0x5c] sm:$0xf] %v655
  %784 = vst [vmem:[%s2 + $0x60] sm:$0xf] %v656
  %785 = vst [vmem:[%s2 + $0x64] sm:$0xf] %v657
  %786 = vst [vmem:[%s2 + $0x68] sm:$0xf] %v658
  %787 = vst [vmem:[%s2 + $0x6c] sm:$0xf] %v659
  %788 = vst [vmem:[%s2 + $0x70] sm:$0xf] %v660
  %789 = vst [vmem:[%s2 + $0x74] sm:$0xf] %v661
  %790 = vst [vmem:[%s2 + $0x78] sm:$0xf] %v662
  %791 = vst [vmem:[%s2 + $0x7c] sm:$0xf] %v663
  %792 = vst [vmem:[%s2 + $0x80] sm:$0xf] %v664
  %793 = vst [vmem:[%s2 + $0x84] sm:$0xf] %v665
  %794 = vst [vmem:[%s2 + $0x88] sm:$0xf] %v666
  %795 = vst [vmem:[%s2 + $0x8c] sm:$0xf] %v667
  %796 = vst [vmem:[%s2 + $0x90] sm:$0xf] %v668
  %797 = vst [vmem:[%s2 + $0x94] sm:$0xf] %v669
  %798 = vst [vmem:[%s2 + $0x98] sm:$0xf] %v670
  %799 = vst [vmem:[%s2 + $0x9c] sm:$0xf] %v671
  %800 = vst [vmem:[%s2 + $0xa0] sm:$0xf] %v672
  %801 = vst [vmem:[%s2 + $0xa4] sm:$0xf] %v673
  %802 = vst [vmem:[%s2 + $0xa8] sm:$0xf] %v674
  %803 = vst [vmem:[%s2 + $0xac] sm:$0xf] %v675
  %804 = vst [vmem:[%s2 + $0xb0] sm:$0xf] %v676
  %805 = vst [vmem:[%s2 + $0xb4] sm:$0xf] %v677
  %806 = vst [vmem:[%s2 + $0xb8] sm:$0xf] %v678
  %807 = vst [vmem:[%s2 + $0xbc] sm:$0xf] %v679
  %808 = vst [vmem:[%s2 + $0xc0] sm:$0xf] %v680
  %809 = vst [vmem:[%s2 + $0xc4] sm:$0xf] %v681
  %810 = vst [vmem:[%s2 + $0xc8] sm:$0xf] %v682
  %811 = vst [vmem:[%s2 + $0xcc] sm:$0xf] %v683
  %812 = vst [vmem:[%s2 + $0xd0] sm:$0xf] %v684
  %813 = vst [vmem:[%s2 + $0xd4] sm:$0xf] %v685
  %814 = vst [vmem:[%s2 + $0xd8] sm:$0xf] %v686
  %815 = vst [vmem:[%s2 + $0xdc] sm:$0xf] %v687
  %816 = vst [vmem:[%s2 + $0xe0] sm:$0xf] %v688
  %817 = vst [vmem:[%s2 + $0xe4] sm:$0xf] %v689
  %818 = vst [vmem:[%s2 + $0xe8] sm:$0xf] %v690
  %819 = vst [vmem:[%s2 + $0xec] sm:$0xf] %v691
  %820 = vst [vmem:[%s2 + $0xf0] sm:$0xf] %v692
  %821 = vst [vmem:[%s2 + $0xf4] sm:$0xf] %v693
  %822 = vst [vmem:[%s2 + $0xf8] sm:$0xf] %v694
  %823 = vst [vmem:[%s2 + $0xfc] sm:$0xf] %v695
  %v824 = vadd.f32 %v250, %v253
  %v825 = vadd.f32 %v824, %v258
  %v826 = vadd.f32 %v825, %v261
  %v827 = vadd.f32 %v826, %v266
  %v828 = vadd.f32 %v827, %v269
  %v829 = vadd.f32 %v828, %v274
  %v830 = vadd.f32 %v829, %v277
  %v831 = vadd.f32 %v830, %v282
  %v832 = vadd.f32 %v831, %v285
  %v833 = vadd.f32 %v832, %v290
  %v834 = vadd.f32 %v833, %v293
  %v835 = vadd.f32 %v834, %v298
  %v836 = vadd.f32 %v835, %v301
  %v837 = vadd.f32 %v836, %v306
  %v838 = vadd.f32 %v837, %v309
  %v839 = vadd.f32 %v838, %v314
  %v840 = vadd.f32 %v839, %v317
  %v841 = vadd.f32 %v840, %v322
  %v842 = vadd.f32 %v841, %v325
  %v843 = vadd.f32 %v842, %v330
  %v844 = vadd.f32 %v843, %v333
  %v845 = vadd.f32 %v844, %v338
  %v846 = vadd.f32 %v845, %v341
  %v847 = vadd.f32 %v846, %v346
  %v848 = vadd.f32 %v847, %v349
  %v849 = vadd.f32 %v848, %v354
  %v850 = vadd.f32 %v849, %v357
  %v851 = vadd.f32 %v850, %v362
  %v852 = vadd.f32 %v851, %v365
  %v853 = vadd.f32 %v852, %v370
  %v854 = vadd.f32 %v853, %v373
  %v855 = vadd.f32 %v854, %v378
  %v856 = vadd.f32 %v855, %v381
  %v857 = vadd.f32 %v856, %v386
  %v858 = vadd.f32 %v857, %v389
  %v859 = vadd.f32 %v858, %v394
  %v860 = vadd.f32 %v859, %v397
  %v861 = vadd.f32 %v860, %v402
  %v862 = vadd.f32 %v861, %v405
  %v863 = vadd.f32 %v862, %v410
  %v864 = vadd.f32 %v863, %v413
  %v865 = vadd.f32 %v864, %v418
  %v866 = vadd.f32 %v865, %v421
  %v867 = vadd.f32 %v866, %v426
  %v868 = vadd.f32 %v867, %v429
  %v869 = vadd.f32 %v868, %v434
  %v870 = vadd.f32 %v869, %v437
  %v871 = vadd.f32 %v870, %v442
  %v872 = vadd.f32 %v871, %v445
  %v873 = vadd.f32 %v872, %v450
  %v874 = vadd.f32 %v873, %v453
  %v875 = vadd.f32 %v874, %v458
  %v876 = vadd.f32 %v875, %v461
  %v877 = vadd.f32 %v876, %v466
  %v878 = vadd.f32 %v877, %v469
  %v879 = vadd.f32 %v878, %v474
  %v880 = vadd.f32 %v879, %v477
  %v881 = vadd.f32 %v880, %v482
  %v882 = vadd.f32 %v881, %v485
  %v883 = vadd.f32 %v882, %v490
  %v884 = vadd.f32 %v883, %v493
  %v885 = vadd.f32 %v884, %v498
  %v886 = vadd.f32 %v885, %v501
  %v887 = vrot.slane %v886, 4
  %v888 = vadd.f32 %v886, %v887
  %v889 = vrot.slane %v888, 2
  %v890 = vadd.f32 %v888, %v889
  %v891 = vrot.slane %v890, 1
  %v892 = vadd.f32 %v890, %v891
  %v893 = vmul.f32 %v250, %v250
  %v894 = vmul.f32 %v253, %v253
  %v895 = vmul.f32 %v258, %v258
  %v896 = vmul.f32 %v261, %v261
  %v897 = vmul.f32 %v266, %v266
  %v898 = vmul.f32 %v269, %v269
  %v899 = vmul.f32 %v274, %v274
  %v900 = vmul.f32 %v277, %v277
  %v901 = vmul.f32 %v282, %v282
  %v902 = vmul.f32 %v285, %v285
  %v903 = vmul.f32 %v290, %v290
  %v904 = vmul.f32 %v293, %v293
  %v905 = vmul.f32 %v298, %v298
  %v906 = vmul.f32 %v301, %v301
  %v907 = vmul.f32 %v306, %v306
  %v908 = vmul.f32 %v309, %v309
  %v909 = vmul.f32 %v314, %v314
  %v910 = vmul.f32 %v317, %v317
  %v911 = vmul.f32 %v322, %v322
  %v912 = vmul.f32 %v325, %v325
  %v913 = vmul.f32 %v330, %v330
  %v914 = vmul.f32 %v333, %v333
  %v915 = vmul.f32 %v338, %v338
  %v916 = vmul.f32 %v341, %v341
  %v917 = vmul.f32 %v346, %v346
  %v918 = vmul.f32 %v349, %v349
  %v919 = vmul.f32 %v354, %v354
  %v920 = vmul.f32 %v357, %v357
  %v921 = vmul.f32 %v362, %v362
  %v922 = vmul.f32 %v365, %v365
  %v923 = vmul.f32 %v370, %v370
  %v924 = vmul.f32 %v373, %v373
  %v925 = vmul.f32 %v378, %v378
  %v926 = vmul.f32 %v381, %v381
  %v927 = vmul.f32 %v386, %v386
  %v928 = vmul.f32 %v389, %v389
  %v929 = vmul.f32 %v394, %v394
  %v930 = vmul.f32 %v397, %v397
  %v931 = vmul.f32 %v402, %v402
  %v932 = vmul.f32 %v405, %v405
  %v933 = vmul.f32 %v410, %v410
  %v934 = vmul.f32 %v413, %v413
  %v935 = vmul.f32 %v418, %v418
  %v936 = vmul.f32 %v421, %v421
  %v937 = vmul.f32 %v426, %v426
  %v938 = vmul.f32 %v429, %v429
  %v939 = vmul.f32 %v434, %v434
  %v940 = vmul.f32 %v437, %v437
  %v941 = vmul.f32 %v442, %v442
  %v942 = vmul.f32 %v445, %v445
  %v943 = vmul.f32 %v450, %v450
  %v944 = vmul.f32 %v453, %v453
  %v945 = vmul.f32 %v458, %v458
  %v946 = vmul.f32 %v461, %v461
  %v947 = vmul.f32 %v466, %v466
  %v948 = vmul.f32 %v469, %v469
  %v949 = vmul.f32 %v474, %v474
  %v950 = vmul.f32 %v477, %v477
  %v951 = vmul.f32 %v482, %v482
  %v952 = vmul.f32 %v485, %v485
  %v953 = vmul.f32 %v490, %v490
  %v954 = vmul.f32 %v493, %v493
  %v955 = vmul.f32 %v498, %v498
  %v956 = vmul.f32 %v501, %v501
  %v957 = vadd.f32 %v893, %v894
  %v958 = vadd.f32 %v957, %v895
  %v959 = vadd.f32 %v958, %v896
  %v960 = vadd.f32 %v959, %v897
  %v961 = vadd.f32 %v960, %v898
  %v962 = vadd.f32 %v961, %v899
  %v963 = vadd.f32 %v962, %v900
  %v964 = vadd.f32 %v963, %v901
  %v965 = vadd.f32 %v964, %v902
  %v966 = vadd.f32 %v965, %v903
  %v967 = vadd.f32 %v966, %v904
  %v968 = vadd.f32 %v967, %v905
  %v969 = vadd.f32 %v968, %v906
  %v970 = vadd.f32 %v969, %v907
  %v971 = vadd.f32 %v970, %v908
  %v972 = vadd.f32 %v971, %v909
  %v973 = vadd.f32 %v972, %v910
  %v974 = vadd.f32 %v973, %v911
  %v975 = vadd.f32 %v974, %v912
  %v976 = vadd.f32 %v975, %v913
  %v977 = vadd.f32 %v976, %v914
  %v978 = vadd.f32 %v977, %v915
  %v979 = vadd.f32 %v978, %v916
  %v980 = vadd.f32 %v979, %v917
  %v981 = vadd.f32 %v980, %v918
  %v982 = vadd.f32 %v981, %v919
  %v983 = vadd.f32 %v982, %v920
  %v984 = vadd.f32 %v983, %v921
  %v985 = vadd.f32 %v984, %v922
  %v986 = vadd.f32 %v985, %v923
  %v987 = vadd.f32 %v986, %v924
  %v988 = vadd.f32 %v987, %v925
  %v989 = vadd.f32 %v988, %v926
  %v990 = vadd.f32 %v989, %v927
  %v991 = vadd.f32 %v990, %v928
  %v992 = vadd.f32 %v991, %v929
  %v993 = vadd.f32 %v992, %v930
  %v994 = vadd.f32 %v993, %v931
  %v995 = vadd.f32 %v994, %v932
  %v996 = vadd.f32 %v995, %v933
  %v997 = vadd.f32 %v996, %v934
  %v998 = vadd.f32 %v997, %v935
  %v999 = vadd.f32 %v998, %v936
  %v1000 = vadd.f32 %v999, %v937
  %v1001 = vadd.f32 %v1000, %v938
  %v1002 = vadd.f32 %v1001, %v939
  %v1003 = vadd.f32 %v1002, %v940
  %v1004 = vadd.f32 %v1003, %v941
  %v1005 = vadd.f32 %v1004, %v942
  %v1006 = vadd.f32 %v1005, %v943
  %v1007 = vadd.f32 %v1006, %v944
  %v1008 = vadd.f32 %v1007, %v945
  %v1009 = vadd.f32 %v1008, %v946
  %v1010 = vadd.f32 %v1009, %v947
  %v1011 = vadd.f32 %v1010, %v948
  %v1012 = vadd.f32 %v1011, %v949
  %v1013 = vadd.f32 %v1012, %v950
  %v1014 = vadd.f32 %v1013, %v951
  %v1015 = vadd.f32 %v1014, %v952
  %v1016 = vadd.f32 %v1015, %v953
  %v1017 = vadd.f32 %v1016, %v954
  %v1018 = vadd.f32 %v1017, %v955
  %v1019 = vadd.f32 %v1018, %v956
  %v1020 = vrot.slane %v1019, 4
  %v1021 = vadd.f32 %v1019, %v1020
  %v1022 = vrot.slane %v1021, 2
  %v1023 = vadd.f32 %v1021, %v1022
  %v1024 = vrot.slane %v1023, 1
  %v1025 = vadd.f32 %v1023, %v1024
  %vm1026 = vcmask 1040384
  %v1027 = vsel %vm1026, %v892, %v1025
  %1028 = vst [vmem:[%s3] sm:$0x3] %v1027
  // Predicated region
  $region10: #{bottleneck_forward.4} parent=0 // pred_check
    _
  $region11: #{bottleneck_forward.4} parent=0 // pred_check_branch
    %1030 = sbr.rel (0) target = $region13
  $region12: #{bottleneck_forward.4} parent=0 // pred_region
    _
  $region13: #{bottleneck_forward.4} parent=0 // pred_fallthru
    _
  // Predicated region
  $region14: #{bottleneck_forward.4} parent=0 // pred_check
    _
  $region15: #{bottleneck_forward.4} parent=0 // pred_check_branch
    %1032 = sbr.rel (0) target = $region17
  $region16: #{bottleneck_forward.4} parent=0 // pred_region
    _
  $region17: #{bottleneck_forward.4} parent=0 // pred_fallthru
    _
  // Predicated region
  $region18: #{bottleneck_forward.4} parent=0 // pred_check
    _
  $region19: #{bottleneck_forward.4} parent=0 // pred_check_branch
    %1034 = sbr.rel (0) target = $region21
  $region20: #{bottleneck_forward.4} parent=0 // pred_region
    _
  $region21: #{bottleneck_forward.4} parent=0 // pred_fallthru
    _
  // Predicated region
  $region22: #{bottleneck_forward.4} parent=0 // pred_check
    _
  $region23: #{bottleneck_forward.4} parent=0 // pred_check_branch
    %1036 = sbr.rel (0) target = $region25
  $region24: #{bottleneck_forward.4} parent=0 // pred_region
    _
  $region25: #{bottleneck_forward.4} parent=0 // pred_fallthru
    _

// kernel: bottleneck_forward.6
$region0: #{bottleneck_forward.6}
  #allocation0 [shape = 'u32[]', space=smem, size = 0x4, offset = 0x4, fixed_abs, tag = 'smem constant byte address 0x4 - core index']
  #allocation1 [shape = 'u32[144,128]{1,0:T(1,128)}', space=vmem, size = 0x12000, scoped, tag = 'internal scratch']
  %s0 = inlined_call_operand.vmem [shape: bf16[512,128], index: 0, kind: input, shape index: {}]
  %s1 = inlined_call_operand.vmem [shape: f32[2,128], index: 1, kind: input, shape index: {}]
  %s2 = inlined_call_operand.vmem [shape: bf16[128,128], index: 2, kind: input, shape index: {}]
  %s3 = inlined_call_operand.vmem [shape: bf16[512,128], index: 3, kind: output, shape index: {0}]
  %s4 = inlined_call_operand.vmem [shape: f32[1,2,128], index: 4, kind: output, shape index: {1}]
  %5 = xla_tuple %s3, %s4
  %s6 = sld [smem:[#allocation0]]
  $region30: #{bottleneck_forward.6} parent=0
    _
  %s8 = ssub.s32 1, %s6
  %s9 = scalar_select 0, %s8, %s6
  // Predicated region
  $region2: #{bottleneck_forward.6} parent=0 // pred_check
    _
  $region3: #{bottleneck_forward.6} parent=0 // pred_check_branch
    %11 = sbr.rel (0) target = $region5
  $region4: #{bottleneck_forward.6} parent=0 // pred_region
    _
  $region5: #{bottleneck_forward.6} parent=0 // pred_fallthru
    _
  // Predicated region
  $region6: #{bottleneck_forward.6} parent=0 // pred_check
    _
  $region7: #{bottleneck_forward.6} parent=0 // pred_check_branch
    %13 = sbr.rel (0) target = $region9
  $region8: #{bottleneck_forward.6} parent=0 // pred_region
    _
  $region9: #{bottleneck_forward.6} parent=0 // pred_fallthru
    _
  // Predicated region
  $region10: #{bottleneck_forward.6} parent=0 // pred_check
    _
  $region11: #{bottleneck_forward.6} parent=0 // pred_check_branch
    %15 = sbr.rel (0) target = $region13
  $region12: #{bottleneck_forward.6} parent=0 // pred_region
    _
  $region13: #{bottleneck_forward.6} parent=0 // pred_fallthru
    _
  %v17 = vld [vmem:[%s0] sm:$0xf]
  %v18 = vld [vmem:[%s0 + $0x4] sm:$0xf]
  %v19 = vld [vmem:[%s0 + $0x8] sm:$0xf]
  %v20 = vld [vmem:[%s0 + $0xc] sm:$0xf]
  %v21 = vld [vmem:[%s0 + $0x10] sm:$0xf]
  %v22 = vld [vmem:[%s0 + $0x14] sm:$0xf]
  %v23 = vld [vmem:[%s0 + $0x18] sm:$0xf]
  %v24 = vld [vmem:[%s0 + $0x1c] sm:$0xf]
  %v25 = vld [vmem:[%s0 + $0x20] sm:$0xf]
  %v26 = vld [vmem:[%s0 + $0x24] sm:$0xf]
  %v27 = vld [vmem:[%s0 + $0x28] sm:$0xf]
  %v28 = vld [vmem:[%s0 + $0x2c] sm:$0xf]
  %v29 = vld [vmem:[%s0 + $0x30] sm:$0xf]
  %v30 = vld [vmem:[%s0 + $0x34] sm:$0xf]
  %v31 = vld [vmem:[%s0 + $0x38] sm:$0xf]
  %v32 = vld [vmem:[%s0 + $0x3c] sm:$0xf]
  %v33 = vld [vmem:[%s0 + $0x40] sm:$0xf]
  %v34 = vld [vmem:[%s0 + $0x44] sm:$0xf]
  %v35 = vld [vmem:[%s0 + $0x48] sm:$0xf]
  %v36 = vld [vmem:[%s0 + $0x4c] sm:$0xf]
  %v37 = vld [vmem:[%s0 + $0x50] sm:$0xf]
  %v38 = vld [vmem:[%s0 + $0x54] sm:$0xf]
  %v39 = vld [vmem:[%s0 + $0x58] sm:$0xf]
  %v40 = vld [vmem:[%s0 + $0x5c] sm:$0xf]
  %v41 = vld [vmem:[%s0 + $0x60] sm:$0xf]
  %v42 = vld [vmem:[%s0 + $0x64] sm:$0xf]
  %v43 = vld [vmem:[%s0 + $0x68] sm:$0xf]
  %v44 = vld [vmem:[%s0 + $0x6c] sm:$0xf]
  %v45 = vld [vmem:[%s0 + $0x70] sm:$0xf]
  %v46 = vld [vmem:[%s0 + $0x74] sm:$0xf]
  %v47 = vld [vmem:[%s0 + $0x78] sm:$0xf]
  %v48 = vld [vmem:[%s0 + $0x7c] sm:$0xf]
  %v49 = vld [vmem:[%s0 + $0x80] sm:$0xf]
  %v50 = vld [vmem:[%s0 + $0x84] sm:$0xf]
  %v51 = vld [vmem:[%s0 + $0x88] sm:$0xf]
  %v52 = vld [vmem:[%s0 + $0x8c] sm:$0xf]
  %v53 = vld [vmem:[%s0 + $0x90] sm:$0xf]
  %v54 = vld [vmem:[%s0 + $0x94] sm:$0xf]
  %v55 = vld [vmem:[%s0 + $0x98] sm:$0xf]
  %v56 = vld [vmem:[%s0 + $0x9c] sm:$0xf]
  %v57 = vld [vmem:[%s0 + $0xa0] sm:$0xf]
  %v58 = vld [vmem:[%s0 + $0xa4] sm:$0xf]
  %v59 = vld [vmem:[%s0 + $0xa8] sm:$0xf]
  %v60 = vld [vmem:[%s0 + $0xac] sm:$0xf]
  %v61 = vld [vmem:[%s0 + $0xb0] sm:$0xf]
  %v62 = vld [vmem:[%s0 + $0xb4] sm:$0xf]
  %v63 = vld [vmem:[%s0 + $0xb8] sm:$0xf]
  %v64 = vld [vmem:[%s0 + $0xbc] sm:$0xf]
  %v65 = vld [vmem:[%s0 + $0xc0] sm:$0xf]
  %v66 = vld [vmem:[%s0 + $0xc4] sm:$0xf]
  %v67 = vld [vmem:[%s0 + $0xc8] sm:$0xf]
  %v68 = vld [vmem:[%s0 + $0xcc] sm:$0xf]
  %v69 = vld [vmem:[%s0 + $0xd0] sm:$0xf]
  %v70 = vld [vmem:[%s0 + $0xd4] sm:$0xf]
  %v71 = vld [vmem:[%s0 + $0xd8] sm:$0xf]
  %v72 = vld [vmem:[%s0 + $0xdc] sm:$0xf]
  %v73 = vld [vmem:[%s0 + $0xe0] sm:$0xf]
  %v74 = vld [vmem:[%s0 + $0xe4] sm:$0xf]
  %v75 = vld [vmem:[%s0 + $0xe8] sm:$0xf]
  %v76 = vld [vmem:[%s0 + $0xec] sm:$0xf]
  %v77 = vld [vmem:[%s0 + $0xf0] sm:$0xf]
  %v78 = vld [vmem:[%s0 + $0xf4] sm:$0xf]
  %v79 = vld [vmem:[%s0 + $0xf8] sm:$0xf]
  %v80 = vld [vmem:[%s0 + $0xfc] sm:$0xf]
  %v81 = vunpack.c.l.bf16 %v17
  %v82 = vunpack.c.l.bf16 %v18
  %v83 = vunpack.c.l.bf16 %v19
  %v84 = vunpack.c.l.bf16 %v20
  %v85 = vunpack.c.l.bf16 %v21
  %v86 = vunpack.c.l.bf16 %v22
  %v87 = vunpack.c.l.bf16 %v23
  %v88 = vunpack.c.l.bf16 %v24
  %v89 = vunpack.c.l.bf16 %v25
  %v90 = vunpack.c.l.bf16 %v26
  %v91 = vunpack.c.l.bf16 %v27
  %v92 = vunpack.c.l.bf16 %v28
  %v93 = vunpack.c.l.bf16 %v29
  %v94 = vunpack.c.l.bf16 %v30
  %v95 = vunpack.c.l.bf16 %v31
  %v96 = vunpack.c.l.bf16 %v32
  %v97 = vunpack.c.l.bf16 %v33
  %v98 = vunpack.c.l.bf16 %v34
  %v99 = vunpack.c.l.bf16 %v35
  %v100 = vunpack.c.l.bf16 %v36
  %v101 = vunpack.c.l.bf16 %v37
  %v102 = vunpack.c.l.bf16 %v38
  %v103 = vunpack.c.l.bf16 %v39
  %v104 = vunpack.c.l.bf16 %v40
  %v105 = vunpack.c.l.bf16 %v41
  %v106 = vunpack.c.l.bf16 %v42
  %v107 = vunpack.c.l.bf16 %v43
  %v108 = vunpack.c.l.bf16 %v44
  %v109 = vunpack.c.l.bf16 %v45
  %v110 = vunpack.c.l.bf16 %v46
  %v111 = vunpack.c.l.bf16 %v47
  %v112 = vunpack.c.l.bf16 %v48
  %v113 = vunpack.c.l.bf16 %v49
  %v114 = vunpack.c.l.bf16 %v50
  %v115 = vunpack.c.l.bf16 %v51
  %v116 = vunpack.c.l.bf16 %v52
  %v117 = vunpack.c.l.bf16 %v53
  %v118 = vunpack.c.l.bf16 %v54
  %v119 = vunpack.c.l.bf16 %v55
  %v120 = vunpack.c.l.bf16 %v56
  %v121 = vunpack.c.l.bf16 %v57
  %v122 = vunpack.c.l.bf16 %v58
  %v123 = vunpack.c.l.bf16 %v59
  %v124 = vunpack.c.l.bf16 %v60
  %v125 = vunpack.c.l.bf16 %v61
  %v126 = vunpack.c.l.bf16 %v62
  %v127 = vunpack.c.l.bf16 %v63
  %v128 = vunpack.c.l.bf16 %v64
  %v129 = vunpack.c.l.bf16 %v65
  %v130 = vunpack.c.l.bf16 %v66
  %v131 = vunpack.c.l.bf16 %v67
  %v132 = vunpack.c.l.bf16 %v68
  %v133 = vunpack.c.l.bf16 %v69
  %v134 = vunpack.c.l.bf16 %v70
  %v135 = vunpack.c.l.bf16 %v71
  %v136 = vunpack.c.l.bf16 %v72
  %v137 = vunpack.c.l.bf16 %v73
  %v138 = vunpack.c.l.bf16 %v74
  %v139 = vunpack.c.l.bf16 %v75
  %v140 = vunpack.c.l.bf16 %v76
  %v141 = vunpack.c.l.bf16 %v77
  %v142 = vunpack.c.l.bf16 %v78
  %v143 = vunpack.c.l.bf16 %v79
  %v144 = vunpack.c.l.bf16 %v80
  %v145 = vld [vmem:[%s1] sm:$0x1]
  %v146 = vlaneseq
  %v147 = vshrl.u32 %v146, 7
  %v148 = vsub.s32 0, %v147
  %v149 = vrot.slane %v145, %v148
  %v150 = vmul.f32 %v81, %v149
  %v151 = vmul.f32 %v82, %v149
  %v152 = vmul.f32 %v83, %v149
  %v153 = vmul.f32 %v84, %v149
  %v154 = vmul.f32 %v85, %v149
  %v155 = vmul.f32 %v86, %v149
  %v156 = vmul.f32 %v87, %v149
  %v157 = vmul.f32 %v88, %v149
  %v158 = vmul.f32 %v89, %v149
  %v159 = vmul.f32 %v90, %v149
  %v160 = vmul.f32 %v91, %v149
  %v161 = vmul.f32 %v92, %v149
  %v162 = vmul.f32 %v93, %v149
  %v163 = vmul.f32 %v94, %v149
  %v164 = vmul.f32 %v95, %v149
  %v165 = vmul.f32 %v96, %v149
  %v166 = vmul.f32 %v97, %v149
  %v167 = vmul.f32 %v98, %v149
  %v168 = vmul.f32 %v99, %v149
  %v169 = vmul.f32 %v100, %v149
  %v170 = vmul.f32 %v101, %v149
  %v171 = vmul.f32 %v102, %v149
  %v172 = vmul.f32 %v103, %v149
  %v173 = vmul.f32 %v104, %v149
  %v174 = vmul.f32 %v105, %v149
  %v175 = vmul.f32 %v106, %v149
  %v176 = vmul.f32 %v107, %v149
  %v177 = vmul.f32 %v108, %v149
  %v178 = vmul.f32 %v109, %v149
  %v179 = vmul.f32 %v110, %v149
  %v180 = vmul.f32 %v111, %v149
  %v181 = vmul.f32 %v112, %v149
  %v182 = vmul.f32 %v113, %v149
  %v183 = vmul.f32 %v114, %v149
  %v184 = vmul.f32 %v115, %v149
  %v185 = vmul.f32 %v116, %v149
  %v186 = vmul.f32 %v117, %v149
  %v187 = vmul.f32 %v118, %v149
  %v188 = vmul.f32 %v119, %v149
  %v189 = vmul.f32 %v120, %v149
  %v190 = vmul.f32 %v121, %v149
  %v191 = vmul.f32 %v122, %v149
  %v192 = vmul.f32 %v123, %v149
  %v193 = vmul.f32 %v124, %v149
  %v194 = vmul.f32 %v125, %v149
  %v195 = vmul.f32 %v126, %v149
  %v196 = vmul.f32 %v127, %v149
  %v197 = vmul.f32 %v128, %v149
  %v198 = vmul.f32 %v129, %v149
  %v199 = vmul.f32 %v130, %v149
  %v200 = vmul.f32 %v131, %v149
  %v201 = vmul.f32 %v132, %v149
  %v202 = vmul.f32 %v133, %v149
  %v203 = vmul.f32 %v134, %v149
  %v204 = vmul.f32 %v135, %v149
  %v205 = vmul.f32 %v136, %v149
  %v206 = vmul.f32 %v137, %v149
  %v207 = vmul.f32 %v138, %v149
  %v208 = vmul.f32 %v139, %v149
  %v209 = vmul.f32 %v140, %v149
  %v210 = vmul.f32 %v141, %v149
  %v211 = vmul.f32 %v142, %v149
  %v212 = vmul.f32 %v143, %v149
  %v213 = vmul.f32 %v144, %v149
  %v214 = vld [vmem:[%s1 + $0x1] sm:$0x1]
  %v215 = vlaneseq
  %v216 = vshrl.u32 %v215, 7
  %v217 = vsub.s32 0, %v216
  %v218 = vrot.slane %v214, %v217
  %v219 = vadd.f32 %v150, %v218
  %v220 = vadd.f32 %v151, %v218
  %v221 = vadd.f32 %v152, %v218
  %v222 = vadd.f32 %v153, %v218
  %v223 = vadd.f32 %v154, %v218
  %v224 = vadd.f32 %v155, %v218
  %v225 = vadd.f32 %v156, %v218
  %v226 = vadd.f32 %v157, %v218
  %v227 = vadd.f32 %v158, %v218
  %v228 = vadd.f32 %v159, %v218
  %v229 = vadd.f32 %v160, %v218
  %v230 = vadd.f32 %v161, %v218
  %v231 = vadd.f32 %v162, %v218
  %v232 = vadd.f32 %v163, %v218
  %v233 = vadd.f32 %v164, %v218
  %v234 = vadd.f32 %v165, %v218
  %v235 = vadd.f32 %v166, %v218
  %v236 = vadd.f32 %v167, %v218
  %v237 = vadd.f32 %v168, %v218
  %v238 = vadd.f32 %v169, %v218
  %v239 = vadd.f32 %v170, %v218
  %v240 = vadd.f32 %v171, %v218
  %v241 = vadd.f32 %v172, %v218
  %v242 = vadd.f32 %v173, %v218
  %v243 = vadd.f32 %v174, %v218
  %v244 = vadd.f32 %v175, %v218
  %v245 = vadd.f32 %v176, %v218
  %v246 = vadd.f32 %v177, %v218
  %v247 = vadd.f32 %v178, %v218
  %v248 = vadd.f32 %v179, %v218
  %v249 = vadd.f32 %v180, %v218
  %v250 = vadd.f32 %v181, %v218
  %v251 = vadd.f32 %v182, %v218
  %v252 = vadd.f32 %v183, %v218
  %v253 = vadd.f32 %v184, %v218
  %v254 = vadd.f32 %v185, %v218
  %v255 = vadd.f32 %v186, %v218
  %v256 = vadd.f32 %v187, %v218
  %v257 = vadd.f32 %v188, %v218
  %v258 = vadd.f32 %v189, %v218
  %v259 = vadd.f32 %v190, %v218
  %v260 = vadd.f32 %v191, %v218
  %v261 = vadd.f32 %v192, %v218
  %v262 = vadd.f32 %v193, %v218
  %v263 = vadd.f32 %v194, %v218
  %v264 = vadd.f32 %v195, %v218
  %v265 = vadd.f32 %v196, %v218
  %v266 = vadd.f32 %v197, %v218
  %v267 = vadd.f32 %v198, %v218
  %v268 = vadd.f32 %v199, %v218
  %v269 = vadd.f32 %v200, %v218
  %v270 = vadd.f32 %v201, %v218
  %v271 = vadd.f32 %v202, %v218
  %v272 = vadd.f32 %v203, %v218
  %v273 = vadd.f32 %v204, %v218
  %v274 = vadd.f32 %v205, %v218
  %v275 = vadd.f32 %v206, %v218
  %v276 = vadd.f32 %v207, %v218
  %v277 = vadd.f32 %v208, %v218
  %v278 = vadd.f32 %v209, %v218
  %v279 = vadd.f32 %v210, %v218
  %v280 = vadd.f32 %v211, %v218
  %v281 = vadd.f32 %v212, %v218
  %v282 = vadd.f32 %v213, %v218
  %v283 = vmax.f32 %v219, 0.0
  %v284 = vmax.f32 %v220, 0.0
  %v285 = vmax.f32 %v221, 0.0
  %v286 = vmax.f32 %v222, 0.0
  %v287 = vmax.f32 %v223, 0.0
  %v288 = vmax.f32 %v224, 0.0
  %v289 = vmax.f32 %v225, 0.0
  %v290 = vmax.f32 %v226, 0.0
  %v291 = vmax.f32 %v227, 0.0
  %v292 = vmax.f32 %v228, 0.0
  %v293 = vmax.f32 %v229, 0.0
  %v294 = vmax.f32 %v230, 0.0
  %v295 = vmax.f32 %v231, 0.0
  %v296 = vmax.f32 %v232, 0.0
  %v297 = vmax.f32 %v233, 0.0
  %v298 = vmax.f32 %v234, 0.0
  %v299 = vmax.f32 %v235, 0.0
  %v300 = vmax.f32 %v236, 0.0
  %v301 = vmax.f32 %v237, 0.0
  %v302 = vmax.f32 %v238, 0.0
  %v303 = vmax.f32 %v239, 0.0
  %v304 = vmax.f32 %v240, 0.0
  %v305 = vmax.f32 %v241, 0.0
  %v306 = vmax.f32 %v242, 0.0
  %v307 = vmax.f32 %v243, 0.0
  %v308 = vmax.f32 %v244, 0.0
  %v309 = vmax.f32 %v245, 0.0
  %v310 = vmax.f32 %v246, 0.0
  %v311 = vmax.f32 %v247, 0.0
  %v312 = vmax.f32 %v248, 0.0
  %v313 = vmax.f32 %v249, 0.0
  %v314 = vmax.f32 %v250, 0.0
  %v315 = vmax.f32 %v251, 0.0
  %v316 = vmax.f32 %v252, 0.0
  %v317 = vmax.f32 %v253, 0.0
  %v318 = vmax.f32 %v254, 0.0
  %v319 = vmax.f32 %v255, 0.0
  %v320 = vmax.f32 %v256, 0.0
  %v321 = vmax.f32 %v257, 0.0
  %v322 = vmax.f32 %v258, 0.0
  %v323 = vmax.f32 %v259, 0.0
  %v324 = vmax.f32 %v260, 0.0
  %v325 = vmax.f32 %v261, 0.0
  %v326 = vmax.f32 %v262, 0.0
  %v327 = vmax.f32 %v263, 0.0
  %v328 = vmax.f32 %v264, 0.0
  %v329 = vmax.f32 %v265, 0.0
  %v330 = vmax.f32 %v266, 0.0
  %v331 = vmax.f32 %v267, 0.0
  %v332 = vmax.f32 %v268, 0.0
  %v333 = vmax.f32 %v269, 0.0
  %v334 = vmax.f32 %v270, 0.0
  %v335 = vmax.f32 %v271, 0.0
  %v336 = vmax.f32 %v272, 0.0
  %v337 = vmax.f32 %v273, 0.0
  %v338 = vmax.f32 %v274, 0.0
  %v339 = vmax.f32 %v275, 0.0
  %v340 = vmax.f32 %v276, 0.0
  %v341 = vmax.f32 %v277, 0.0
  %v342 = vmax.f32 %v278, 0.0
  %v343 = vmax.f32 %v279, 0.0
  %v344 = vmax.f32 %v280, 0.0
  %v345 = vmax.f32 %v281, 0.0
  %v346 = vmax.f32 %v282, 0.0
  %v347 = vpack.c.bf16 %v284, %v283
  %v348 = vpack.c.bf16 %v286, %v285
  %v349 = vpack.c.bf16 %v288, %v287
  %v350 = vpack.c.bf16 %v290, %v289
  %v351 = vpack.c.bf16 %v292, %v291
  %v352 = vpack.c.bf16 %v294, %v293
  %v353 = vpack.c.bf16 %v296, %v295
  %v354 = vpack.c.bf16 %v298, %v297
  %v355 = vpack.c.bf16 %v300, %v299
  %v356 = vpack.c.bf16 %v302, %v301
  %v357 = vpack.c.bf16 %v304, %v303
  %v358 = vpack.c.bf16 %v306, %v305
  %v359 = vpack.c.bf16 %v308, %v307
  %v360 = vpack.c.bf16 %v310, %v309
  %v361 = vpack.c.bf16 %v312, %v311
  %v362 = vpack.c.bf16 %v314, %v313
  %v363 = vpack.c.bf16 %v316, %v315
  %v364 = vpack.c.bf16 %v318, %v317
  %v365 = vpack.c.bf16 %v320, %v319
  %v366 = vpack.c.bf16 %v322, %v321
  %v367 = vpack.c.bf16 %v324, %v323
  %v368 = vpack.c.bf16 %v326, %v325
  %v369 = vpack.c.bf16 %v328, %v327
  %v370 = vpack.c.bf16 %v330, %v329
  %v371 = vpack.c.bf16 %v332, %v331
  %v372 = vpack.c.bf16 %v334, %v333
  %v373 = vpack.c.bf16 %v336, %v335
  %v374 = vpack.c.bf16 %v338, %v337
  %v375 = vpack.c.bf16 %v340, %v339
  %v376 = vpack.c.bf16 %v342, %v341
  %v377 = vpack.c.bf16 %v344, %v343
  %v378 = vpack.c.bf16 %v346, %v345
  %v379 = vld [vmem:[%s2] sm:$0xf]
  %v380 = vld [vmem:[%s2 + $0x4] sm:$0xf]
  %v381 = vld [vmem:[%s2 + $0x8] sm:$0xf]
  %v382 = vld [vmem:[%s2 + $0xc] sm:$0xf]
  %v383 = vld [vmem:[%s2 + $0x10] sm:$0xf]
  %v384 = vld [vmem:[%s2 + $0x14] sm:$0xf]
  %v385 = vld [vmem:[%s2 + $0x18] sm:$0xf]
  %v386 = vld [vmem:[%s2 + $0x1c] sm:$0xf]
  %v387 = vld [vmem:[%s2 + $0x20] sm:$0xf]
  %v388 = vld [vmem:[%s2 + $0x24] sm:$0xf]
  %v389 = vld [vmem:[%s2 + $0x28] sm:$0xf]
  %v390 = vld [vmem:[%s2 + $0x2c] sm:$0xf]
  %v391 = vld [vmem:[%s2 + $0x30] sm:$0xf]
  %v392 = vld [vmem:[%s2 + $0x34] sm:$0xf]
  %v393 = vld [vmem:[%s2 + $0x38] sm:$0xf]
  %v394 = vld [vmem:[%s2 + $0x3c] sm:$0xf]
  %v411 = vunpack.c.l.b16 %v379
  %v412 = vunpack.c.l.b16 %v380
  %v413 = vunpack.c.l.b16 %v381
  %v414 = vunpack.c.l.b16 %v382
  %v415 = vunpack.c.l.b16 %v383
  %v416 = vunpack.c.l.b16 %v384
  %v417 = vunpack.c.l.b16 %v385
  %v418 = vunpack.c.l.b16 %v386
  %v419 = vunpack.c.l.b16 %v387
  %v420 = vunpack.c.l.b16 %v388
  %v421 = vunpack.c.l.b16 %v389
  %v422 = vunpack.c.l.b16 %v390
  %v423 = vunpack.c.l.b16 %v391
  %v424 = vunpack.c.l.b16 %v392
  %v425 = vunpack.c.l.b16 %v393
  %v426 = vunpack.c.l.b16 %v394
  %v427 = vpack.c.b16 %v412, %v411
  %v428 = vpack.c.b16 %v414, %v413
  %v429 = vpack.c.b16 %v416, %v415
  %v430 = vpack.c.b16 %v418, %v417
  %v431 = vpack.c.b16 %v420, %v419
  %v432 = vpack.c.b16 %v422, %v421
  %v433 = vpack.c.b16 %v424, %v423
  %v434 = vpack.c.b16 %v426, %v425
  %443 = vmatprep.subr.bf16.mxu0 0
  %444 = vmatpush1.bf16.msra.mxu0 %v427
  %445 = vmatprep.subr.bf16.mxu0 0
  %446 = vmatpush1.bf16.msra.mxu0 %v428
  %447 = vmatprep.subr.bf16.mxu0 0
  %448 = vmatpush1.bf16.msra.mxu0 %v429
  %449 = vmatprep.subr.bf16.mxu0 0
  %450 = vmatpush1.bf16.msra.mxu0 %v430
  %451 = vmatprep.subr.bf16.mxu0 0
  %452 = vmatpush1.bf16.msra.mxu0 %v431
  %453 = vmatprep.subr.bf16.mxu0 0
  %454 = vmatpush1.bf16.msra.mxu0 %v432
  %455 = vmatprep.subr.bf16.mxu0 0
  %456 = vmatpush1.bf16.msra.mxu0 %v433
  %457 = vmatprep.subr.bf16.mxu0 0
  %458 = vmatpush1.bf16.msra.mxu0 %v434
  %459 = vmatprep.subr.bf16.mxu0 0
  %460 = vmatpush1.bf16.msra.mxu0 0
  %461 = vmatprep.subr.bf16.mxu0 0
  %462 = vmatpush1.bf16.msra.mxu0 0
  %463 = vmatprep.subr.bf16.mxu0 0
  %464 = vmatpush1.bf16.msra.mxu0 0
  %465 = vmatprep.subr.bf16.mxu0 0
  %466 = vmatpush1.bf16.msra.mxu0 0
  %467 = vmatprep.subr.bf16.mxu0 0
  %468 = vmatpush1.bf16.msra.mxu0 0
  %469 = vmatprep.subr.bf16.mxu0 0
  %470 = vmatpush1.bf16.msra.mxu0 0
  %471 = vmatprep.subr.bf16.mxu0 0
  %472 = vmatpush1.bf16.msra.mxu0 0
  %473 = vmatprep.subr.bf16.mxu0 0
  %474 = vmatpush1.bf16.msra.mxu0 0
  %475 = vmatprep.mubr.bf16.mxu0 0
  %476 = vmatmul.mubr.bf16.gmra.mrb[0].mxu0 %v347
  %v477 = vpop.f32.mrb[0].mxu0
  %v478 = vadd.f32 0.0, %v477
  %v479 = vpop.f32.mrb[0].mxu0
  %v480 = vpop.f32.mrb[0].mxu0
  %v481 = vadd.f32 0.0, %v480
  %v482 = vpop.f32.mrb[0].mxu0
  %483 = vmatprep.mubr.bf16.mxu0 0
  %484 = vmatmul.mubr.bf16.gmra.mrb[0].mxu0 %v348
  %v485 = vpop.f32.mrb[0].mxu0
  %v486 = vadd.f32 0.0, %v485
  %v487 = vpop.f32.mrb[0].mxu0
  %v488 = vpop.f32.mrb[0].mxu0
  %v489 = vadd.f32 0.0, %v488
  %v490 = vpop.f32.mrb[0].mxu0
  %491 = vmatprep.mubr.bf16.mxu0 0
  %492 = vmatmul.mubr.bf16.gmra.mrb[0].mxu0 %v349
  %v493 = vpop.f32.mrb[0].mxu0
  %v494 = vadd.f32 0.0, %v493
  %v495 = vpop.f32.mrb[0].mxu0
  %v496 = vpop.f32.mrb[0].mxu0
  %v497 = vadd.f32 0.0, %v496
  %v498 = vpop.f32.mrb[0].mxu0
  %499 = vmatprep.mubr.bf16.mxu0 0
  %500 = vmatmul.mubr.bf16.gmra.mrb[0].mxu0 %v350
  %v501 = vpop.f32.mrb[0].mxu0
  %v502 = vadd.f32 0.0, %v501
  %v503 = vpop.f32.mrb[0].mxu0
  %v504 = vpop.f32.mrb[0].mxu0
  %v505 = vadd.f32 0.0, %v504
  %v506 = vpop.f32.mrb[0].mxu0
  %507 = vmatprep.mubr.bf16.mxu0 0
  %508 = vmatmul.mubr.bf16.gmra.mrb[0].mxu0 %v351
  %v509 = vpop.f32.mrb[0].mxu0
  %v510 = vadd.f32 0.0, %v509
  %v511 = vpop.f32.mrb[0].mxu0
  %v512 = vpop.f32.mrb[0].mxu0
  %v513 = vadd.f32 0.0, %v512
  %v514 = vpop.f32.mrb[0].mxu0
  %515 = vmatprep.mubr.bf16.mxu0 0
  %516 = vmatmul.mubr.bf16.gmra.mrb[0].mxu0 %v352
  %v517 = vpop.f32.mrb[0].mxu0
  %v518 = vadd.f32 0.0, %v517
  %v519 = vpop.f32.mrb[0].mxu0
  %v520 = vpop.f32.mrb[0].mxu0
  %v521 = vadd.f32 0.0, %v520
  %v522 = vpop.f32.mrb[0].mxu0
  %523 = vmatprep.mubr.bf16.mxu0 0
  %524 = vmatmul.mubr.bf16.gmra.mrb[0].mxu0 %v353
  %v525 = vpop.f32.mrb[0].mxu0
  %v526 = vadd.f32 0.0, %v525
  %v527 = vpop.f32.mrb[0].mxu0
  %v528 = vpop.f32.mrb[0].mxu0
  %v529 = vadd.f32 0.0, %v528
  %v530 = vpop.f32.mrb[0].mxu0
  %531 = vmatprep.mubr.bf16.mxu0 0
  %532 = vmatmul.mubr.bf16.gmra.mrb[0].mxu0 %v354
  %v533 = vpop.f32.mrb[0].mxu0
  %v534 = vadd.f32 0.0, %v533
  %v535 = vpop.f32.mrb[0].mxu0
  %v536 = vpop.f32.mrb[0].mxu0
  %v537 = vadd.f32 0.0, %v536
  %v538 = vpop.f32.mrb[0].mxu0
  %539 = vmatprep.mubr.bf16.mxu0 0
  %540 = vmatmul.mubr.bf16.gmra.mrb[0].mxu0 %v355
  %v541 = vpop.f32.mrb[0].mxu0
  %v542 = vadd.f32 0.0, %v541
  %v543 = vpop.f32.mrb[0].mxu0
  %v544 = vpop.f32.mrb[0].mxu0
  %v545 = vadd.f32 0.0, %v544
  %v546 = vpop.f32.mrb[0].mxu0
  %547 = vmatprep.mubr.bf16.mxu0 0
  %548 = vmatmul.mubr.bf16.gmra.mrb[0].mxu0 %v356
  %v549 = vpop.f32.mrb[0].mxu0
  %v550 = vadd.f32 0.0, %v549
  %v551 = vpop.f32.mrb[0].mxu0
  %v552 = vpop.f32.mrb[0].mxu0
  %v553 = vadd.f32 0.0, %v552
  %v554 = vpop.f32.mrb[0].mxu0
  %555 = vmatprep.mubr.bf16.mxu0 0
  %556 = vmatmul.mubr.bf16.gmra.mrb[0].mxu0 %v357
  %v557 = vpop.f32.mrb[0].mxu0
  %v558 = vadd.f32 0.0, %v557
  %v559 = vpop.f32.mrb[0].mxu0
  %v560 = vpop.f32.mrb[0].mxu0
  %v561 = vadd.f32 0.0, %v560
  %v562 = vpop.f32.mrb[0].mxu0
  %563 = vmatprep.mubr.bf16.mxu0 0
  %564 = vmatmul.mubr.bf16.gmra.mrb[0].mxu0 %v358
  %v565 = vpop.f32.mrb[0].mxu0
  %v566 = vadd.f32 0.0, %v565
  %v567 = vpop.f32.mrb[0].mxu0
  %v568 = vpop.f32.mrb[0].mxu0
  %v569 = vadd.f32 0.0, %v568
  %v570 = vpop.f32.mrb[0].mxu0
  %571 = vmatprep.mubr.bf16.mxu0 0
  %572 = vmatmul.mubr.bf16.gmra.mrb[0].mxu0 %v359
  %v573 = vpop.f32.mrb[0].mxu0
  %v574 = vadd.f32 0.0, %v573
  %v575 = vpop.f32.mrb[0].mxu0
  %v576 = vpop.f32.mrb[0].mxu0
  %v577 = vadd.f32 0.0, %v576
  %v578 = vpop.f32.mrb[0].mxu0
  %579 = vmatprep.mubr.bf16.mxu0 0
  %580 = vmatmul.mubr.bf16.gmra.mrb[0].mxu0 %v360
  %v581 = vpop.f32.mrb[0].mxu0
  %v582 = vadd.f32 0.0, %v581
  %v583 = vpop.f32.mrb[0].mxu0
  %v584 = vpop.f32.mrb[0].mxu0
  %v585 = vadd.f32 0.0, %v584
  %v586 = vpop.f32.mrb[0].mxu0
  %587 = vmatprep.mubr.bf16.mxu0 0
  %588 = vmatmul.mubr.bf16.gmra.mrb[0].mxu0 %v361
  %v589 = vpop.f32.mrb[0].mxu0
  %v590 = vadd.f32 0.0, %v589
  %v591 = vpop.f32.mrb[0].mxu0
  %v592 = vpop.f32.mrb[0].mxu0
  %v593 = vadd.f32 0.0, %v592
  %v594 = vpop.f32.mrb[0].mxu0
  %595 = vmatprep.mubr.bf16.mxu0 0
  %596 = vmatmul.mubr.bf16.gmra.mrb[0].mxu0 %v362
  %v597 = vpop.f32.mrb[0].mxu0
  %v598 = vadd.f32 0.0, %v597
  %v599 = vpop.f32.mrb[0].mxu0
  %v600 = vpop.f32.mrb[0].mxu0
  %v601 = vadd.f32 0.0, %v600
  %v602 = vpop.f32.mrb[0].mxu0
  %603 = vmatprep.mubr.bf16.mxu0 0
  %604 = vmatmul.mubr.bf16.gmra.mrb[0].mxu0 %v363
  %v605 = vpop.f32.mrb[0].mxu0
  %v606 = vadd.f32 0.0, %v605
  %v607 = vpop.f32.mrb[0].mxu0
  %v608 = vpop.f32.mrb[0].mxu0
  %v609 = vadd.f32 0.0, %v608
  %v610 = vpop.f32.mrb[0].mxu0
  %611 = vmatprep.mubr.bf16.mxu0 0
  %612 = vmatmul.mubr.bf16.gmra.mrb[0].mxu0 %v364
  %v613 = vpop.f32.mrb[0].mxu0
  %v614 = vadd.f32 0.0, %v613
  %v615 = vpop.f32.mrb[0].mxu0
  %v616 = vpop.f32.mrb[0].mxu0
  %v617 = vadd.f32 0.0, %v616
  %v618 = vpop.f32.mrb[0].mxu0
  %619 = vmatprep.mubr.bf16.mxu0 0
  %620 = vmatmul.mubr.bf16.gmra.mrb[0].mxu0 %v365
  %v621 = vpop.f32.mrb[0].mxu0
  %v622 = vadd.f32 0.0, %v621
  %v623 = vpop.f32.mrb[0].mxu0
  %v624 = vpop.f32.mrb[0].mxu0
  %v625 = vadd.f32 0.0, %v624
  %v626 = vpop.f32.mrb[0].mxu0
  %627 = vmatprep.mubr.bf16.mxu0 0
  %628 = vmatmul.mubr.bf16.gmra.mrb[0].mxu0 %v366
  %v629 = vpop.f32.mrb[0].mxu0
  %v630 = vadd.f32 0.0, %v629
  %v631 = vpop.f32.mrb[0].mxu0
  %v632 = vpop.f32.mrb[0].mxu0
  %v633 = vadd.f32 0.0, %v632
  %v634 = vpop.f32.mrb[0].mxu0
  %635 = vmatprep.mubr.bf16.mxu0 0
  %636 = vmatmul.mubr.bf16.gmra.mrb[0].mxu0 %v367
  %v637 = vpop.f32.mrb[0].mxu0
  %v638 = vadd.f32 0.0, %v637
  %v639 = vpop.f32.mrb[0].mxu0
  %v640 = vpop.f32.mrb[0].mxu0
  %v641 = vadd.f32 0.0, %v640
  %v642 = vpop.f32.mrb[0].mxu0
  %643 = vmatprep.mubr.bf16.mxu0 0
  %644 = vmatmul.mubr.bf16.gmra.mrb[0].mxu0 %v368
  %v645 = vpop.f32.mrb[0].mxu0
  %v646 = vadd.f32 0.0, %v645
  %v647 = vpop.f32.mrb[0].mxu0
  %v648 = vpop.f32.mrb[0].mxu0
  %v649 = vadd.f32 0.0, %v648
  %v650 = vpop.f32.mrb[0].mxu0
  %651 = vmatprep.mubr.bf16.mxu0 0
  %652 = vmatmul.mubr.bf16.gmra.mrb[0].mxu0 %v369
  %v653 = vpop.f32.mrb[0].mxu0
  %v654 = vadd.f32 0.0, %v653
  %v655 = vpop.f32.mrb[0].mxu0
  %v656 = vpop.f32.mrb[0].mxu0
  %v657 = vadd.f32 0.0, %v656
  %v658 = vpop.f32.mrb[0].mxu0
  %659 = vmatprep.mubr.bf16.mxu0 0
  %660 = vmatmul.mubr.bf16.gmra.mrb[0].mxu0 %v370
  %v661 = vpop.f32.mrb[0].mxu0
  %v662 = vadd.f32 0.0, %v661
  %v663 = vpop.f32.mrb[0].mxu0
  %v664 = vpop.f32.mrb[0].mxu0
  %v665 = vadd.f32 0.0, %v664
  %v666 = vpop.f32.mrb[0].mxu0
  %667 = vmatprep.mubr.bf16.mxu0 0
  %668 = vmatmul.mubr.bf16.gmra.mrb[0].mxu0 %v371
  %v669 = vpop.f32.mrb[0].mxu0
  %v670 = vadd.f32 0.0, %v669
  %v671 = vpop.f32.mrb[0].mxu0
  %v672 = vpop.f32.mrb[0].mxu0
  %v673 = vadd.f32 0.0, %v672
  %v674 = vpop.f32.mrb[0].mxu0
  %675 = vmatprep.mubr.bf16.mxu0 0
  %676 = vmatmul.mubr.bf16.gmra.mrb[0].mxu0 %v372
  %v677 = vpop.f32.mrb[0].mxu0
  %v678 = vadd.f32 0.0, %v677
  %v679 = vpop.f32.mrb[0].mxu0
  %v680 = vpop.f32.mrb[0].mxu0
  %v681 = vadd.f32 0.0, %v680
  %v682 = vpop.f32.mrb[0].mxu0
  %683 = vmatprep.mubr.bf16.mxu0 0
  %684 = vmatmul.mubr.bf16.gmra.mrb[0].mxu0 %v373
  %v685 = vpop.f32.mrb[0].mxu0
  %v686 = vadd.f32 0.0, %v685
  %v687 = vpop.f32.mrb[0].mxu0
  %v688 = vpop.f32.mrb[0].mxu0
  %v689 = vadd.f32 0.0, %v688
  %v690 = vpop.f32.mrb[0].mxu0
  %691 = vmatprep.mubr.bf16.mxu0 0
  %692 = vmatmul.mubr.bf16.gmra.mrb[0].mxu0 %v374
  %v693 = vpop.f32.mrb[0].mxu0
  %v694 = vadd.f32 0.0, %v693
  %v695 = vpop.f32.mrb[0].mxu0
  %v696 = vpop.f32.mrb[0].mxu0
  %v697 = vadd.f32 0.0, %v696
  %v698 = vpop.f32.mrb[0].mxu0
  %699 = vmatprep.mubr.bf16.mxu0 0
  %700 = vmatmul.mubr.bf16.gmra.mrb[0].mxu0 %v375
  %v701 = vpop.f32.mrb[0].mxu0
  %v702 = vadd.f32 0.0, %v701
  %v703 = vpop.f32.mrb[0].mxu0
  %v704 = vpop.f32.mrb[0].mxu0
  %v705 = vadd.f32 0.0, %v704
  %v706 = vpop.f32.mrb[0].mxu0
  %707 = vmatprep.mubr.bf16.mxu0 0
  %708 = vmatmul.mubr.bf16.gmra.mrb[0].mxu0 %v376
  %v709 = vpop.f32.mrb[0].mxu0
  %v710 = vadd.f32 0.0, %v709
  %v711 = vpop.f32.mrb[0].mxu0
  %v712 = vpop.f32.mrb[0].mxu0
  %v713 = vadd.f32 0.0, %v712
  %v714 = vpop.f32.mrb[0].mxu0
  %715 = vmatprep.mubr.bf16.mxu0 0
  %716 = vmatmul.mubr.bf16.gmra.mrb[0].mxu0 %v377
  %v717 = vpop.f32.mrb[0].mxu0
  %v718 = vadd.f32 0.0, %v717
  %v719 = vpop.f32.mrb[0].mxu0
  %v720 = vpop.f32.mrb[0].mxu0
  %v721 = vadd.f32 0.0, %v720
  %v722 = vpop.f32.mrb[0].mxu0
  %723 = vmatprep.mubr.bf16.mxu0 0
  %724 = vmatmul.mubr.bf16.gmra.mrb[0].mxu0 %v378
  %v725 = vpop.f32.mrb[0].mxu0
  %v726 = vadd.f32 0.0, %v725
  %v727 = vpop.f32.mrb[0].mxu0
  %v728 = vpop.f32.mrb[0].mxu0
  %v729 = vadd.f32 0.0, %v728
  %v730 = vpop.f32.mrb[0].mxu0
  %731 = vdwg.mxu0
  %v732 = vpack.c.bf16 %v481, %v478
  %v733 = vpack.c.bf16 %v489, %v486
  %v734 = vpack.c.bf16 %v497, %v494
  %v735 = vpack.c.bf16 %v505, %v502
  %v736 = vpack.c.bf16 %v513, %v510
  %v737 = vpack.c.bf16 %v521, %v518
  %v738 = vpack.c.bf16 %v529, %v526
  %v739 = vpack.c.bf16 %v537, %v534
  %v740 = vpack.c.bf16 %v545, %v542
  %v741 = vpack.c.bf16 %v553, %v550
  %v742 = vpack.c.bf16 %v561, %v558
  %v743 = vpack.c.bf16 %v569, %v566
  %v744 = vpack.c.bf16 %v577, %v574
  %v745 = vpack.c.bf16 %v585, %v582
  %v746 = vpack.c.bf16 %v593, %v590
  %v747 = vpack.c.bf16 %v601, %v598
  %v748 = vpack.c.bf16 %v609, %v606
  %v749 = vpack.c.bf16 %v617, %v614
  %v750 = vpack.c.bf16 %v625, %v622
  %v751 = vpack.c.bf16 %v633, %v630
  %v752 = vpack.c.bf16 %v641, %v638
  %v753 = vpack.c.bf16 %v649, %v646
  %v754 = vpack.c.bf16 %v657, %v654
  %v755 = vpack.c.bf16 %v665, %v662
  %v756 = vpack.c.bf16 %v673, %v670
  %v757 = vpack.c.bf16 %v681, %v678
  %v758 = vpack.c.bf16 %v689, %v686
  %v759 = vpack.c.bf16 %v697, %v694
  %v760 = vpack.c.bf16 %v705, %v702
  %v761 = vpack.c.bf16 %v713, %v710
  %v762 = vpack.c.bf16 %v721, %v718
  %v763 = vpack.c.bf16 %v729, %v726
  %v796 = vunpack.c.l.b16 %v732
  %v797 = vunpack.c.h.b16 %v732
  %v798 = vunpack.c.l.b16 %v733
  %v799 = vunpack.c.h.b16 %v733
  %v800 = vunpack.c.l.b16 %v734
  %v801 = vunpack.c.h.b16 %v734
  %v802 = vunpack.c.l.b16 %v735
  %v803 = vunpack.c.h.b16 %v735
  %v804 = vunpack.c.l.b16 %v736
  %v805 = vunpack.c.h.b16 %v736
  %v806 = vunpack.c.l.b16 %v737
  %v807 = vunpack.c.h.b16 %v737
  %v808 = vunpack.c.l.b16 %v738
  %v809 = vunpack.c.h.b16 %v738
  %v810 = vunpack.c.l.b16 %v739
  %v811 = vunpack.c.h.b16 %v739
  %v812 = vunpack.c.l.b16 %v740
  %v813 = vunpack.c.h.b16 %v740
  %v814 = vunpack.c.l.b16 %v741
  %v815 = vunpack.c.h.b16 %v741
  %v816 = vunpack.c.l.b16 %v742
  %v817 = vunpack.c.h.b16 %v742
  %v818 = vunpack.c.l.b16 %v743
  %v819 = vunpack.c.h.b16 %v743
  %v820 = vunpack.c.l.b16 %v744
  %v821 = vunpack.c.h.b16 %v744
  %v822 = vunpack.c.l.b16 %v745
  %v823 = vunpack.c.h.b16 %v745
  %v824 = vunpack.c.l.b16 %v746
  %v825 = vunpack.c.h.b16 %v746
  %v826 = vunpack.c.l.b16 %v747
  %v827 = vunpack.c.h.b16 %v747
  %v828 = vunpack.c.l.b16 %v748
  %v829 = vunpack.c.h.b16 %v748
  %v830 = vunpack.c.l.b16 %v749
  %v831 = vunpack.c.h.b16 %v749
  %v832 = vunpack.c.l.b16 %v750
  %v833 = vunpack.c.h.b16 %v750
  %v834 = vunpack.c.l.b16 %v751
  %v835 = vunpack.c.h.b16 %v751
  %v836 = vunpack.c.l.b16 %v752
  %v837 = vunpack.c.h.b16 %v752
  %v838 = vunpack.c.l.b16 %v753
  %v839 = vunpack.c.h.b16 %v753
  %v840 = vunpack.c.l.b16 %v754
  %v841 = vunpack.c.h.b16 %v754
  %v842 = vunpack.c.l.b16 %v755
  %v843 = vunpack.c.h.b16 %v755
  %v844 = vunpack.c.l.b16 %v756
  %v845 = vunpack.c.h.b16 %v756
  %v846 = vunpack.c.l.b16 %v757
  %v847 = vunpack.c.h.b16 %v757
  %v848 = vunpack.c.l.b16 %v758
  %v849 = vunpack.c.h.b16 %v758
  %v850 = vunpack.c.l.b16 %v759
  %v851 = vunpack.c.h.b16 %v759
  %v852 = vunpack.c.l.b16 %v760
  %v853 = vunpack.c.h.b16 %v760
  %v854 = vunpack.c.l.b16 %v761
  %v855 = vunpack.c.h.b16 %v761
  %v856 = vunpack.c.l.b16 %v762
  %v857 = vunpack.c.h.b16 %v762
  %v858 = vunpack.c.l.b16 %v763
  %v859 = vunpack.c.h.b16 %v763
  %v860 = vpack.c.b16 %v796, %v796
  %v861 = vpack.c.b16 %v797, %v797
  %v862 = vpack.c.b16 %v798, %v798
  %v863 = vpack.c.b16 %v799, %v799
  %v864 = vpack.c.b16 %v800, %v800
  %v865 = vpack.c.b16 %v801, %v801
  %v866 = vpack.c.b16 %v802, %v802
  %v867 = vpack.c.b16 %v803, %v803
  %v868 = vpack.c.b16 %v804, %v804
  %v869 = vpack.c.b16 %v805, %v805
  %v870 = vpack.c.b16 %v806, %v806
  %v871 = vpack.c.b16 %v807, %v807
  %v872 = vpack.c.b16 %v808, %v808
  %v873 = vpack.c.b16 %v809, %v809
  %v874 = vpack.c.b16 %v810, %v810
  %v875 = vpack.c.b16 %v811, %v811
  %v876 = vpack.c.b16 %v812, %v812
  %v877 = vpack.c.b16 %v813, %v813
  %v878 = vpack.c.b16 %v814, %v814
  %v879 = vpack.c.b16 %v815, %v815
  %v880 = vpack.c.b16 %v816, %v816
  %v881 = vpack.c.b16 %v817, %v817
  %v882 = vpack.c.b16 %v818, %v818
  %v883 = vpack.c.b16 %v819, %v819
  %v884 = vpack.c.b16 %v820, %v820
  %v885 = vpack.c.b16 %v821, %v821
  %v886 = vpack.c.b16 %v822, %v822
  %v887 = vpack.c.b16 %v823, %v823
  %v888 = vpack.c.b16 %v824, %v824
  %v889 = vpack.c.b16 %v825, %v825
  %v890 = vpack.c.b16 %v826, %v826
  %v891 = vpack.c.b16 %v827, %v827
  %v892 = vpack.c.b16 %v828, %v828
  %v893 = vpack.c.b16 %v829, %v829
  %v894 = vpack.c.b16 %v830, %v830
  %v895 = vpack.c.b16 %v831, %v831
  %v896 = vpack.c.b16 %v832, %v832
  %v897 = vpack.c.b16 %v833, %v833
  %v898 = vpack.c.b16 %v834, %v834
  %v899 = vpack.c.b16 %v835, %v835
  %v900 = vpack.c.b16 %v836, %v836
  %v901 = vpack.c.b16 %v837, %v837
  %v902 = vpack.c.b16 %v838, %v838
  %v903 = vpack.c.b16 %v839, %v839
  %v904 = vpack.c.b16 %v840, %v840
  %v905 = vpack.c.b16 %v841, %v841
  %v906 = vpack.c.b16 %v842, %v842
  %v907 = vpack.c.b16 %v843, %v843
  %v908 = vpack.c.b16 %v844, %v844
  %v909 = vpack.c.b16 %v845, %v845
  %v910 = vpack.c.b16 %v846, %v846
  %v911 = vpack.c.b16 %v847, %v847
  %v912 = vpack.c.b16 %v848, %v848
  %v913 = vpack.c.b16 %v849, %v849
  %v914 = vpack.c.b16 %v850, %v850
  %v915 = vpack.c.b16 %v851, %v851
  %v916 = vpack.c.b16 %v852, %v852
  %v917 = vpack.c.b16 %v853, %v853
  %v918 = vpack.c.b16 %v854, %v854
  %v919 = vpack.c.b16 %v855, %v855
  %v920 = vpack.c.b16 %v856, %v856
  %v921 = vpack.c.b16 %v857, %v857
  %v922 = vpack.c.b16 %v858, %v858
  %v923 = vpack.c.b16 %v859, %v859
  %988 = vst [vmem:[%s3] sm:$0xf] %v860
  %989 = vst [vmem:[%s3 + $0x4] sm:$0xf] %v861
  %990 = vst [vmem:[%s3 + $0x8] sm:$0xf] %v862
  %991 = vst [vmem:[%s3 + $0xc] sm:$0xf] %v863
  %992 = vst [vmem:[%s3 + $0x10] sm:$0xf] %v864
  %993 = vst [vmem:[%s3 + $0x14] sm:$0xf] %v865
  %994 = vst [vmem:[%s3 + $0x18] sm:$0xf] %v866
  %995 = vst [vmem:[%s3 + $0x1c] sm:$0xf] %v867
  %996 = vst [vmem:[%s3 + $0x20] sm:$0xf] %v868
  %997 = vst [vmem:[%s3 + $0x24] sm:$0xf] %v869
  %998 = vst [vmem:[%s3 + $0x28] sm:$0xf] %v870
  %999 = vst [vmem:[%s3 + $0x2c] sm:$0xf] %v871
  %1000 = vst [vmem:[%s3 + $0x30] sm:$0xf] %v872
  %1001 = vst [vmem:[%s3 + $0x34] sm:$0xf] %v873
  %1002 = vst [vmem:[%s3 + $0x38] sm:$0xf] %v874
  %1003 = vst [vmem:[%s3 + $0x3c] sm:$0xf] %v875
  %1004 = vst [vmem:[%s3 + $0x40] sm:$0xf] %v876
  %1005 = vst [vmem:[%s3 + $0x44] sm:$0xf] %v877
  %1006 = vst [vmem:[%s3 + $0x48] sm:$0xf] %v878
  %1007 = vst [vmem:[%s3 + $0x4c] sm:$0xf] %v879
  %1008 = vst [vmem:[%s3 + $0x50] sm:$0xf] %v880
  %1009 = vst [vmem:[%s3 + $0x54] sm:$0xf] %v881
  %1010 = vst [vmem:[%s3 + $0x58] sm:$0xf] %v882
  %1011 = vst [vmem:[%s3 + $0x5c] sm:$0xf] %v883
  %1012 = vst [vmem:[%s3 + $0x60] sm:$0xf] %v884
  %1013 = vst [vmem:[%s3 + $0x64] sm:$0xf] %v885
  %1014 = vst [vmem:[%s3 + $0x68] sm:$0xf] %v886
  %1015 = vst [vmem:[%s3 + $0x6c] sm:$0xf] %v887
  %1016 = vst [vmem:[%s3 + $0x70] sm:$0xf] %v888
  %1017 = vst [vmem:[%s3 + $0x74] sm:$0xf] %v889
  %1018 = vst [vmem:[%s3 + $0x78] sm:$0xf] %v890
  %1019 = vst [vmem:[%s3 + $0x7c] sm:$0xf] %v891
  %1020 = vst [vmem:[%s3 + $0x80] sm:$0xf] %v892
  %1021 = vst [vmem:[%s3 + $0x84] sm:$0xf] %v893
  %1022 = vst [vmem:[%s3 + $0x88] sm:$0xf] %v894
  %1023 = vst [vmem:[%s3 + $0x8c] sm:$0xf] %v895
  %1024 = vst [vmem:[%s3 + $0x90] sm:$0xf] %v896
  %1025 = vst [vmem:[%s3 + $0x94] sm:$0xf] %v897
  %1026 = vst [vmem:[%s3 + $0x98] sm:$0xf] %v898
  %1027 = vst [vmem:[%s3 + $0x9c] sm:$0xf] %v899
  %1028 = vst [vmem:[%s3 + $0xa0] sm:$0xf] %v900
  %1029 = vst [vmem:[%s3 + $0xa4] sm:$0xf] %v901
  %1030 = vst [vmem:[%s3 + $0xa8] sm:$0xf] %v902
  %1031 = vst [vmem:[%s3 + $0xac] sm:$0xf] %v903
  %1032 = vst [vmem:[%s3 + $0xb0] sm:$0xf] %v904
  %1033 = vst [vmem:[%s3 + $0xb4] sm:$0xf] %v905
  %1034 = vst [vmem:[%s3 + $0xb8] sm:$0xf] %v906
  %1035 = vst [vmem:[%s3 + $0xbc] sm:$0xf] %v907
  %1036 = vst [vmem:[%s3 + $0xc0] sm:$0xf] %v908
  %1037 = vst [vmem:[%s3 + $0xc4] sm:$0xf] %v909
  %1038 = vst [vmem:[%s3 + $0xc8] sm:$0xf] %v910
  %1039 = vst [vmem:[%s3 + $0xcc] sm:$0xf] %v911
  %1040 = vst [vmem:[%s3 + $0xd0] sm:$0xf] %v912
  %1041 = vst [vmem:[%s3 + $0xd4] sm:$0xf] %v913
  %1042 = vst [vmem:[%s3 + $0xd8] sm:$0xf] %v914
  %1043 = vst [vmem:[%s3 + $0xdc] sm:$0xf] %v915
  %1044 = vst [vmem:[%s3 + $0xe0] sm:$0xf] %v916
  %1045 = vst [vmem:[%s3 + $0xe4] sm:$0xf] %v917
  %1046 = vst [vmem:[%s3 + $0xe8] sm:$0xf] %v918
  %1047 = vst [vmem:[%s3 + $0xec] sm:$0xf] %v919
  %1048 = vst [vmem:[%s3 + $0xf0] sm:$0xf] %v920
  %1049 = vst [vmem:[%s3 + $0xf4] sm:$0xf] %v921
  %1050 = vst [vmem:[%s3 + $0xf8] sm:$0xf] %v922
  %1051 = vst [vmem:[%s3 + $0xfc] sm:$0xf] %v923
  %v1052 = vadd.f32 %v478, %v481
  %v1053 = vadd.f32 %v1052, %v486
  %v1054 = vadd.f32 %v1053, %v489
  %v1055 = vadd.f32 %v1054, %v494
  %v1056 = vadd.f32 %v1055, %v497
  %v1057 = vadd.f32 %v1056, %v502
  %v1058 = vadd.f32 %v1057, %v505
  %v1059 = vadd.f32 %v1058, %v510
  %v1060 = vadd.f32 %v1059, %v513
  %v1061 = vadd.f32 %v1060, %v518
  %v1062 = vadd.f32 %v1061, %v521
  %v1063 = vadd.f32 %v1062, %v526
  %v1064 = vadd.f32 %v1063, %v529
  %v1065 = vadd.f32 %v1064, %v534
  %v1066 = vadd.f32 %v1065, %v537
  %v1067 = vadd.f32 %v1066, %v542
  %v1068 = vadd.f32 %v1067, %v545
  %v1069 = vadd.f32 %v1068, %v550
  %v1070 = vadd.f32 %v1069, %v553
  %v1071 = vadd.f32 %v1070, %v558
  %v1072 = vadd.f32 %v1071, %v561
  %v1073 = vadd.f32 %v1072, %v566
  %v1074 = vadd.f32 %v1073, %v569
  %v1075 = vadd.f32 %v1074, %v574
  %v1076 = vadd.f32 %v1075, %v577
  %v1077 = vadd.f32 %v1076, %v582
  %v1078 = vadd.f32 %v1077, %v585
  %v1079 = vadd.f32 %v1078, %v590
  %v1080 = vadd.f32 %v1079, %v593
  %v1081 = vadd.f32 %v1080, %v598
  %v1082 = vadd.f32 %v1081, %v601
  %v1083 = vadd.f32 %v1082, %v606
  %v1084 = vadd.f32 %v1083, %v609
  %v1085 = vadd.f32 %v1084, %v614
  %v1086 = vadd.f32 %v1085, %v617
  %v1087 = vadd.f32 %v1086, %v622
  %v1088 = vadd.f32 %v1087, %v625
  %v1089 = vadd.f32 %v1088, %v630
  %v1090 = vadd.f32 %v1089, %v633
  %v1091 = vadd.f32 %v1090, %v638
  %v1092 = vadd.f32 %v1091, %v641
  %v1093 = vadd.f32 %v1092, %v646
  %v1094 = vadd.f32 %v1093, %v649
  %v1095 = vadd.f32 %v1094, %v654
  %v1096 = vadd.f32 %v1095, %v657
  %v1097 = vadd.f32 %v1096, %v662
  %v1098 = vadd.f32 %v1097, %v665
  %v1099 = vadd.f32 %v1098, %v670
  %v1100 = vadd.f32 %v1099, %v673
  %v1101 = vadd.f32 %v1100, %v678
  %v1102 = vadd.f32 %v1101, %v681
  %v1103 = vadd.f32 %v1102, %v686
  %v1104 = vadd.f32 %v1103, %v689
  %v1105 = vadd.f32 %v1104, %v694
  %v1106 = vadd.f32 %v1105, %v697
  %v1107 = vadd.f32 %v1106, %v702
  %v1108 = vadd.f32 %v1107, %v705
  %v1109 = vadd.f32 %v1108, %v710
  %v1110 = vadd.f32 %v1109, %v713
  %v1111 = vadd.f32 %v1110, %v718
  %v1112 = vadd.f32 %v1111, %v721
  %v1113 = vadd.f32 %v1112, %v726
  %v1114 = vadd.f32 %v1113, %v729
  %v1115 = vrot.slane %v1114, 4
  %v1116 = vadd.f32 %v1114, %v1115
  %v1117 = vrot.slane %v1116, 2
  %v1118 = vadd.f32 %v1116, %v1117
  %v1119 = vrot.slane %v1118, 1
  %v1120 = vadd.f32 %v1118, %v1119
  %v1121 = vmul.f32 %v478, %v478
  %v1122 = vmul.f32 %v481, %v481
  %v1123 = vmul.f32 %v486, %v486
  %v1124 = vmul.f32 %v489, %v489
  %v1125 = vmul.f32 %v494, %v494
  %v1126 = vmul.f32 %v497, %v497
  %v1127 = vmul.f32 %v502, %v502
  %v1128 = vmul.f32 %v505, %v505
  %v1129 = vmul.f32 %v510, %v510
  %v1130 = vmul.f32 %v513, %v513
  %v1131 = vmul.f32 %v518, %v518
  %v1132 = vmul.f32 %v521, %v521
  %v1133 = vmul.f32 %v526, %v526
  %v1134 = vmul.f32 %v529, %v529
  %v1135 = vmul.f32 %v534, %v534
  %v1136 = vmul.f32 %v537, %v537
  %v1137 = vmul.f32 %v542, %v542
  %v1138 = vmul.f32 %v545, %v545
  %v1139 = vmul.f32 %v550, %v550
  %v1140 = vmul.f32 %v553, %v553
  %v1141 = vmul.f32 %v558, %v558
  %v1142 = vmul.f32 %v561, %v561
  %v1143 = vmul.f32 %v566, %v566
  %v1144 = vmul.f32 %v569, %v569
  %v1145 = vmul.f32 %v574, %v574
  %v1146 = vmul.f32 %v577, %v577
  %v1147 = vmul.f32 %v582, %v582
  %v1148 = vmul.f32 %v585, %v585
  %v1149 = vmul.f32 %v590, %v590
  %v1150 = vmul.f32 %v593, %v593
  %v1151 = vmul.f32 %v598, %v598
  %v1152 = vmul.f32 %v601, %v601
  %v1153 = vmul.f32 %v606, %v606
  %v1154 = vmul.f32 %v609, %v609
  %v1155 = vmul.f32 %v614, %v614
  %v1156 = vmul.f32 %v617, %v617
  %v1157 = vmul.f32 %v622, %v622
  %v1158 = vmul.f32 %v625, %v625
  %v1159 = vmul.f32 %v630, %v630
  %v1160 = vmul.f32 %v633, %v633
  %v1161 = vmul.f32 %v638, %v638
  %v1162 = vmul.f32 %v641, %v641
  %v1163 = vmul.f32 %v646, %v646
  %v1164 = vmul.f32 %v649, %v649
  %v1165 = vmul.f32 %v654, %v654
  %v1166 = vmul.f32 %v657, %v657
  %v1167 = vmul.f32 %v662, %v662
  %v1168 = vmul.f32 %v665, %v665
  %v1169 = vmul.f32 %v670, %v670
  %v1170 = vmul.f32 %v673, %v673
  %v1171 = vmul.f32 %v678, %v678
  %v1172 = vmul.f32 %v681, %v681
  %v1173 = vmul.f32 %v686, %v686
  %v1174 = vmul.f32 %v689, %v689
  %v1175 = vmul.f32 %v694, %v694
  %v1176 = vmul.f32 %v697, %v697
  %v1177 = vmul.f32 %v702, %v702
  %v1178 = vmul.f32 %v705, %v705
  %v1179 = vmul.f32 %v710, %v710
  %v1180 = vmul.f32 %v713, %v713
  %v1181 = vmul.f32 %v718, %v718
  %v1182 = vmul.f32 %v721, %v721
  %v1183 = vmul.f32 %v726, %v726
  %v1184 = vmul.f32 %v729, %v729
  %v1185 = vadd.f32 %v1121, %v1122
  %v1186 = vadd.f32 %v1185, %v1123
  %v1187 = vadd.f32 %v1186, %v1124
  %v1188 = vadd.f32 %v1187, %v1125
  %v1189 = vadd.f32 %v1188, %v1126
  %v1190 = vadd.f32 %v1189, %v1127
  %v1191 = vadd.f32 %v1190, %v1128
  %v1192 = vadd.f32 %v1191, %v1129
  %v1193 = vadd.f32 %v1192, %v1130
  %v1194 = vadd.f32 %v1193, %v1131
  %v1195 = vadd.f32 %v1194, %v1132
  %v1196 = vadd.f32 %v1195, %v1133
  %v1197 = vadd.f32 %v1196, %v1134
  %v1198 = vadd.f32 %v1197, %v1135
  %v1199 = vadd.f32 %v1198, %v1136
  %v1200 = vadd.f32 %v1199, %v1137
  %v1201 = vadd.f32 %v1200, %v1138
  %v1202 = vadd.f32 %v1201, %v1139
  %v1203 = vadd.f32 %v1202, %v1140
  %v1204 = vadd.f32 %v1203, %v1141
  %v1205 = vadd.f32 %v1204, %v1142
  %v1206 = vadd.f32 %v1205, %v1143
  %v1207 = vadd.f32 %v1206, %v1144
  %v1208 = vadd.f32 %v1207, %v1145
  %v1209 = vadd.f32 %v1208, %v1146
  %v1210 = vadd.f32 %v1209, %v1147
  %v1211 = vadd.f32 %v1210, %v1148
  %v1212 = vadd.f32 %v1211, %v1149
  %v1213 = vadd.f32 %v1212, %v1150
  %v1214 = vadd.f32 %v1213, %v1151
  %v1215 = vadd.f32 %v1214, %v1152
  %v1216 = vadd.f32 %v1215, %v1153
  %v1217 = vadd.f32 %v1216, %v1154
  %v1218 = vadd.f32 %v1217, %v1155
  %v1219 = vadd.f32 %v1218, %v1156
  %v1220 = vadd.f32 %v1219, %v1157
  %v1221 = vadd.f32 %v1220, %v1158
  %v1222 = vadd.f32 %v1221, %v1159
  %v1223 = vadd.f32 %v1222, %v1160
  %v1224 = vadd.f32 %v1223, %v1161
  %v1225 = vadd.f32 %v1224, %v1162
  %v1226 = vadd.f32 %v1225, %v1163
  %v1227 = vadd.f32 %v1226, %v1164
  %v1228 = vadd.f32 %v1227, %v1165
  %v1229 = vadd.f32 %v1228, %v1166
  %v1230 = vadd.f32 %v1229, %v1167
  %v1231 = vadd.f32 %v1230, %v1168
  %v1232 = vadd.f32 %v1231, %v1169
  %v1233 = vadd.f32 %v1232, %v1170
  %v1234 = vadd.f32 %v1233, %v1171
  %v1235 = vadd.f32 %v1234, %v1172
  %v1236 = vadd.f32 %v1235, %v1173
  %v1237 = vadd.f32 %v1236, %v1174
  %v1238 = vadd.f32 %v1237, %v1175
  %v1239 = vadd.f32 %v1238, %v1176
  %v1240 = vadd.f32 %v1239, %v1177
  %v1241 = vadd.f32 %v1240, %v1178
  %v1242 = vadd.f32 %v1241, %v1179
  %v1243 = vadd.f32 %v1242, %v1180
  %v1244 = vadd.f32 %v1243, %v1181
  %v1245 = vadd.f32 %v1244, %v1182
  %v1246 = vadd.f32 %v1245, %v1183
  %v1247 = vadd.f32 %v1246, %v1184
  %v1248 = vrot.slane %v1247, 4
  %v1249 = vadd.f32 %v1247, %v1248
  %v1250 = vrot.slane %v1249, 2
  %v1251 = vadd.f32 %v1249, %v1250
  %v1252 = vrot.slane %v1251, 1
  %v1253 = vadd.f32 %v1251, %v1252
  %vm1254 = vcmask 1040384
  %v1255 = vsel %vm1254, %v1120, %v1253
  %1256 = vst [vmem:[%s4] sm:$0x3] %v1255
  // Predicated region
  $region14: #{bottleneck_forward.6} parent=0 // pred_check
    _
  $region15: #{bottleneck_forward.6} parent=0 // pred_check_branch
    %1258 = sbr.rel (0) target = $region17
  $region16: #{bottleneck_forward.6} parent=0 // pred_region
    _
  $region17: #{bottleneck_forward.6} parent=0 // pred_fallthru
    _
  // Predicated region
  $region18: #{bottleneck_forward.6} parent=0 // pred_check
    _
  $region19: #{bottleneck_forward.6} parent=0 // pred_check_branch
    %1260 = sbr.rel (0) target = $region21
  $region20: #{bottleneck_forward.6} parent=0 // pred_region
    _
  $region21: #{bottleneck_forward.6} parent=0 // pred_fallthru
    _
  // Predicated region
  $region22: #{bottleneck_forward.6} parent=0 // pred_check
    _
  $region23: #{bottleneck_forward.6} parent=0 // pred_check_branch
    %1262 = sbr.rel (0) target = $region25
  $region24: #{bottleneck_forward.6} parent=0 // pred_region
    _
  $region25: #{bottleneck_forward.6} parent=0 // pred_fallthru
    _
  // Predicated region
  $region26: #{bottleneck_forward.6} parent=0 // pred_check
    _
  $region27: #{bottleneck_forward.6} parent=0 // pred_check_branch
    %1264 = sbr.rel (0) target = $region29
  $region28: #{bottleneck_forward.6} parent=0 // pred_region
    _
  $region29: #{bottleneck_forward.6} parent=0 // pred_fallthru
    _

// kernel: bottleneck_forward.5
$region0: #{bottleneck_forward.5}
  #allocation0 [shape = 'u32[]', space=smem, size = 0x4, offset = 0x4, fixed_abs, tag = 'smem constant byte address 0x4 - core index']
  #allocation1 [shape = 'u32[144,128]{1,0:T(1,128)}', space=vmem, size = 0x12000, scoped, tag = 'internal scratch']
  #allocation2 [shape = 'bf16[10,16,384]{2,1,0:T(16,128)(2,1)}', space=vmem, size = 0x1e000, scoped, tag = 'scratch operand']
  #allocation3 [shape = 'f32[128,128]{1,0:T(8,128)}', space=vmem, size = 0x10000, scoped, tag = 'scratch operand']
  %s0 = inlined_call_operand.vmem [shape: bf16[2,16,16,128], index: 0, kind: input, shape index: {}, may-alias: {0,1,2}]
  %s1 = inlined_call_operand.vmem [shape: bf16[2,16,16,128], index: 1, kind: input, shape index: {}, may-alias: {0,1,2}]
  %s2 = inlined_call_operand.vmem [shape: bf16[2,16,16,128], index: 2, kind: input, shape index: {}, may-alias: {0,1,2}]
  %s3 = inlined_call_operand.vmem [shape: f32[2,128], index: 3, kind: input, shape index: {}]
  %s4 = inlined_call_operand.vmem [shape: bf16[3,384,128], index: 4, kind: input, shape index: {}]
  %s5 = inlined_call_operand.vmem [shape: bf16[2,16,16,128], index: 5, kind: output, shape index: {0}]
  %s6 = inlined_call_operand.vmem [shape: f32[2,2,2,128], index: 6, kind: output, shape index: {1}]
  %7 = xla_tuple %s5, %s6
  %s8 = sld [smem:[#allocation0]]
  $region77: #{bottleneck_forward.5} parent=0
    _
  %s10 = ssub.s32 1, %s8
  %s11 = scalar_select 0, %s10, %s8
  loop: start=0, step=1, limit=6
  $region2: #{bottleneck_forward.5} parent=0 // loop_pre_header
    _
  $region3: #{bottleneck_forward.5} parent=0 // loop_header
    %s13 = sphi 0, %s17
    %p14 = scmp.ge.s32.totalorder %s13, 6
    %s20 = sphi 0, %s32
    %s21 = sphi 0, %s28
    %s22 = sphi 0, %s20
    %s23 = sphi 0, %s21
    %s24 = sphi 0, %s22
    %s25 = sphi 0, %s23
    %s37 = sphi 0, %s39
    %s40 = sphi 0, %s37
    %s41 = sphi 0, %s40
    %s57 = sphi 0, %s41
    %s73 = sphi 0, %s75
    %s76 = sphi 0, %s73
    %s77 = sphi 0, %s76
    %s93 = sphi 0, %s77
    %s109 = sphi 0, %s111
    %s112 = sphi 0, %s109
    %s113 = sphi 0, %s112
    %s129 = sphi 0, %s113
    %s133 = sphi 0, %s133
    %s135 = sphi 0, %s133
    %s136 = sphi 0, %s135
    %s150 = sphi 0, %s136
    %s154 = sphi 0, %s154
    %s156 = sphi 0, %s154
    %s157 = sphi 0, %s156
    %s171 = sphi 0, %s157
    %s179 = sphi 0, %s181
    %s182 = sphi 0, %s179
    %s183 = sphi 0, %s182
    %s199 = sphi 0, %s183
    %s207 = sphi 0, %s209
    %s210 = sphi 0, %s207
    %s211 = sphi 0, %s210
    %s227 = sphi 0, %s211
  $region4: #{bottleneck_forward.5} parent=0 // loop_header_branch
    %16 = sbr.rel (%p14) target = $region8
  $region5: #{bottleneck_forward.5} parent=0 // loop_body
    %s18 = ssub.s32 %s13, 1
    %s19 = ssub.s32 %s13, 2
    %s26 = sadd.s32 1, %s21
    %p27 = scmp.ge.s32.totalorder %s26, 2
    %s28 = scalar_select %p27, 0, %s26
    %s29 = sadd.s32 1, %s20
    %s30 = scalar_select %p27, %s29, %s20
    %p31 = scmp.ge.s32.totalorder %s30, 2
    %s32 = scalar_select %p31, 0, %s30
    %s33 = ssub.s32 %s20, %s32
    %s34 = ssub.s32 %s21, %s28
    %s35 = sor.u32 %s33, %s34
    %p36 = scmp.eq.s32.totalorder %s35, 0
    %s38 = sadd.s32 %s37, 1
    %s39 = scalar_select %p36, %s37, %s38
    %p42 = pneg %p36
    %p43 = scmp.eq.s32.totalorder %s13, 3
    %p44 = por %p42, %p43
    %p45 = scmp.ne.s32.totalorder %s37, %s40
    %p46 = scmp.eq.s32.totalorder %s13, 0
    %p47 = por %p45, %p46
    %p48 = scmp.ne.s32.totalorder %s37, %s40
    %p49 = scmp.eq.s32.totalorder %s18, 3
    %p50 = por %p48, %p49
    %p51 = scmp.ne.s32.totalorder %s40, %s41
    %p52 = scmp.eq.s32.totalorder %s18, 0
    %p53 = por %p51, %p52
    %p54 = scmp.ne.s32.totalorder %s40, %s41
    %p55 = scmp.eq.s32.totalorder %s19, 3
    %p56 = por %p54, %p55
    %p58 = scmp.ne.s32.totalorder %s41, %s57
    %p59 = scmp.eq.s32.totalorder %s19, 0
    %p60 = por %p58, %p59
    %s61 = smul.u32 %s21, 8
    %s62 = ssub.s32 %s61, 1
    %p63 = scmp.gt.s32.totalorder %s62, 0
    %s64 = scalar_select %p63, %s62, 0
    %s65 = smul.u32 %s28, 8
    %s66 = ssub.s32 %s65, 1
    %p67 = scmp.gt.s32.totalorder %s66, 0
    %s68 = scalar_select %p67, %s66, 0
    %s69 = ssub.s32 %s20, %s32
    %s70 = ssub.s32 %s64, %s68
    %s71 = sor.u32 %s69, %s70
    %p72 = scmp.eq.s32.totalorder %s71, 0
    %s74 = sadd.s32 %s73, 1
    %s75 = scalar_select %p72, %s73, %s74
    %p78 = pneg %p72
    %p79 = scmp.eq.s32.totalorder %s13, 3
    %p80 = por %p78, %p79
    %p81 = scmp.ne.s32.totalorder %s73, %s76
    %p82 = scmp.eq.s32.totalorder %s13, 0
    %p83 = por %p81, %p82
    %p84 = scmp.ne.s32.totalorder %s73, %s76
    %p85 = scmp.eq.s32.totalorder %s18, 3
    %p86 = por %p84, %p85
    %p87 = scmp.ne.s32.totalorder %s76, %s77
    %p88 = scmp.eq.s32.totalorder %s18, 0
    %p89 = por %p87, %p88
    %p90 = scmp.ne.s32.totalorder %s76, %s77
    %p91 = scmp.eq.s32.totalorder %s19, 3
    %p92 = por %p90, %p91
    %p94 = scmp.ne.s32.totalorder %s77, %s93
    %p95 = scmp.eq.s32.totalorder %s19, 0
    %p96 = por %p94, %p95
    %s97 = sadd.s32 %s21, 1
    %s98 = smul.u32 %s97, 8
    %p99 = scmp.lt.s32.totalorder %s98, 15
    %s100 = scalar_select %p99, %s98, 15
    %s101 = sadd.s32 %s28, 1
    %s102 = smul.u32 %s101, 8
    %p103 = scmp.lt.s32.totalorder %s102, 15
    %s104 = scalar_select %p103, %s102, 15
    %s105 = ssub.s32 %s20, %s32
    %s106 = ssub.s32 %s100, %s104
    %s107 = sor.u32 %s105, %s106
    %p108 = scmp.eq.s32.totalorder %s107, 0
    %s110 = sadd.s32 %s109, 1
    %s111 = scalar_select %p108, %s109, %s110
    %p114 = pneg %p108
    %p115 = scmp.eq.s32.totalorder %s13, 3
    %p116 = por %p114, %p115
    %p117 = scmp.ne.s32.totalorder %s109, %s112
    %p118 = scmp.eq.s32.totalorder %s13, 0
    %p119 = por %p117, %p118
    %p120 = scmp.ne.s32.totalorder %s109, %s112
    %p121 = scmp.eq.s32.totalorder %s18, 3
    %p122 = por %p120, %p121
    %p123 = scmp.ne.s32.totalorder %s112, %s113
    %p124 = scmp.eq.s32.totalorder %s18, 0
    %p125 = por %p123, %p124
    %p126 = scmp.ne.s32.totalorder %s112, %s113
    %p127 = scmp.eq.s32.totalorder %s19, 3
    %p128 = por %p126, %p127
    %p130 = scmp.ne.s32.totalorder %s113, %s129
    %p131 = scmp.eq.s32.totalorder %s19, 0
    %p132 = por %p130, %p131
    %s134 = sadd.s32 %s133, 1
    %p137 = scmp.eq.s32.totalorder %s13, 3
    %p138 = scmp.ne.s32.totalorder %s133, %s135
    %p139 = scmp.eq.s32.totalorder %s13, 0
    %p140 = por %p138, %p139
    %p141 = scmp.ne.s32.totalorder %s133, %s135
    %p142 = scmp.eq.s32.totalorder %s18, 3
    %p143 = por %p141, %p142
    %p144 = scmp.ne.s32.totalorder %s135, %s136
    %p145 = scmp.eq.s32.totalorder %s18, 0
    %p146 = por %p144, %p145
    %p147 = scmp.ne.s32.totalorder %s135, %s136
    %p148 = scmp.eq.s32.totalorder %s19, 3
    %p149 = por %p147, %p148
    %p151 = scmp.ne.s32.totalorder %s136, %s150
    %p152 = scmp.eq.s32.totalorder %s19, 0
    %p153 = por %p151, %p152
    %s155 = sadd.s32 %s154, 1
    %p158 = scmp.eq.s32.totalorder %s13, 3
    %p159 = scmp.ne.s32.totalorder %s154, %s156
    %p160 = scmp.eq.s32.totalorder %s13, 0
    %p161 = por %p159, %p160
    %p162 = scmp.ne.s32.totalorder %s154, %s156
    %p163 = scmp.eq.s32.totalorder %s18, 3
    %p164 = por %p162, %p163
    %p165 = scmp.ne.s32.totalorder %s156, %s157
    %p166 = scmp.eq.s32.totalorder %s18, 0
    %p167 = por %p165, %p166
    %p168 = scmp.ne.s32.totalorder %s156, %s157
    %p169 = scmp.eq.s32.totalorder %s19, 3
    %p170 = por %p168, %p169
    %p172 = scmp.ne.s32.totalorder %s157, %s171
    %p173 = scmp.eq.s32.totalorder %s19, 0
    %p174 = por %p172, %p173
    %s175 = ssub.s32 %s20, %s32
    %s176 = ssub.s32 %s21, %s28
    %s177 = sor.u32 %s175, %s176
    %p178 = scmp.eq.s32.totalorder %s177, 0
    %s180 = sadd.s32 %s179, 1
    %s181 = scalar_select %p178, %s179, %s180
    %p184 = pneg %p178
    %p185 = scmp.eq.s32.totalorder %s13, 3
    %p186 = por %p184, %p185
    %p187 = scmp.ne.s32.totalorder %s179, %s182
    %p188 = scmp.eq.s32.totalorder %s13, 0
    %p189 = por %p187, %p188
    %p190 = scmp.ne.s32.totalorder %s179, %s182
    %p191 = scmp.eq.s32.totalorder %s18, 3
    %p192 = por %p190, %p191
    %p193 = scmp.ne.s32.totalorder %s182, %s183
    %p194 = scmp.eq.s32.totalorder %s18, 0
    %p195 = por %p193, %p194
    %p196 = scmp.ne.s32.totalorder %s182, %s183
    %p197 = scmp.eq.s32.totalorder %s19, 3
    %p198 = por %p196, %p197
    %p200 = scmp.ne.s32.totalorder %s183, %s199
    %p201 = scmp.eq.s32.totalorder %s19, 0
    %p202 = por %p200, %p201
    %s203 = ssub.s32 %s20, %s32
    %s204 = ssub.s32 %s21, %s28
    %s205 = sor.u32 %s203, %s204
    %p206 = scmp.eq.s32.totalorder %s205, 0
    %s208 = sadd.s32 %s207, 1
    %s209 = scalar_select %p206, %s207, %s208
    %p212 = pneg %p206
    %p213 = scmp.eq.s32.totalorder %s13, 3
    %p214 = por %p212, %p213
    %p215 = scmp.ne.s32.totalorder %s207, %s210
    %p216 = scmp.eq.s32.totalorder %s13, 0
    %p217 = por %p215, %p216
    %p218 = scmp.ne.s32.totalorder %s207, %s210
    %p219 = scmp.eq.s32.totalorder %s18, 3
    %p220 = por %p218, %p219
    %p221 = scmp.ne.s32.totalorder %s210, %s211
    %p222 = scmp.eq.s32.totalorder %s18, 0
    %p223 = por %p221, %p222
    %p224 = scmp.ne.s32.totalorder %s210, %s211
    %p225 = scmp.eq.s32.totalorder %s19, 3
    %p226 = por %p224, %p225
    %p228 = scmp.ne.s32.totalorder %s211, %s227
    %p229 = scmp.eq.s32.totalorder %s19, 0
    %p230 = por %p228, %p229
    %p231 = scmp.le.s32.totalorder 1, %s13
    %p232 = scmp.lt.s32.totalorder %s13, 5
    %p233 = pnand %p231, %p232
    %p234 = pneg %p233
    // Predicated region
    $region9: #{bottleneck_forward.5} parent=5 // pred_check
      _
    $region10: #{bottleneck_forward.5} parent=5 // pred_check_branch
      %236 = sbr.rel (%p233) target = $region12
    $region11: #{bottleneck_forward.5} parent=5 // pred_region
      %s237 = ssub.s32 %s13, 1
      // Predicated region
      $region13: #{bottleneck_forward.5} parent=11 // pred_check
        %p238 = pneg %p146
      $region14: #{bottleneck_forward.5} parent=11 // pred_check_branch
        %240 = sbr.rel (%p238) target = $region16
      $region15: #{bottleneck_forward.5} parent=11 // pred_region
        _
      $region16: #{bottleneck_forward.5} parent=11 // pred_fallthru
        _
      // Predicated region
      $region17: #{bottleneck_forward.5} parent=11 // pred_check
        %p241 = pneg %p167
      $region18: #{bottleneck_forward.5} parent=11 // pred_check_branch
        %243 = sbr.rel (%p241) target = $region20
      $region19: #{bottleneck_forward.5} parent=11 // pred_region
        _
      $region20: #{bottleneck_forward.5} parent=11 // pred_fallthru
        _
    $region12: #{bottleneck_forward.5} parent=5 // pred_fallthru
      _
    %p244 = scmp.lt.s32.totalorder %s13, 4
    // Predicated region
    $region21: #{bottleneck_forward.5} parent=5 // pred_check
      %p245 = pneg %p244
    $region22: #{bottleneck_forward.5} parent=5 // pred_check_branch
      %247 = sbr.rel (%p245) target = $region24
    $region23: #{bottleneck_forward.5} parent=5 // pred_region
      // Predicated region
      $region25: #{bottleneck_forward.5} parent=23 // pred_check
        %p248 = pneg %p47
      $region26: #{bottleneck_forward.5} parent=23 // pred_check_branch
        %250 = sbr.rel (%p248) target = $region28
      $region27: #{bottleneck_forward.5} parent=23 // pred_region
        %s251 = smul.u32 8, %s21
        %p252 = scmp.lt.s32.totalorder %s20, 1
        %s253 = scalar_select %p252, %s20, 1
        %p254 = scmp.lt.s32.totalorder %s251, 15
        %s255 = scalar_select %p254, %s251, 15
        %s256 = smul.addr %s255, 2
        %s257 = smul.addr %s253, 32
        %s258 = sadd.s32 %s256, %s257
        %s259 = smul.addr %s258, 4
        %s260 = scalar_lea.vmem %s0, %s259
        %s261 = smul.u32 8, %s21
      $region28: #{bottleneck_forward.5} parent=23 // pred_fallthru
        _
      // Predicated region
      $region29: #{bottleneck_forward.5} parent=23 // pred_check
        %p262 = pneg %p83
      $region30: #{bottleneck_forward.5} parent=23 // pred_check_branch
        %264 = sbr.rel (%p262) target = $region32
      $region31: #{bottleneck_forward.5} parent=23 // pred_region
        %s265 = smul.u32 %s21, 8
        %s266 = ssub.s32 %s265, 1
        %p267 = scmp.gt.s32.totalorder %s266, 0
        %s268 = scalar_select %p267, %s266, 0
        %p269 = scmp.lt.s32.totalorder %s20, 1
        %s270 = scalar_select %p269, %s20, 1
        %p271 = scmp.lt.s32.totalorder %s268, 15
        %s272 = scalar_select %p271, %s268, 15
        %s273 = smul.addr %s272, 2
        %s274 = smul.addr %s270, 32
        %s275 = sadd.s32 %s273, %s274
        %s276 = smul.addr %s275, 4
        %s277 = scalar_lea.vmem %s1, %s276
        %s278 = smul.u32 %s21, 8
        %s279 = ssub.s32 %s278, 1
        %p280 = scmp.gt.s32.totalorder %s279, 0
        %s281 = scalar_select %p280, %s279, 0
      $region32: #{bottleneck_forward.5} parent=23 // pred_fallthru
        _
      // Predicated region
      $region33: #{bottleneck_forward.5} parent=23 // pred_check
        %p282 = pneg %p119
      $region34: #{bottleneck_forward.5} parent=23 // pred_check_branch
        %284 = sbr.rel (%p282) target = $region36
      $region35: #{bottleneck_forward.5} parent=23 // pred_region
        %s285 = sadd.s32 %s21, 1
        %s286 = smul.u32 %s285, 8
        %p287 = scmp.lt.s32.totalorder %s286, 15
        %s288 = scalar_select %p287, %s286, 15
        %p289 = scmp.lt.s32.totalorder %s20, 1
        %s290 = scalar_select %p289, %s20, 1
        %p291 = scmp.lt.s32.totalorder %s288, 15
        %s292 = scalar_select %p291, %s288, 15
        %s293 = smul.addr %s292, 2
        %s294 = smul.addr %s290, 32
        %s295 = sadd.s32 %s293, %s294
        %s296 = smul.addr %s295, 4
        %s297 = scalar_lea.vmem %s2, %s296
        %s298 = sadd.s32 %s21, 1
        %s299 = smul.u32 %s298, 8
        %p300 = scmp.lt.s32.totalorder %s299, 15
        %s301 = scalar_select %p300, %s299, 15
      $region36: #{bottleneck_forward.5} parent=23 // pred_fallthru
        _
    $region24: #{bottleneck_forward.5} parent=5 // pred_fallthru
      _
    %p302 = scmp.le.s32.totalorder 1, %s13
    %p303 = scmp.lt.s32.totalorder %s13, 5
    %p304 = pnand %p302, %p303
    %p305 = pneg %p304
    // Predicated region
    $region37: #{bottleneck_forward.5} parent=5 // pred_check
      _
    $region38: #{bottleneck_forward.5} parent=5 // pred_check_branch
      %307 = sbr.rel (%p304) target = $region40
    $region39: #{bottleneck_forward.5} parent=5 // pred_region
      %s308 = ssub.s32 %s13, 1
      %s309 = smul.u32 8, %s23
      %p310 = scmp.lt.s32.totalorder %s22, 1
      %s311 = scalar_select %p310, %s22, 1
      %p312 = scmp.lt.s32.totalorder %s309, 15
      %s313 = scalar_select %p312, %s309, 15
      %s314 = smul.addr %s313, 2
      %s315 = smul.addr %s311, 32
      %s316 = sadd.s32 %s314, %s315
      %s317 = smul.addr %s316, 4
      %s318 = scalar_lea.vmem %s0, %s317
      %p319 = pneg %p53
      %p320 = pneg %p50
      %s321 = smul.u32 %s23, 8
      %s322 = ssub.s32 %s321, 1
      %p323 = scmp.gt.s32.totalorder %s322, 0
      %s324 = scalar_select %p323, %s322, 0
      %p325 = scmp.lt.s32.totalorder %s22, 1
      %s326 = scalar_select %p325, %s22, 1
      %p327 = scmp.lt.s32.totalorder %s324, 15
      %s328 = scalar_select %p327, %s324, 15
      %s329 = smul.addr %s328, 2
      %s330 = smul.addr %s326, 32
      %s331 = sadd.s32 %s329, %s330
      %s332 = smul.addr %s331, 4
      %s333 = scalar_lea.vmem %s1, %s332
      %p334 = pneg %p89
      %p335 = pneg %p86
      %s336 = sadd.s32 %s23, 1
      %s337 = smul.u32 %s336, 8
      %p338 = scmp.lt.s32.totalorder %s337, 15
      %s339 = scalar_select %p338, %s337, 15
      %p340 = scmp.lt.s32.totalorder %s22, 1
      %s341 = scalar_select %p340, %s22, 1
      %p342 = scmp.lt.s32.totalorder %s339, 15
      %s343 = scalar_select %p342, %s339, 15
      %s344 = smul.addr %s343, 2
      %s345 = smul.addr %s341, 32
      %s346 = sadd.s32 %s344, %s345
      %s347 = smul.addr %s346, 4
      %s348 = scalar_lea.vmem %s2, %s347
      %p349 = pneg %p125
      %p350 = pneg %p122
      %p351 = pneg %p146
      %p352 = pneg %p143
      %p353 = pneg %p167
      %p354 = pneg %p164
      %p355 = pneg %p195
      %p356 = pneg %p192
      %s357 = smul.u32 8, %s23
      %p358 = scmp.lt.s32.totalorder %s22, 1
      %s359 = scalar_select %p358, %s22, 1
      %p360 = scmp.lt.s32.totalorder %s357, 15
      %s361 = scalar_select %p360, %s357, 15
      %s362 = smul.addr %s361, 2
      %s363 = smul.addr %s359, 32
      %s364 = sadd.s32 %s362, %s363
      %s365 = smul.addr %s364, 4
      %s366 = scalar_lea.vmem %s5, %s365
      %p367 = pneg %p223
      %p368 = pneg %p220
      %p369 = scmp.lt.s32.totalorder %s22, 1
      %s370 = scalar_select %p369, %s22, 1
      %p371 = scmp.lt.s32.totalorder %s23, 1
      %s372 = scalar_select %p371, %s23, 1
      %s373 = smul.addr %s370, 2
      %s374 = sadd.s32 %s372, %s373
      %s375 = smul.addr %s374, 2
      %s376 = scalar_lea.vmem %s6, %s375
      %s377 = smul.u32 8, %s23
      %p378 = scmp.lt.s32.totalorder %s22, 1
      %s379 = scalar_select %p378, %s22, 1
      %p380 = scmp.lt.s32.totalorder %s377, 15
      %s381 = scalar_select %p380, %s377, 15
      %s382 = smul.addr %s381, 2
      %s383 = smul.addr %s379, 32
      %s384 = sadd.s32 %s382, %s383
      %s385 = smul.addr %s384, 4
      %s386 = scalar_lea.vmem %s0, %s385
      %s387 = smul.u32 8, %s23
      %s388 = smul.u32 %s23, 8
      %s389 = ssub.s32 %s388, 1
      %p390 = scmp.gt.s32.totalorder %s389, 0
      %s391 = scalar_select %p390, %s389, 0
      %p392 = scmp.lt.s32.totalorder %s22, 1
      %s393 = scalar_select %p392, %s22, 1
      %p394 = scmp.lt.s32.totalorder %s391, 15
      %s395 = scalar_select %p394, %s391, 15
      %s396 = smul.addr %s395, 2
      %s397 = smul.addr %s393, 32
      %s398 = sadd.s32 %s396, %s397
      %s399 = smul.addr %s398, 4
      %s400 = scalar_lea.vmem %s1, %s399
      %s401 = smul.u32 %s23, 8
      %s402 = ssub.s32 %s401, 1
      %p403 = scmp.gt.s32.totalorder %s402, 0
      %s404 = scalar_select %p403, %s402, 0
      %s405 = sadd.s32 %s23, 1
      %s406 = smul.u32 %s405, 8
      %p407 = scmp.lt.s32.totalorder %s406, 15
      %s408 = scalar_select %p407, %s406, 15
      %p409 = scmp.lt.s32.totalorder %s22, 1
      %s410 = scalar_select %p409, %s22, 1
      %p411 = scmp.lt.s32.totalorder %s408, 15
      %s412 = scalar_select %p411, %s408, 15
      %s413 = smul.addr %s412, 2
      %s414 = smul.addr %s410, 32
      %s415 = sadd.s32 %s413, %s414
      %s416 = smul.addr %s415, 4
      %s417 = scalar_lea.vmem %s2, %s416
      %s418 = sadd.s32 %s23, 1
      %s419 = smul.u32 %s418, 8
      %p420 = scmp.lt.s32.totalorder %s419, 15
      %s421 = scalar_select %p420, %s419, 15
      %s422 = smul.u32 8, %s23
      %p423 = scmp.lt.s32.totalorder %s22, 1
      %s424 = scalar_select %p423, %s22, 1
      %p425 = scmp.lt.s32.totalorder %s422, 15
      %s426 = scalar_select %p425, %s422, 15
      %s427 = smul.addr %s426, 2
      %s428 = smul.addr %s424, 32
      %s429 = sadd.s32 %s427, %s428
      %s430 = smul.addr %s429, 4
      %s431 = scalar_lea.vmem %s5, %s430
      %s432 = smul.u32 8, %s23
      %p433 = scmp.lt.s32.totalorder %s22, 1
      %s434 = scalar_select %p433, %s22, 1
      %p435 = scmp.lt.s32.totalorder %s23, 1
      %s436 = scalar_select %p435, %s23, 1
      %s437 = smul.addr %s434, 2
      %s438 = sadd.s32 %s436, %s437
      %s439 = smul.addr %s438, 2
      %s440 = scalar_lea.vmem %s6, %s439
      %v442 = vld [vmem:[%s3] sm:$0x1]
      %v443 = vld [vmem:[%s3 + $0x1] sm:$0x1]
      %v444 = vld [vmem:[%s386] sm:$0xf]
      %v445 = vld [vmem:[%s386 + $0x4] sm:$0xf]
      %v446 = vld [vmem:[%s386 + $0x8] sm:$0xf]
      %v447 = vld [vmem:[%s386 + $0xc] sm:$0xf]
      %v448 = vld [vmem:[%s386 + $0x10] sm:$0xf]
      %v449 = vld [vmem:[%s386 + $0x14] sm:$0xf]
      %v450 = vld [vmem:[%s386 + $0x18] sm:$0xf]
      %v451 = vld [vmem:[%s386 + $0x1c] sm:$0xf]
      %v452 = vld [vmem:[%s386 + $0x20] sm:$0xf]
      %v453 = vld [vmem:[%s386 + $0x24] sm:$0xf]
      %v454 = vld [vmem:[%s386 + $0x28] sm:$0xf]
      %v455 = vld [vmem:[%s386 + $0x2c] sm:$0xf]
      %v456 = vld [vmem:[%s386 + $0x30] sm:$0xf]
      %v457 = vld [vmem:[%s386 + $0x34] sm:$0xf]
      %v458 = vld [vmem:[%s386 + $0x38] sm:$0xf]
      %v459 = vld [vmem:[%s386 + $0x3c] sm:$0xf]
      %v460 = vunpack.c.l.bf16 %v444
      %v461 = vunpack.c.l.bf16 %v445
      %v462 = vunpack.c.l.bf16 %v446
      %v463 = vunpack.c.l.bf16 %v447
      %v464 = vunpack.c.l.bf16 %v448
      %v465 = vunpack.c.l.bf16 %v449
      %v466 = vunpack.c.l.bf16 %v450
      %v467 = vunpack.c.l.bf16 %v451
      %v468 = vunpack.c.l.bf16 %v452
      %v469 = vunpack.c.l.bf16 %v453
      %v470 = vunpack.c.l.bf16 %v454
      %v471 = vunpack.c.l.bf16 %v455
      %v472 = vunpack.c.l.bf16 %v456
      %v473 = vunpack.c.l.bf16 %v457
      %v474 = vunpack.c.l.bf16 %v458
      %v475 = vunpack.c.l.bf16 %v459
      %v476 = vlaneseq
      %v477 = vshrl.u32 %v476, 7
      %v478 = vsub.s32 0, %v477
      %v479 = vrot.slane %v442, %v478
      %v480 = vmul.f32 %v460, %v479
      %v481 = vmul.f32 %v461, %v479
      %v482 = vmul.f32 %v462, %v479
      %v483 = vmul.f32 %v463, %v479
      %v484 = vmul.f32 %v464, %v479
      %v485 = vmul.f32 %v465, %v479
      %v486 = vmul.f32 %v466, %v479
      %v487 = vmul.f32 %v467, %v479
      %v488 = vmul.f32 %v468, %v479
      %v489 = vmul.f32 %v469, %v479
      %v490 = vmul.f32 %v470, %v479
      %v491 = vmul.f32 %v471, %v479
      %v492 = vmul.f32 %v472, %v479
      %v493 = vmul.f32 %v473, %v479
      %v494 = vmul.f32 %v474, %v479
      %v495 = vmul.f32 %v475, %v479
      %v496 = vlaneseq
      %v497 = vshrl.u32 %v496, 7
      %v498 = vsub.s32 0, %v497
      %v499 = vrot.slane %v443, %v498
      %v500 = vadd.f32 %v480, %v499
      %v501 = vadd.f32 %v481, %v499
      %v502 = vadd.f32 %v482, %v499
      %v503 = vadd.f32 %v483, %v499
      %v504 = vadd.f32 %v484, %v499
      %v505 = vadd.f32 %v485, %v499
      %v506 = vadd.f32 %v486, %v499
      %v507 = vadd.f32 %v487, %v499
      %v508 = vadd.f32 %v488, %v499
      %v509 = vadd.f32 %v489, %v499
      %v510 = vadd.f32 %v490, %v499
      %v511 = vadd.f32 %v491, %v499
      %v512 = vadd.f32 %v492, %v499
      %v513 = vadd.f32 %v493, %v499
      %v514 = vadd.f32 %v494, %v499
      %v515 = vadd.f32 %v495, %v499
      %v516 = vmax.f32 %v500, 0.0
      %v517 = vmax.f32 %v501, 0.0
      %v518 = vmax.f32 %v502, 0.0
      %v519 = vmax.f32 %v503, 0.0
      %v520 = vmax.f32 %v504, 0.0
      %v521 = vmax.f32 %v505, 0.0
      %v522 = vmax.f32 %v506, 0.0
      %v523 = vmax.f32 %v507, 0.0
      %v524 = vmax.f32 %v508, 0.0
      %v525 = vmax.f32 %v509, 0.0
      %v526 = vmax.f32 %v510, 0.0
      %v527 = vmax.f32 %v511, 0.0
      %v528 = vmax.f32 %v512, 0.0
      %v529 = vmax.f32 %v513, 0.0
      %v530 = vmax.f32 %v514, 0.0
      %v531 = vmax.f32 %v515, 0.0
      %v532 = vpack.c.bf16 %v517, %v516
      %v533 = vpack.c.bf16 %v519, %v518
      %v534 = vpack.c.bf16 %v521, %v520
      %v535 = vpack.c.bf16 %v523, %v522
      %v536 = vpack.c.bf16 %v525, %v524
      %v537 = vpack.c.bf16 %v527, %v526
      %v538 = vpack.c.bf16 %v529, %v528
      %v539 = vpack.c.bf16 %v531, %v530
      %s540 = scalar_lea.vmem [#allocation2], 24
      %541 = vst [vmem:[%s540 + $0x8] sm:$0xff] %v532
      %542 = vst [vmem:[%s540 + $0x20] sm:$0xff] %v533
      %543 = vst [vmem:[%s540 + $0x38] sm:$0xff] %v534
      %544 = vst [vmem:[%s540 + $0x50] sm:$0xff] %v535
      %545 = vst [vmem:[%s540 + $0x68] sm:$0xff] %v536
      %546 = vst [vmem:[%s540 + $0x80] sm:$0xff] %v537
      %547 = vst [vmem:[%s540 + $0x98] sm:$0xff] %v538
      %548 = vst [vmem:[%s540 + $0xb0] sm:$0xff] %v539
      %p549 = scmp.eq.s32.totalorder %s23, 0
      // Predicated region
      $region41: #{bottleneck_forward.5} parent=39 // pred_check
        %p550 = pneg %p549
      $region42: #{bottleneck_forward.5} parent=39 // pred_check_branch
        %552 = sbr.rel (%p550) target = $region44
      $region43: #{bottleneck_forward.5} parent=39 // pred_region
        %553 = vst [vmem:[#allocation2 + $0x8] sm:$0xff] 0
      $region44: #{bottleneck_forward.5} parent=39 // pred_fallthru
        _
      %p554 = scmp.gt.s32.totalorder %s23, 0
      // Predicated region
      $region45: #{bottleneck_forward.5} parent=39 // pred_check
        %p555 = pneg %p554
      $region46: #{bottleneck_forward.5} parent=39 // pred_check_branch
        %557 = sbr.rel (%p555) target = $region48
      $region47: #{bottleneck_forward.5} parent=39 // pred_region
        %v558 = vld [vmem:[%s400] sm:$0xf]
        %v559 = vld [vmem:[%s400 + $0x4] sm:$0xf]
        %v560 = vunpack.c.l.bf16 %v558
        %v561 = vunpack.c.l.bf16 %v559
        %v562 = vmul.f32 %v560, %v479
        %v563 = vmul.f32 %v561, %v479
        %v564 = vadd.f32 %v562, %v499
        %v565 = vadd.f32 %v563, %v499
        %v566 = vmax.f32 %v564, 0.0
        %v567 = vmax.f32 %v565, 0.0
        %v568 = vpack.c.bf16 %v567, %v566
        %569 = vst [vmem:[#allocation2 + $0x8] sm:$0xff] %v568
      $region48: #{bottleneck_forward.5} parent=39 // pred_fallthru
        _
      %p570 = scmp.eq.s32.totalorder %s23, 1
      // Predicated region
      $region49: #{bottleneck_forward.5} parent=39 // pred_check
        %p571 = pneg %p570
      $region50: #{bottleneck_forward.5} parent=39 // pred_check_branch
        %573 = sbr.rel (%p571) target = $region52
      $region51: #{bottleneck_forward.5} parent=39 // pred_region
        %s574 = scalar_lea.vmem [#allocation2], 216
        %575 = vst [vmem:[%s574 + $0x8] sm:$0xff] 0
      $region52: #{bottleneck_forward.5} parent=39 // pred_fallthru
        _
      %p576 = scmp.lt.s32.totalorder %s23, 1
      // Predicated region
      $region53: #{bottleneck_forward.5} parent=39 // pred_check
        %p577 = pneg %p576
      $region54: #{bottleneck_forward.5} parent=39 // pred_check_branch
        %579 = sbr.rel (%p577) target = $region56
      $region55: #{bottleneck_forward.5} parent=39 // pred_region
        %v580 = vld [vmem:[%s417] sm:$0xf]
        %v581 = vld [vmem:[%s417 + $0x4] sm:$0xf]
        %v582 = vunpack.c.l.bf16 %v580
        %v583 = vunpack.c.l.bf16 %v581
        %v584 = vmul.f32 %v582, %v479
        %v585 = vmul.f32 %v583, %v479
        %v586 = vadd.f32 %v584, %v499
        %v587 = vadd.f32 %v585, %v499
        %v588 = vmax.f32 %v586, 0.0
        %v589 = vmax.f32 %v587, 0.0
        %v590 = vpack.c.bf16 %v589, %v588
        %s591 = scalar_lea.vmem [#allocation2], 216
        %592 = vst [vmem:[%s591 + $0x8] sm:$0xff] %v590
      $region56: #{bottleneck_forward.5} parent=39 // pred_fallthru
        _
      %v593 = vld [vmem:[#allocation2 + $0x8] sm:$0xff]
      %v594 = vld [vmem:[#allocation2 + $0x20] sm:$0xff]
      %v595 = vld [vmem:[#allocation2 + $0x38] sm:$0xff]
      %v596 = vld [vmem:[#allocation2 + $0x50] sm:$0xff]
      %v597 = vld [vmem:[#allocation2 + $0x68] sm:$0xff]
      %v598 = vld [vmem:[#allocation2 + $0x80] sm:$0xff]
      %v599 = vld [vmem:[#allocation2 + $0x98] sm:$0xff]
      %v600 = vld [vmem:[#allocation2 + $0xb0] sm:$0xff]
      %v601 = vld [vmem:[#allocation2 + $0xc8] sm:$0xff]
      %v602 = vld [vmem:[#allocation2 + $0xe0] sm:$0xff]
      %v604 = vshrl.u32 %v593, 16
      %v606 = vrot.slane %v604, 7
      %v607 = vshll.u32 %v593, 16
      %v609 = vor.u32 %v606, %v607
      %v611 = vshrl.u32 %v594, 16
      %v613 = vrot.slane %v611, 7
      %v614 = vshll.u32 %v594, 16
      %v616 = vor.u32 %v613, %v614
      %v618 = vshrl.u32 %v595, 16
      %v620 = vrot.slane %v618, 7
      %v621 = vshll.u32 %v595, 16
      %v623 = vor.u32 %v620, %v621
      %v625 = vshrl.u32 %v596, 16
      %v627 = vrot.slane %v625, 7
      %v628 = vshll.u32 %v596, 16
      %v630 = vor.u32 %v627, %v628
      %v632 = vshrl.u32 %v597, 16
      %v634 = vrot.slane %v632, 7
      %v635 = vshll.u32 %v597, 16
      %v637 = vor.u32 %v634, %v635
      %v639 = vshrl.u32 %v598, 16
      %v641 = vrot.slane %v639, 7
      %v642 = vshll.u32 %v598, 16
      %v644 = vor.u32 %v641, %v642
      %v646 = vshrl.u32 %v599, 16
      %v648 = vrot.slane %v646, 7
      %v649 = vshll.u32 %v599, 16
      %v651 = vor.u32 %v648, %v649
      %v653 = vshrl.u32 %v600, 16
      %v655 = vrot.slane %v653, 7
      %v656 = vshll.u32 %v600, 16
      %v658 = vor.u32 %v655, %v656
      %v660 = vshrl.u32 %v601, 16
      %v662 = vrot.slane %v660, 7
      %v663 = vshll.u32 %v601, 16
      %v665 = vor.u32 %v662, %v663
      %v667 = vshrl.u32 %v602, 16
      %v669 = vrot.slane %v667, 7
      %v670 = vshll.u32 %v602, 16
      %v672 = vor.u32 %v669, %v670
      %vm683 = vcmask 1040384
      %vm684 = vsmask.f32 256
      %vm685 = vmand %vm683, %vm684
      %v686 = vsel %vm685, 0, %v609
      %v687 = vsel %vm685, 0, %v616
      %v688 = vsel %vm685, 0, %v623
      %v689 = vsel %vm685, 0, %v630
      %v690 = vsel %vm685, 0, %v637
      %v691 = vsel %vm685, 0, %v644
      %v692 = vsel %vm685, 0, %v651
      %v693 = vsel %vm685, 0, %v658
      %v694 = vsel %vm685, 0, %v665
      %v695 = vsel %vm685, 0, %v672
      %696 = vst [vmem:[#allocation2] sm:$0xff] %v686
      %697 = vst [vmem:[#allocation2 + $0x18] sm:$0xff] %v687
      %698 = vst [vmem:[#allocation2 + $0x30] sm:$0xff] %v688
      %699 = vst [vmem:[#allocation2 + $0x48] sm:$0xff] %v689
      %700 = vst [vmem:[#allocation2 + $0x60] sm:$0xff] %v690
      %701 = vst [vmem:[#allocation2 + $0x78] sm:$0xff] %v691
      %702 = vst [vmem:[#allocation2 + $0x90] sm:$0xff] %v692
      %703 = vst [vmem:[#allocation2 + $0xa8] sm:$0xff] %v693
      %704 = vst [vmem:[#allocation2 + $0xc0] sm:$0xff] %v694
      %705 = vst [vmem:[#allocation2 + $0xd8] sm:$0xff] %v695
      %v706 = vrot.slane %v607, 1
      %v707 = vor.u32 %v604, %v706
      %v708 = vrot.slane %v614, 1
      %v709 = vor.u32 %v611, %v708
      %v710 = vrot.slane %v621, 1
      %v711 = vor.u32 %v618, %v710
      %v712 = vrot.slane %v628, 1
      %v713 = vor.u32 %v625, %v712
      %v714 = vrot.slane %v635, 1
      %v715 = vor.u32 %v632, %v714
      %v716 = vrot.slane %v642, 1
      %v717 = vor.u32 %v639, %v716
      %v718 = vrot.slane %v649, 1
      %v719 = vor.u32 %v646, %v718
      %v720 = vrot.slane %v656, 1
      %v721 = vor.u32 %v653, %v720
      %v722 = vrot.slane %v663, 1
      %v723 = vor.u32 %v660, %v722
      %v724 = vrot.slane %v670, 1
      %v725 = vor.u32 %v667, %v724
      %vm736 = vcmask 1047552
      %vm737 = vsmask.f32 7424
      %vm738 = vmand %vm736, %vm737
      %v739 = vsel %vm738, %v707, 0
      %v740 = vsel %vm738, %v709, 0
      %v741 = vsel %vm738, %v711, 0
      %v742 = vsel %vm738, %v713, 0
      %v743 = vsel %vm738, %v715, 0
      %v744 = vsel %vm738, %v717, 0
      %v745 = vsel %vm738, %v719, 0
      %v746 = vsel %vm738, %v721, 0
      %v747 = vsel %vm738, %v723, 0
      %v748 = vsel %vm738, %v725, 0
      %749 = vst [vmem:[#allocation2 + $0x10] sm:$0xff] %v739
      %750 = vst [vmem:[#allocation2 + $0x28] sm:$0xff] %v740
      %751 = vst [vmem:[#allocation2 + $0x40] sm:$0xff] %v741
      %752 = vst [vmem:[#allocation2 + $0x58] sm:$0xff] %v742
      %753 = vst [vmem:[#allocation2 + $0x70] sm:$0xff] %v743
      %754 = vst [vmem:[#allocation2 + $0x88] sm:$0xff] %v744
      %755 = vst [vmem:[#allocation2 + $0xa0] sm:$0xff] %v745
      %756 = vst [vmem:[#allocation2 + $0xb8] sm:$0xff] %v746
      %757 = vst [vmem:[#allocation2 + $0xd0] sm:$0xff] %v747
      %758 = vst [vmem:[#allocation2 + $0xe8] sm:$0xff] %v748
      %v759 = vld [vmem:[#allocation2] sm:$0xff]
      %v760 = vld [vmem:[#allocation2 + $0x8] sm:$0xff]
      %v761 = vld [vmem:[#allocation2 + $0x10] sm:$0xff]
      %v762 = vld [vmem:[#allocation2 + $0x18] sm:$0xff]
      %v763 = vld [vmem:[#allocation2 + $0x20] sm:$0xff]
      %v764 = vld [vmem:[#allocation2 + $0x28] sm:$0xff]
      %v765 = vld [vmem:[#allocation2 + $0x30] sm:$0xff]
      %v766 = vld [vmem:[#allocation2 + $0x38] sm:$0xff]
      %v767 = vld [vmem:[#allocation2 + $0x40] sm:$0xff]
      %v768 = vld [vmem:[#allocation2 + $0x48] sm:$0xff]
      %v769 = vld [vmem:[#allocation2 + $0x50] sm:$0xff]
      %v770 = vld [vmem:[#allocation2 + $0x58] sm:$0xff]
      %v771 = vld [vmem:[#allocation2 + $0x60] sm:$0xff]
      %v772 = vld [vmem:[#allocation2 + $0x68] sm:$0xff]
      %v773 = vld [vmem:[#allocation2 + $0x70] sm:$0xff]
      %v774 = vld [vmem:[#allocation2 + $0x78] sm:$0xff]
      %v775 = vld [vmem:[#allocation2 + $0x80] sm:$0xff]
      %v776 = vld [vmem:[#allocation2 + $0x88] sm:$0xff]
      %v777 = vld [vmem:[#allocation2 + $0x90] sm:$0xff]
      %v778 = vld [vmem:[#allocation2 + $0x98] sm:$0xff]
      %v779 = vld [vmem:[#allocation2 + $0xa0] sm:$0xff]
      %v780 = vld [vmem:[#allocation2 + $0xa8] sm:$0xff]
      %v781 = vld [vmem:[#allocation2 + $0xb0] sm:$0xff]
      %v782 = vld [vmem:[#allocation2 + $0xb8] sm:$0xff]
      %v783 = vld [vmem:[%s4] sm:$0xf]
      %v784 = vld [vmem:[%s4 + $0x4] sm:$0xf]
      %v785 = vld [vmem:[%s4 + $0x8] sm:$0xf]
      %v786 = vld [vmem:[%s4 + $0xc] sm:$0xf]
      %v787 = vld [vmem:[%s4 + $0x10] sm:$0xf]
      %v788 = vld [vmem:[%s4 + $0x14] sm:$0xf]
      %v789 = vld [vmem:[%s4 + $0x18] sm:$0xf]
      %v790 = vld [vmem:[%s4 + $0x1c] sm:$0xf]
      %v791 = vld [vmem:[%s4 + $0x20] sm:$0xf]
      %v792 = vld [vmem:[%s4 + $0x24] sm:$0xf]
      %v793 = vld [vmem:[%s4 + $0x28] sm:$0xf]
      %v794 = vld [vmem:[%s4 + $0x2c] sm:$0xf]
      %v795 = vld [vmem:[%s4 + $0x30] sm:$0xf]
      %v796 = vld [vmem:[%s4 + $0x34] sm:$0xf]
      %v797 = vld [vmem:[%s4 + $0x38] sm:$0xf]
      %v798 = vld [vmem:[%s4 + $0x3c] sm:$0xf]
      %v799 = vld [vmem:[%s4 + $0x40] sm:$0xf]
      %v800 = vld [vmem:[%s4 + $0x44] sm:$0xf]
      %v801 = vld [vmem:[%s4 + $0x48] sm:$0xf]
      %v802 = vld [vmem:[%s4 + $0x4c] sm:$0xf]
      %v803 = vld [vmem:[%s4 + $0x50] sm:$0xf]
      %v804 = vld [vmem:[%s4 + $0x54] sm:$0xf]
      %v805 = vld [vmem:[%s4 + $0x58] sm:$0xf]
      %v806 = vld [vmem:[%s4 + $0x5c] sm:$0xf]
      %v807 = vld [vmem:[%s4 + $0x60] sm:$0xf]
      %v808 = vld [vmem:[%s4 + $0x64] sm:$0xf]
      %v809 = vld [vmem:[%s4 + $0x68] sm:$0xf]
      %v810 = vld [vmem:[%s4 + $0x6c] sm:$0xf]
      %v811 = vld [vmem:[%s4 + $0x70] sm:$0xf]
      %v812 = vld [vmem:[%s4 + $0x74] sm:$0xf]
      %v813 = vld [vmem:[%s4 + $0x78] sm:$0xf]
      %v814 = vld [vmem:[%s4 + $0x7c] sm:$0xf]
      %v815 = vld [vmem:[%s4 + $0x80] sm:$0xf]
      %v816 = vld [vmem:[%s4 + $0x84] sm:$0xf]
      %v817 = vld [vmem:[%s4 + $0x88] sm:$0xf]
      %v818 = vld [vmem:[%s4 + $0x8c] sm:$0xf]
      %v819 = vld [vmem:[%s4 + $0x90] sm:$0xf]
      %v820 = vld [vmem:[%s4 + $0x94] sm:$0xf]
      %v821 = vld [vmem:[%s4 + $0x98] sm:$0xf]
      %v822 = vld [vmem:[%s4 + $0x9c] sm:$0xf]
      %v823 = vld [vmem:[%s4 + $0xa0] sm:$0xf]
      %v824 = vld [vmem:[%s4 + $0xa4] sm:$0xf]
      %v825 = vld [vmem:[%s4 + $0xa8] sm:$0xf]
      %v826 = vld [vmem:[%s4 + $0xac] sm:$0xf]
      %v827 = vld [vmem:[%s4 + $0xb0] sm:$0xf]
      %v828 = vld [vmem:[%s4 + $0xb4] sm:$0xf]
      %v829 = vld [vmem:[%s4 + $0xb8] sm:$0xf]
      %v830 = vld [vmem:[%s4 + $0xbc] sm:$0xf]
      %v879 = vunpack.c.l.b16 %v783
      %v880 = vunpack.c.l.b16 %v784
      %v881 = vunpack.c.l.b16 %v785
      %v882 = vunpack.c.l.b16 %v786
      %v883 = vunpack.c.l.b16 %v787
      %v884 = vunpack.c.l.b16 %v788
      %v885 = vunpack.c.l.b16 %v789
      %v886 = vunpack.c.l.b16 %v790
      %v887 = vunpack.c.l.b16 %v791
      %v888 = vunpack.c.l.b16 %v792
      %v889 = vunpack.c.l.b16 %v793
      %v890 = vunpack.c.l.b16 %v794
      %v891 = vunpack.c.l.b16 %v795
      %v892 = vunpack.c.l.b16 %v796
      %v893 = vunpack.c.l.b16 %v797
      %v894 = vunpack.c.l.b16 %v798
      %v895 = vunpack.c.l.b16 %v799
      %v896 = vunpack.c.l.b16 %v800
      %v897 = vunpack.c.l.b16 %v801
      %v898 = vunpack.c.l.b16 %v802
      %v899 = vunpack.c.l.b16 %v803
      %v900 = vunpack.c.l.b16 %v804
      %v901 = vunpack.c.l.b16 %v805
      %v902 = vunpack.c.l.b16 %v806
      %v903 = vunpack.c.l.b16 %v807
      %v904 = vunpack.c.l.b16 %v808
      %v905 = vunpack.c.l.b16 %v809
      %v906 = vunpack.c.l.b16 %v810
      %v907 = vunpack.c.l.b16 %v811
      %v908 = vunpack.c.l.b16 %v812
      %v909 = vunpack.c.l.b16 %v813
      %v910 = vunpack.c.l.b16 %v814
      %v911 = vunpack.c.l.b16 %v815
      %v912 = vunpack.c.l.b16 %v816
      %v913 = vunpack.c.l.b16 %v817
      %v914 = vunpack.c.l.b16 %v818
      %v915 = vunpack.c.l.b16 %v819
      %v916 = vunpack.c.l.b16 %v820
      %v917 = vunpack.c.l.b16 %v821
      %v918 = vunpack.c.l.b16 %v822
      %v919 = vunpack.c.l.b16 %v823
      %v920 = vunpack.c.l.b16 %v824
      %v921 = vunpack.c.l.b16 %v825
      %v922 = vunpack.c.l.b16 %v826
      %v923 = vunpack.c.l.b16 %v827
      %v924 = vunpack.c.l.b16 %v828
      %v925 = vunpack.c.l.b16 %v829
      %v926 = vunpack.c.l.b16 %v830
      %v927 = vpack.c.b16 %v880, %v879
      %v928 = vpack.c.b16 %v882, %v881
      %v929 = vpack.c.b16 %v884, %v883
      %v930 = vpack.c.b16 %v886, %v885
      %v931 = vpack.c.b16 %v888, %v887
      %v932 = vpack.c.b16 %v890, %v889
      %v933 = vpack.c.b16 %v892, %v891
      %v934 = vpack.c.b16 %v894, %v893
      %v935 = vpack.c.b16 %v896, %v895
      %v936 = vpack.c.b16 %v898, %v897
      %v937 = vpack.c.b16 %v900, %v899
      %v938 = vpack.c.b16 %v902, %v901
      %v939 = vpack.c.b16 %v904, %v903
      %v940 = vpack.c.b16 %v906, %v905
      %v941 = vpack.c.b16 %v908, %v907
      %v942 = vpack.c.b16 %v910, %v909
      %v943 = vpack.c.b16 %v912, %v911
      %v944 = vpack.c.b16 %v914, %v913
      %v945 = vpack.c.b16 %v916, %v915
      %v946 = vpack.c.b16 %v918, %v917
      %v947 = vpack.c.b16 %v920, %v919
      %v948 = vpack.c.b16 %v922, %v921
      %v949 = vpack.c.b16 %v924, %v923
      %v950 = vpack.c.b16 %v926, %v925
      %975 = vmatprep.subr.bf16.mxu0 0
      %976 = vmatpush1.bf16.msra.mxu0 %v927
      %977 = vmatprep.subr.bf16.mxu0 0
      %978 = vmatpush1.bf16.msra.mxu0 %v928
      %979 = vmatprep.subr.bf16.mxu0 0
      %980 = vmatpush1.bf16.msra.mxu0 %v929
      %981 = vmatprep.subr.bf16.mxu0 0
      %982 = vmatpush1.bf16.msra.mxu0 %v930
      %983 = vmatprep.subr.bf16.mxu0 0
      %984 = vmatpush1.bf16.msra.mxu0 %v931
      %985 = vmatprep.subr.bf16.mxu0 0
      %986 = vmatpush1.bf16.msra.mxu0 %v932
      %987 = vmatprep.subr.bf16.mxu0 0
      %988 = vmatpush1.bf16.msra.mxu0 %v933
      %989 = vmatprep.subr.bf16.mxu0 0
      %990 = vmatpush1.bf16.msra.mxu0 %v934
      %991 = vmatprep.subr.bf16.mxu0 0
      %992 = vmatpush1.bf16.msra.mxu0 %v935
      %993 = vmatprep.subr.bf16.mxu0 0
      %994 = vmatpush1.bf16.msra.mxu0 %v936
      %995 = vmatprep.subr.bf16.mxu0 0
      %996 = vmatpush1.bf16.msra.mxu0 %v937
      %997 = vmatprep.subr.bf16.mxu0 0
      %998 = vmatpush1.bf16.msra.mxu0 %v938
      %999 = vmatprep.subr.bf16.mxu0 0
      %1000 = vmatpush1.bf16.msra.mxu0 %v939
      %1001 = vmatprep.subr.bf16.mxu0 0
      %1002 = vmatpush1.bf16.msra.mxu0 %v940
      %1003 = vmatprep.subr.bf16.mxu0 0
      %1004 = vmatpush1.bf16.msra.mxu0 %v941
      %1005 = vmatprep.subr.bf16.mxu0 0
      %1006 = vmatpush1.bf16.msra.mxu0 %v942
      %1007 = vmatprep.mubr.bf16.mxu0 %v760
      %1008 = vmatmul.mubr.bf16.gmra.mrb[0].mxu0 %v759
      %v1009 = vpop.f32.mrb[0].mxu0
      %v1010 = vadd.f32 0.0, %v1009
      %v1011 = vpop.f32.mrb[0].mxu0
      %v1012 = vpop.f32.mrb[0].mxu0
      %v1013 = vadd.f32 0.0, %v1012
      %v1014 = vpop.f32.mrb[0].mxu0
      %1015 = vmatprep.mubr.bf16.mxu0 %v763
      %1016 = vmatmul.mubr.bf16.gmra.mrb[0].mxu0 %v762
      %v1017 = vpop.f32.mrb[0].mxu0
      %v1018 = vadd.f32 0.0, %v1017
      %v1019 = vpop.f32.mrb[0].mxu0
      %v1020 = vpop.f32.mrb[0].mxu0
      %v1021 = vadd.f32 0.0, %v1020
      %v1022 = vpop.f32.mrb[0].mxu0
      %1023 = vmatprep.mubr.bf16.mxu0 %v766
      %1024 = vmatmul.mubr.bf16.gmra.mrb[0].mxu0 %v765
      %v1025 = vpop.f32.mrb[0].mxu0
      %v1026 = vadd.f32 0.0, %v1025
      %v1027 = vpop.f32.mrb[0].mxu0
      %v1028 = vpop.f32.mrb[0].mxu0
      %v1029 = vadd.f32 0.0, %v1028
      %v1030 = vpop.f32.mrb[0].mxu0
      %1031 = vmatprep.mubr.bf16.mxu0 %v769
      %1032 = vmatmul.mubr.bf16.gmra.mrb[0].mxu0 %v768
      %v1033 = vpop.f32.mrb[0].mxu0
      %v1034 = vadd.f32 0.0, %v1033
      %v1035 = vpop.f32.mrb[0].mxu0
      %v1036 = vpop.f32.mrb[0].mxu0
      %v1037 = vadd.f32 0.0, %v1036
      %v1038 = vpop.f32.mrb[0].mxu0
      %1039 = vmatprep.mubr.bf16.mxu0 %v772
      %1040 = vmatmul.mubr.bf16.gmra.mrb[0].mxu0 %v771
      %v1041 = vpop.f32.mrb[0].mxu0
      %v1042 = vadd.f32 0.0, %v1041
      %v1043 = vpop.f32.mrb[0].mxu0
      %v1044 = vpop.f32.mrb[0].mxu0
      %v1045 = vadd.f32 0.0, %v1044
      %v1046 = vpop.f32.mrb[0].mxu0
      %1047 = vmatprep.mubr.bf16.mxu0 %v775
      %1048 = vmatmul.mubr.bf16.gmra.mrb[0].mxu0 %v774
      %v1049 = vpop.f32.mrb[0].mxu0
      %v1050 = vadd.f32 0.0, %v1049
      %v1051 = vpop.f32.mrb[0].mxu0
      %v1052 = vpop.f32.mrb[0].mxu0
      %v1053 = vadd.f32 0.0, %v1052
      %v1054 = vpop.f32.mrb[0].mxu0
      %1055 = vmatprep.mubr.bf16.mxu0 %v778
      %1056 = vmatmul.mubr.bf16.gmra.mrb[0].mxu0 %v777
      %v1057 = vpop.f32.mrb[0].mxu0
      %v1058 = vadd.f32 0.0, %v1057
      %v1059 = vpop.f32.mrb[0].mxu0
      %v1060 = vpop.f32.mrb[0].mxu0
      %v1061 = vadd.f32 0.0, %v1060
      %v1062 = vpop.f32.mrb[0].mxu0
      %1063 = vmatprep.mubr.bf16.mxu0 %v781
      %1064 = vmatmul.mubr.bf16.gmra.mrb[0].mxu0 %v780
      %v1065 = vpop.f32.mrb[0].mxu0
      %v1066 = vadd.f32 0.0, %v1065
      %v1067 = vpop.f32.mrb[0].mxu0
      %v1068 = vpop.f32.mrb[0].mxu0
      %v1069 = vadd.f32 0.0, %v1068
      %v1070 = vpop.f32.mrb[0].mxu0
      %1071 = vdwg.mxu0
      %1072 = vmatprep.subr.bf16.mxu0 0
      %1073 = vmatpush1.bf16.msra.mxu0 %v943
      %1074 = vmatprep.subr.bf16.mxu0 0
      %1075 = vmatpush1.bf16.msra.mxu0 %v944
      %1076 = vmatprep.subr.bf16.mxu0 0
      %1077 = vmatpush1.bf16.msra.mxu0 %v945
      %1078 = vmatprep.subr.bf16.mxu0 0
      %1079 = vmatpush1.bf16.msra.mxu0 %v946
      %1080 = vmatprep.subr.bf16.mxu0 0
      %1081 = vmatpush1.bf16.msra.mxu0 %v947
      %1082 = vmatprep.subr.bf16.mxu0 0
      %1083 = vmatpush1.bf16.msra.mxu0 %v948
      %1084 = vmatprep.subr.bf16.mxu0 0
      %1085 = vmatpush1.bf16.msra.mxu0 %v949
      %1086 = vmatprep.subr.bf16.mxu0 0
      %1087 = vmatpush1.bf16.msra.mxu0 %v950
      %1088 = vmatprep.subr.bf16.mxu0 0
      %1089 = vmatpush1.bf16.msra.mxu0 0
      %1090 = vmatprep.subr.bf16.mxu0 0
      %1091 = vmatpush1.bf16.msra.mxu0 0
      %1092 = vmatprep.subr.bf16.mxu0 0
      %1093 = vmatpush1.bf16.msra.mxu0 0
      %1094 = vmatprep.subr.bf16.mxu0 0
      %1095 = vmatpush1.bf16.msra.mxu0 0
      %1096 = vmatprep.subr.bf16.mxu0 0
      %1097 = vmatpush1.bf16.msra.mxu0 0
      %1098 = vmatprep.subr.bf16.mxu0 0
      %1099 = vmatpush1.bf16.msra.mxu0 0
      %1100 = vmatprep.subr.bf16.mxu0 0
      %1101 = vmatpush1.bf16.msra.mxu0 0
      %1102 = vmatprep.subr.bf16.mxu0 0
      %1103 = vmatpush1.bf16.msra.mxu0 0
      %1104 = vmatprep.mubr.bf16.mxu0 0
      %1105 = vmatmul.mubr.bf16.gmra.mrb[0].mxu0 %v761
      %v1106 = vpop.f32.mrb[0].mxu0
      %v1107 = vadd.f32 %v1010, %v1106
      %v1108 = vpop.f32.mrb[0].mxu0
      %v1109 = vpop.f32.mrb[0].mxu0
      %v1110 = vadd.f32 %v1013, %v1109
      %v1111 = vpop.f32.mrb[0].mxu0
      %1112 = vmatprep.mubr.bf16.mxu0 0
      %1113 = vmatmul.mubr.bf16.gmra.mrb[0].mxu0 %v764
      %v1114 = vpop.f32.mrb[0].mxu0
      %v1115 = vadd.f32 %v1018, %v1114
      %v1116 = vpop.f32.mrb[0].mxu0
      %v1117 = vpop.f32.mrb[0].mxu0
      %v1118 = vadd.f32 %v1021, %v1117
      %v1119 = vpop.f32.mrb[0].mxu0
      %1120 = vmatprep.mubr.bf16.mxu0 0
      %1121 = vmatmul.mubr.bf16.gmra.mrb[0].mxu0 %v767
      %v1122 = vpop.f32.mrb[0].mxu0
      %v1123 = vadd.f32 %v1026, %v1122
      %v1124 = vpop.f32.mrb[0].mxu0
      %v1125 = vpop.f32.mrb[0].mxu0
      %v1126 = vadd.f32 %v1029, %v1125
      %v1127 = vpop.f32.mrb[0].mxu0
      %1128 = vmatprep.mubr.bf16.mxu0 0
      %1129 = vmatmul.mubr.bf16.gmra.mrb[0].mxu0 %v770
      %v1130 = vpop.f32.mrb[0].mxu0
      %v1131 = vadd.f32 %v1034, %v1130
      %v1132 = vpop.f32.mrb[0].mxu0
      %v1133 = vpop.f32.mrb[0].mxu0
      %v1134 = vadd.f32 %v1037, %v1133
      %v1135 = vpop.f32.mrb[0].mxu0
      %1136 = vmatprep.mubr.bf16.mxu0 0
      %1137 = vmatmul.mubr.bf16.gmra.mrb[0].mxu0 %v773
      %v1138 = vpop.f32.mrb[0].mxu0
      %v1139 = vadd.f32 %v1042, %v1138
      %v1140 = vpop.f32.mrb[0].mxu0
      %v1141 = vpop.f32.mrb[0].mxu0
      %v1142 = vadd.f32 %v1045, %v1141
      %v1143 = vpop.f32.mrb[0].mxu0
      %1144 = vmatprep.mubr.bf16.mxu0 0
      %1145 = vmatmul.mubr.bf16.gmra.mrb[0].mxu0 %v776
      %v1146 = vpop.f32.mrb[0].mxu0
      %v1147 = vadd.f32 %v1050, %v1146
      %v1148 = vpop.f32.mrb[0].mxu0
      %v1149 = vpop.f32.mrb[0].mxu0
      %v1150 = vadd.f32 %v1053, %v1149
      %v1151 = vpop.f32.mrb[0].mxu0
      %1152 = vmatprep.mubr.bf16.mxu0 0
      %1153 = vmatmul.mubr.bf16.gmra.mrb[0].mxu0 %v779
      %v1154 = vpop.f32.mrb[0].mxu0
      %v1155 = vadd.f32 %v1058, %v1154
      %v1156 = vpop.f32.mrb[0].mxu0
      %v1157 = vpop.f32.mrb[0].mxu0
      %v1158 = vadd.f32 %v1061, %v1157
      %v1159 = vpop.f32.mrb[0].mxu0
      %1160 = vmatprep.mubr.bf16.mxu0 0
      %1161 = vmatmul.mubr.bf16.gmra.mrb[0].mxu0 %v782
      %v1162 = vpop.f32.mrb[0].mxu0
      %v1163 = vadd.f32 %v1066, %v1162
      %v1164 = vpop.f32.mrb[0].mxu0
      %v1165 = vpop.f32.mrb[0].mxu0
      %v1166 = vadd.f32 %v1069, %v1165
      %v1167 = vpop.f32.mrb[0].mxu0
      %1168 = vdwg.mxu0
      %1169 = vst [vmem:[#allocation3] sm:$0xff] %v1107
      %1170 = vst [vmem:[#allocation3 + $0x8] sm:$0xff] %v1110
      %1171 = vst [vmem:[#allocation3 + $0x10] sm:$0xff] %v1115
      %1172 = vst [vmem:[#allocation3 + $0x18] sm:$0xff] %v1118
      %1173 = vst [vmem:[#allocation3 + $0x20] sm:$0xff] %v1123
      %1174 = vst [vmem:[#allocation3 + $0x28] sm:$0xff] %v1126
      %1175 = vst [vmem:[#allocation3 + $0x30] sm:$0xff] %v1131
      %1176 = vst [vmem:[#allocation3 + $0x38] sm:$0xff] %v1134
      %1177 = vst [vmem:[#allocation3 + $0x40] sm:$0xff] %v1139
      %1178 = vst [vmem:[#allocation3 + $0x48] sm:$0xff] %v1142
      %1179 = vst [vmem:[#allocation3 + $0x50] sm:$0xff] %v1147
      %1180 = vst [vmem:[#allocation3 + $0x58] sm:$0xff] %v1150
      %1181 = vst [vmem:[#allocation3 + $0x60] sm:$0xff] %v1155
      %1182 = vst [vmem:[#allocation3 + $0x68] sm:$0xff] %v1158
      %1183 = vst [vmem:[#allocation3 + $0x70] sm:$0xff] %v1163
      %1184 = vst [vmem:[#allocation3 + $0x78] sm:$0xff] %v1166
      %v1185 = vld [vmem:[#allocation3] sm:$0xff]
      %v1186 = vld [vmem:[#allocation3 + $0x8] sm:$0xff]
      %v1187 = vld [vmem:[#allocation3 + $0x10] sm:$0xff]
      %v1188 = vld [vmem:[#allocation3 + $0x18] sm:$0xff]
      %v1189 = vld [vmem:[#allocation3 + $0x20] sm:$0xff]
      %v1190 = vld [vmem:[#allocation3 + $0x28] sm:$0xff]
      %v1191 = vld [vmem:[#allocation3 + $0x30] sm:$0xff]
      %v1192 = vld [vmem:[#allocation3 + $0x38] sm:$0xff]
      %v1193 = vld [vmem:[#allocation3 + $0x40] sm:$0xff]
      %v1194 = vld [vmem:[#allocation3 + $0x48] sm:$0xff]
      %v1195 = vld [vmem:[#allocation3 + $0x50] sm:$0xff]
      %v1196 = vld [vmem:[#allocation3 + $0x58] sm:$0xff]
      %v1197 = vld [vmem:[#allocation3 + $0x60] sm:$0xff]
      %v1198 = vld [vmem:[#allocation3 + $0x68] sm:$0xff]
      %v1199 = vld [vmem:[#allocation3 + $0x70] sm:$0xff]
      %v1200 = vld [vmem:[#allocation3 + $0x78] sm:$0xff]
      %v1201 = vld [vmem:[%s540] sm:$0xff]
      %v1202 = vld [vmem:[%s540 + $0x8] sm:$0xff]
      %v1203 = vld [vmem:[%s540 + $0x10] sm:$0xff]
      %v1204 = vld [vmem:[%s540 + $0x18] sm:$0xff]
      %v1205 = vld [vmem:[%s540 + $0x20] sm:$0xff]
      %v1206 = vld [vmem:[%s540 + $0x28] sm:$0xff]
      %v1207 = vld [vmem:[%s540 + $0x30] sm:$0xff]
      %v1208 = vld [vmem:[%s540 + $0x38] sm:$0xff]
      %v1209 = vld [vmem:[%s540 + $0x40] sm:$0xff]
      %v1210 = vld [vmem:[%s540 + $0x48] sm:$0xff]
      %v1211 = vld [vmem:[%s540 + $0x50] sm:$0xff]
      %v1212 = vld [vmem:[%s540 + $0x58] sm:$0xff]
      %v1213 = vld [vmem:[%s540 + $0x60] sm:$0xff]
      %v1214 = vld [vmem:[%s540 + $0x68] sm:$0xff]
      %v1215 = vld [vmem:[%s540 + $0x70] sm:$0xff]
      %v1216 = vld [vmem:[%s540 + $0x78] sm:$0xff]
      %v1217 = vld [vmem:[%s540 + $0x80] sm:$0xff]
      %v1218 = vld [vmem:[%s540 + $0x88] sm:$0xff]
      %v1219 = vld [vmem:[%s540 + $0x90] sm:$0xff]
      %v1220 = vld [vmem:[%s540 + $0x98] sm:$0xff]
      %v1221 = vld [vmem:[%s540 + $0xa0] sm:$0xff]
      %v1222 = vld [vmem:[%s540 + $0xa8] sm:$0xff]
      %v1223 = vld [vmem:[%s540 + $0xb0] sm:$0xff]
      %v1224 = vld [vmem:[%s540 + $0xb8] sm:$0xff]
      %s1225 = scalar_lea.vmem %s4, 192
      %v1226 = vld [vmem:[%s1225] sm:$0xf]
      %v1227 = vld [vmem:[%s1225 + $0x4] sm:$0xf]
      %v1228 = vld [vmem:[%s1225 + $0x8] sm:$0xf]
      %v1229 = vld [vmem:[%s1225 + $0xc] sm:$0xf]
      %v1230 = vld [vmem:[%s1225 + $0x10] sm:$0xf]
      %v1231 = vld [vmem:[%s1225 + $0x14] sm:$0xf]
      %v1232 = vld [vmem:[%s1225 + $0x18] sm:$0xf]
      %v1233 = vld [vmem:[%s1225 + $0x1c] sm:$0xf]
      %v1234 = vld [vmem:[%s1225 + $0x20] sm:$0xf]
      %v1235 = vld [vmem:[%s1225 + $0x24] sm:$0xf]
      %v1236 = vld [vmem:[%s1225 + $0x28] sm:$0xf]
      %v1237 = vld [vmem:[%s1225 + $0x2c] sm:$0xf]
      %v1238 = vld [vmem:[%s1225 + $0x30] sm:$0xf]
      %v1239 = vld [vmem:[%s1225 + $0x34] sm:$0xf]
      %v1240 = vld [vmem:[%s1225 + $0x38] sm:$0xf]
      %v1241 = vld [vmem:[%s1225 + $0x3c] sm:$0xf]
      %v1242 = vld [vmem:[%s1225 + $0x40] sm:$0xf]
      %v1243 = vld [vmem:[%s1225 + $0x44] sm:$0xf]
      %v1244 = vld [vmem:[%s1225 + $0x48] sm:$0xf]
      %v1245 = vld [vmem:[%s1225 + $0x4c] sm:$0xf]
      %v1246 = vld [vmem:[%s1225 + $0x50] sm:$0xf]
      %v1247 = vld [vmem:[%s1225 + $0x54] sm:$0xf]
      %v1248 = vld [vmem:[%s1225 + $0x58] sm:$0xf]
      %v1249 = vld [vmem:[%s1225 + $0x5c] sm:$0xf]
      %v1250 = vld [vmem:[%s1225 + $0x60] sm:$0xf]
      %v1251 = vld [vmem:[%s1225 + $0x64] sm:$0xf]
      %v1252 = vld [vmem:[%s1225 + $0x68] sm:$0xf]
      %v1253 = vld [vmem:[%s1225 + $0x6c] sm:$0xf]
      %v1254 = vld [vmem:[%s1225 + $0x70] sm:$0xf]
      %v1255 = vld [vmem:[%s1225 + $0x74] sm:$0xf]
      %v1256 = vld [vmem:[%s1225 + $0x78] sm:$0xf]
      %v1257 = vld [vmem:[%s1225 + $0x7c] sm:$0xf]
      %v1258 = vld [vmem:[%s1225 + $0x80] sm:$0xf]
      %v1259 = vld [vmem:[%s1225 + $0x84] sm:$0xf]
      %v1260 = vld [vmem:[%s1225 + $0x88] sm:$0xf]
      %v1261 = vld [vmem:[%s1225 + $0x8c] sm:$0xf]
      %v1262 = vld [vmem:[%s1225 + $0x90] sm:$0xf]
      %v1263 = vld [vmem:[%s1225 + $0x94] sm:$0xf]
      %v1264 = vld [vmem:[%s1225 + $0x98] sm:$0xf]
      %v1265 = vld [vmem:[%s1225 + $0x9c] sm:$0xf]
      %v1266 = vld [vmem:[%s1225 + $0xa0] sm:$0xf]
      %v1267 = vld [vmem:[%s1225 + $0xa4] sm:$0xf]
      %v1268 = vld [vmem:[%s1225 + $0xa8] sm:$0xf]
      %v1269 = vld [vmem:[%s1225 + $0xac] sm:$0xf]
      %v1270 = vld [vmem:[%s1225 + $0xb0] sm:$0xf]
      %v1271 = vld [vmem:[%s1225 + $0xb4] sm:$0xf]
      %v1272 = vld [vmem:[%s1225 + $0xb8] sm:$0xf]
      %v1273 = vld [vmem:[%s1225 + $0xbc] sm:$0xf]
      %v1322 = vunpack.c.l.b16 %v1226
      %v1323 = vunpack.c.l.b16 %v1227
      %v1324 = vunpack.c.l.b16 %v1228
      %v1325 = vunpack.c.l.b16 %v1229
      %v1326 = vunpack.c.l.b16 %v1230
      %v1327 = vunpack.c.l.b16 %v1231
      %v1328 = vunpack.c.l.b16 %v1232
      %v1329 = vunpack.c.l.b16 %v1233
      %v1330 = vunpack.c.l.b16 %v1234
      %v1331 = vunpack.c.l.b16 %v1235
      %v1332 = vunpack.c.l.b16 %v1236
      %v1333 = vunpack.c.l.b16 %v1237
      %v1334 = vunpack.c.l.b16 %v1238
      %v1335 = vunpack.c.l.b16 %v1239
      %v1336 = vunpack.c.l.b16 %v1240
      %v1337 = vunpack.c.l.b16 %v1241
      %v1338 = vunpack.c.l.b16 %v1242
      %v1339 = vunpack.c.l.b16 %v1243
      %v1340 = vunpack.c.l.b16 %v1244
      %v1341 = vunpack.c.l.b16 %v1245
      %v1342 = vunpack.c.l.b16 %v1246
      %v1343 = vunpack.c.l.b16 %v1247
      %v1344 = vunpack.c.l.b16 %v1248
      %v1345 = vunpack.c.l.b16 %v1249
      %v1346 = vunpack.c.l.b16 %v1250
      %v1347 = vunpack.c.l.b16 %v1251
      %v1348 = vunpack.c.l.b16 %v1252
      %v1349 = vunpack.c.l.b16 %v1253
      %v1350 = vunpack.c.l.b16 %v1254
      %v1351 = vunpack.c.l.b16 %v1255
      %v1352 = vunpack.c.l.b16 %v1256
      %v1353 = vunpack.c.l.b16 %v1257
      %v1354 = vunpack.c.l.b16 %v1258
      %v1355 = vunpack.c.l.b16 %v1259
      %v1356 = vunpack.c.l.b16 %v1260
      %v1357 = vunpack.c.l.b16 %v1261
      %v1358 = vunpack.c.l.b16 %v1262
      %v1359 = vunpack.c.l.b16 %v1263
      %v1360 = vunpack.c.l.b16 %v1264
      %v1361 = vunpack.c.l.b16 %v1265
      %v1362 = vunpack.c.l.b16 %v1266
      %v1363 = vunpack.c.l.b16 %v1267
      %v1364 = vunpack.c.l.b16 %v1268
      %v1365 = vunpack.c.l.b16 %v1269
      %v1366 = vunpack.c.l.b16 %v1270
      %v1367 = vunpack.c.l.b16 %v1271
      %v1368 = vunpack.c.l.b16 %v1272
      %v1369 = vunpack.c.l.b16 %v1273
      %v1370 = vpack.c.b16 %v1323, %v1322
      %v1371 = vpack.c.b16 %v1325, %v1324
      %v1372 = vpack.c.b16 %v1327, %v1326
      %v1373 = vpack.c.b16 %v1329, %v1328
      %v1374 = vpack.c.b16 %v1331, %v1330
      %v1375 = vpack.c.b16 %v1333, %v1332
      %v1376 = vpack.c.b16 %v1335, %v1334
      %v1377 = vpack.c.b16 %v1337, %v1336
      %v1378 = vpack.c.b16 %v1339, %v1338
      %v1379 = vpack.c.b16 %v1341, %v1340
      %v1380 = vpack.c.b16 %v1343, %v1342
      %v1381 = vpack.c.b16 %v1345, %v1344
      %v1382 = vpack.c.b16 %v1347, %v1346
      %v1383 = vpack.c.b16 %v1349, %v1348
      %v1384 = vpack.c.b16 %v1351, %v1350
      %v1385 = vpack.c.b16 %v1353, %v1352
      %v1386 = vpack.c.b16 %v1355, %v1354
      %v1387 = vpack.c.b16 %v1357, %v1356
      %v1388 = vpack.c.b16 %v1359, %v1358
      %v1389 = vpack.c.b16 %v1361, %v1360
      %v1390 = vpack.c.b16 %v1363, %v1362
      %v1391 = vpack.c.b16 %v1365, %v1364
      %v1392 = vpack.c.b16 %v1367, %v1366
      %v1393 = vpack.c.b16 %v1369, %v1368
      %1418 = vmatprep.subr.bf16.mxu0 0
      %1419 = vmatpush1.bf16.msra.mxu0 %v1370
      %1420 = vmatprep.subr.bf16.mxu0 0
      %1421 = vmatpush1.bf16.msra.mxu0 %v1371
      %1422 = vmatprep.subr.bf16.mxu0 0
      %1423 = vmatpush1.bf16.msra.mxu0 %v1372
      %1424 = vmatprep.subr.bf16.mxu0 0
      %1425 = vmatpush1.bf16.msra.mxu0 %v1373
      %1426 = vmatprep.subr.bf16.mxu0 0
      %1427 = vmatpush1.bf16.msra.mxu0 %v1374
      %1428 = vmatprep.subr.bf16.mxu0 0
      %1429 = vmatpush1.bf16.msra.mxu0 %v1375
      %1430 = vmatprep.subr.bf16.mxu0 0
      %1431 = vmatpush1.bf16.msra.mxu0 %v1376
      %1432 = vmatprep.subr.bf16.mxu0 0
      %1433 = vmatpush1.bf16.msra.mxu0 %v1377
      %1434 = vmatprep.subr.bf16.mxu0 0
      %1435 = vmatpush1.bf16.msra.mxu0 %v1378
      %1436 = vmatprep.subr.bf16.mxu0 0
      %1437 = vmatpush1.bf16.msra.mxu0 %v1379
      %1438 = vmatprep.subr.bf16.mxu0 0
      %1439 = vmatpush1.bf16.msra.mxu0 %v1380
      %1440 = vmatprep.subr.bf16.mxu0 0
      %1441 = vmatpush1.bf16.msra.mxu0 %v1381
      %1442 = vmatprep.subr.bf16.mxu0 0
      %1443 = vmatpush1.bf16.msra.mxu0 %v1382
      %1444 = vmatprep.subr.bf16.mxu0 0
      %1445 = vmatpush1.bf16.msra.mxu0 %v1383
      %1446 = vmatprep.subr.bf16.mxu0 0
      %1447 = vmatpush1.bf16.msra.mxu0 %v1384
      %1448 = vmatprep.subr.bf16.mxu0 0
      %1449 = vmatpush1.bf16.msra.mxu0 %v1385
      %1450 = vmatprep.mubr.bf16.mxu0 %v1202
      %1451 = vmatmul.mubr.bf16.gmra.mrb[0].mxu0 %v1201
      %v1452 = vpop.f32.mrb[0].mxu0
      %v1453 = vadd.f32 0.0, %v1452
      %v1454 = vpop.f32.mrb[0].mxu0
      %v1455 = vpop.f32.mrb[0].mxu0
      %v1456 = vadd.f32 0.0, %v1455
      %v1457 = vpop.f32.mrb[0].mxu0
      %1458 = vmatprep.mubr.bf16.mxu0 %v1205
      %1459 = vmatmul.mubr.bf16.gmra.mrb[0].mxu0 %v1204
      %v1460 = vpop.f32.mrb[0].mxu0
      %v1461 = vadd.f32 0.0, %v1460
      %v1462 = vpop.f32.mrb[0].mxu0
      %v1463 = vpop.f32.mrb[0].mxu0
      %v1464 = vadd.f32 0.0, %v1463
      %v1465 = vpop.f32.mrb[0].mxu0
      %1466 = vmatprep.mubr.bf16.mxu0 %v1208
      %1467 = vmatmul.mubr.bf16.gmra.mrb[0].mxu0 %v1207
      %v1468 = vpop.f32.mrb[0].mxu0
      %v1469 = vadd.f32 0.0, %v1468
      %v1470 = vpop.f32.mrb[0].mxu0
      %v1471 = vpop.f32.mrb[0].mxu0
      %v1472 = vadd.f32 0.0, %v1471
      %v1473 = vpop.f32.mrb[0].mxu0
      %1474 = vmatprep.mubr.bf16.mxu0 %v1211
      %1475 = vmatmul.mubr.bf16.gmra.mrb[0].mxu0 %v1210
      %v1476 = vpop.f32.mrb[0].mxu0
      %v1477 = vadd.f32 0.0, %v1476
      %v1478 = vpop.f32.mrb[0].mxu0
      %v1479 = vpop.f32.mrb[0].mxu0
      %v1480 = vadd.f32 0.0, %v1479
      %v1481 = vpop.f32.mrb[0].mxu0
      %1482 = vmatprep.mubr.bf16.mxu0 %v1214
      %1483 = vmatmul.mubr.bf16.gmra.mrb[0].mxu0 %v1213
      %v1484 = vpop.f32.mrb[0].mxu0
      %v1485 = vadd.f32 0.0, %v1484
      %v1486 = vpop.f32.mrb[0].mxu0
      %v1487 = vpop.f32.mrb[0].mxu0
      %v1488 = vadd.f32 0.0, %v1487
      %v1489 = vpop.f32.mrb[0].mxu0
      %1490 = vmatprep.mubr.bf16.mxu0 %v1217
      %1491 = vmatmul.mubr.bf16.gmra.mrb[0].mxu0 %v1216
      %v1492 = vpop.f32.mrb[0].mxu0
      %v1493 = vadd.f32 0.0, %v1492
      %v1494 = vpop.f32.mrb[0].mxu0
      %v1495 = vpop.f32.mrb[0].mxu0
      %v1496 = vadd.f32 0.0, %v1495
      %v1497 = vpop.f32.mrb[0].mxu0
      %1498 = vmatprep.mubr.bf16.mxu0 %v1220
      %1499 = vmatmul.mubr.bf16.gmra.mrb[0].mxu0 %v1219
      %v1500 = vpop.f32.mrb[0].mxu0
      %v1501 = vadd.f32 0.0, %v1500
      %v1502 = vpop.f32.mrb[0].mxu0
      %v1503 = vpop.f32.mrb[0].mxu0
      %v1504 = vadd.f32 0.0, %v1503
      %v1505 = vpop.f32.mrb[0].mxu0
      %1506 = vmatprep.mubr.bf16.mxu0 %v1223
      %1507 = vmatmul.mubr.bf16.gmra.mrb[0].mxu0 %v1222
      %v1508 = vpop.f32.mrb[0].mxu0
      %v1509 = vadd.f32 0.0, %v1508
      %v1510 = vpop.f32.mrb[0].mxu0
      %v1511 = vpop.f32.mrb[0].mxu0
      %v1512 = vadd.f32 0.0, %v1511
      %v1513 = vpop.f32.mrb[0].mxu0
      %1514 = vdwg.mxu0
      %1515 = vmatprep.subr.bf16.mxu0 0
      %1516 = vmatpush1.bf16.msra.mxu0 %v1386
      %1517 = vmatprep.subr.bf16.mxu0 0
      %1518 = vmatpush1.bf16.msra.mxu0 %v1387
      %1519 = vmatprep.subr.bf16.mxu0 0
      %1520 = vmatpush1.bf16.msra.mxu0 %v1388
      %1521 = vmatprep.subr.bf16.mxu0 0
      %1522 = vmatpush1.bf16.msra.mxu0 %v1389
      %1523 = vmatprep.subr.bf16.mxu0 0
      %1524 = vmatpush1.bf16.msra.mxu0 %v1390
      %1525 = vmatprep.subr.bf16.mxu0 0
      %1526 = vmatpush1.bf16.msra.mxu0 %v1391
      %1527 = vmatprep.subr.bf16.mxu0 0
      %1528 = vmatpush1.bf16.msra.mxu0 %v1392
      %1529 = vmatprep.subr.bf16.mxu0 0
      %1530 = vmatpush1.bf16.msra.mxu0 %v1393
      %1531 = vmatprep.subr.bf16.mxu0 0
      %1532 = vmatpush1.bf16.msra.mxu0 0
      %1533 = vmatprep.subr.bf16.mxu0 0
      %1534 = vmatpush1.bf16.msra.mxu0 0
      %1535 = vmatprep.subr.bf16.mxu0 0
      %1536 = vmatpush1.bf16.msra.mxu0 0
      %1537 = vmatprep.subr.bf16.mxu0 0
      %1538 = vmatpush1.bf16.msra.mxu0 0
      %1539 = vmatprep.subr.bf16.mxu0 0
      %1540 = vmatpush1.bf16.msra.mxu0 0
      %1541 = vmatprep.subr.bf16.mxu0 0
      %1542 = vmatpush1.bf16.msra.mxu0 0
      %1543 = vmatprep.subr.bf16.mxu0 0
      %1544 = vmatpush1.bf16.msra.mxu0 0
      %1545 = vmatprep.subr.bf16.mxu0 0
      %1546 = vmatpush1.bf16.msra.mxu0 0
      %1547 = vmatprep.mubr.bf16.mxu0 0
      %1548 = vmatmul.mubr.bf16.gmra.mrb[0].mxu0 %v1203
      %v1549 = vpop.f32.mrb[0].mxu0
      %v1550 = vadd.f32 %v1453, %v1549
      %v1551 = vpop.f32.mrb[0].mxu0
      %v1552 = vpop.f32.mrb[0].mxu0
      %v1553 = vadd.f32 %v1456, %v1552
      %v1554 = vpop.f32.mrb[0].mxu0
      %1555 = vmatprep.mubr.bf16.mxu0 0
      %1556 = vmatmul.mubr.bf16.gmra.mrb[0].mxu0 %v1206
      %v1557 = vpop.f32.mrb[0].mxu0
      %v1558 = vadd.f32 %v1461, %v1557
      %v1559 = vpop.f32.mrb[0].mxu0
      %v1560 = vpop.f32.mrb[0].mxu0
      %v1561 = vadd.f32 %v1464, %v1560
      %v1562 = vpop.f32.mrb[0].mxu0
      %1563 = vmatprep.mubr.bf16.mxu0 0
      %1564 = vmatmul.mubr.bf16.gmra.mrb[0].mxu0 %v1209
      %v1565 = vpop.f32.mrb[0].mxu0
      %v1566 = vadd.f32 %v1469, %v1565
      %v1567 = vpop.f32.mrb[0].mxu0
      %v1568 = vpop.f32.mrb[0].mxu0
      %v1569 = vadd.f32 %v1472, %v1568
      %v1570 = vpop.f32.mrb[0].mxu0
      %1571 = vmatprep.mubr.bf16.mxu0 0
      %1572 = vmatmul.mubr.bf16.gmra.mrb[0].mxu0 %v1212
      %v1573 = vpop.f32.mrb[0].mxu0
      %v1574 = vadd.f32 %v1477, %v1573
      %v1575 = vpop.f32.mrb[0].mxu0
      %v1576 = vpop.f32.mrb[0].mxu0
      %v1577 = vadd.f32 %v1480, %v1576
      %v1578 = vpop.f32.mrb[0].mxu0
      %1579 = vmatprep.mubr.bf16.mxu0 0
      %1580 = vmatmul.mubr.bf16.gmra.mrb[0].mxu0 %v1215
      %v1581 = vpop.f32.mrb[0].mxu0
      %v1582 = vadd.f32 %v1485, %v1581
      %v1583 = vpop.f32.mrb[0].mxu0
      %v1584 = vpop.f32.mrb[0].mxu0
      %v1585 = vadd.f32 %v1488, %v1584
      %v1586 = vpop.f32.mrb[0].mxu0
      %1587 = vmatprep.mubr.bf16.mxu0 0
      %1588 = vmatmul.mubr.bf16.gmra.mrb[0].mxu0 %v1218
      %v1589 = vpop.f32.mrb[0].mxu0
      %v1590 = vadd.f32 %v1493, %v1589
      %v1591 = vpop.f32.mrb[0].mxu0
      %v1592 = vpop.f32.mrb[0].mxu0
      %v1593 = vadd.f32 %v1496, %v1592
      %v1594 = vpop.f32.mrb[0].mxu0
      %1595 = vmatprep.mubr.bf16.mxu0 0
      %1596 = vmatmul.mubr.bf16.gmra.mrb[0].mxu0 %v1221
      %v1597 = vpop.f32.mrb[0].mxu0
      %v1598 = vadd.f32 %v1501, %v1597
      %v1599 = vpop.f32.mrb[0].mxu0
      %v1600 = vpop.f32.mrb[0].mxu0
      %v1601 = vadd.f32 %v1504, %v1600
      %v1602 = vpop.f32.mrb[0].mxu0
      %1603 = vmatprep.mubr.bf16.mxu0 0
      %1604 = vmatmul.mubr.bf16.gmra.mrb[0].mxu0 %v1224
      %v1605 = vpop.f32.mrb[0].mxu0
      %v1606 = vadd.f32 %v1509, %v1605
      %v1607 = vpop.f32.mrb[0].mxu0
      %v1608 = vpop.f32.mrb[0].mxu0
      %v1609 = vadd.f32 %v1512, %v1608
      %v1610 = vpop.f32.mrb[0].mxu0
      %1611 = vdwg.mxu0
      %v1612 = vadd.f32 %v1185, %v1550
      %v1613 = vadd.f32 %v1186, %v1553
      %v1614 = vadd.f32 %v1187, %v1558
      %v1615 = vadd.f32 %v1188, %v1561
      %v1616 = vadd.f32 %v1189, %v1566
      %v1617 = vadd.f32 %v1190, %v1569
      %v1618 = vadd.f32 %v1191, %v1574
      %v1619 = vadd.f32 %v1192, %v1577
      %v1620 = vadd.f32 %v1193, %v1582
      %v1621 = vadd.f32 %v1194, %v1585
      %v1622 = vadd.f32 %v1195, %v1590
      %v1623 = vadd.f32 %v1196, %v1593
      %v1624 = vadd.f32 %v1197, %v1598
      %v1625 = vadd.f32 %v1198, %v1601
      %v1626 = vadd.f32 %v1199, %v1606
      %v1627 = vadd.f32 %v1200, %v1609
      %1628 = vst [vmem:[#allocation3] sm:$0xff] %v1612
      %1629 = vst [vmem:[#allocation3 + $0x8] sm:$0xff] %v1613
      %1630 = vst [vmem:[#allocation3 + $0x10] sm:$0xff] %v1614
      %1631 = vst [vmem:[#allocation3 + $0x18] sm:$0xff] %v1615
      %1632 = vst [vmem:[#allocation3 + $0x20] sm:$0xff] %v1616
      %1633 = vst [vmem:[#allocation3 + $0x28] sm:$0xff] %v1617
      %1634 = vst [vmem:[#allocation3 + $0x30] sm:$0xff] %v1618
      %1635 = vst [vmem:[#allocation3 + $0x38] sm:$0xff] %v1619
      %1636 = vst [vmem:[#allocation3 + $0x40] sm:$0xff] %v1620
      %1637 = vst [vmem:[#allocation3 + $0x48] sm:$0xff] %v1621
      %1638 = vst [vmem:[#allocation3 + $0x50] sm:$0xff] %v1622
      %1639 = vst [vmem:[#allocation3 + $0x58] sm:$0xff] %v1623
      %1640 = vst [vmem:[#allocation3 + $0x60] sm:$0xff] %v1624
      %1641 = vst [vmem:[#allocation3 + $0x68] sm:$0xff] %v1625
      %1642 = vst [vmem:[#allocation3 + $0x70] sm:$0xff] %v1626
      %1643 = vst [vmem:[#allocation3 + $0x78] sm:$0xff] %v1627
      %v1644 = vld [vmem:[#allocation3] sm:$0xff]
      %v1645 = vld [vmem:[#allocation3 + $0x8] sm:$0xff]
      %v1646 = vld [vmem:[#allocation3 + $0x10] sm:$0xff]
      %v1647 = vld [vmem:[#allocation3 + $0x18] sm:$0xff]
      %v1648 = vld [vmem:[#allocation3 + $0x20] sm:$0xff]
      %v1649 = vld [vmem:[#allocation3 + $0x28] sm:$0xff]
      %v1650 = vld [vmem:[#allocation3 + $0x30] sm:$0xff]
      %v1651 = vld [vmem:[#allocation3 + $0x38] sm:$0xff]
      %v1652 = vld [vmem:[#allocation3 + $0x40] sm:$0xff]
      %v1653 = vld [vmem:[#allocation3 + $0x48] sm:$0xff]
      %v1654 = vld [vmem:[#allocation3 + $0x50] sm:$0xff]
      %v1655 = vld [vmem:[#allocation3 + $0x58] sm:$0xff]
      %v1656 = vld [vmem:[#allocation3 + $0x60] sm:$0xff]
      %v1657 = vld [vmem:[#allocation3 + $0x68] sm:$0xff]
      %v1658 = vld [vmem:[#allocation3 + $0x70] sm:$0xff]
      %v1659 = vld [vmem:[#allocation3 + $0x78] sm:$0xff]
      %s1660 = scalar_lea.vmem [#allocation2], 48
      %v1661 = vld [vmem:[%s1660] sm:$0xff]
      %v1662 = vld [vmem:[%s1660 + $0x8] sm:$0xff]
      %v1663 = vld [vmem:[%s1660 + $0x10] sm:$0xff]
      %v1664 = vld [vmem:[%s1660 + $0x18] sm:$0xff]
      %v1665 = vld [vmem:[%s1660 + $0x20] sm:$0xff]
      %v1666 = vld [vmem:[%s1660 + $0x28] sm:$0xff]
      %v1667 = vld [vmem:[%s1660 + $0x30] sm:$0xff]
      %v1668 = vld [vmem:[%s1660 + $0x38] sm:$0xff]
      %v1669 = vld [vmem:[%s1660 + $0x40] sm:$0xff]
      %v1670 = vld [vmem:[%s1660 + $0x48] sm:$0xff]
      %v1671 = vld [vmem:[%s1660 + $0x50] sm:$0xff]
      %v1672 = vld [vmem:[%s1660 + $0x58] sm:$0xff]
      %v1673 = vld [vmem:[%s1660 + $0x60] sm:$0xff]
      %v1674 = vld [vmem:[%s1660 + $0x68] sm:$0xff]
      %v1675 = vld [vmem:[%s1660 + $0x70] sm:$0xff]
      %v1676 = vld [vmem:[%s1660 + $0x78] sm:$0xff]
      %v1677 = vld [vmem:[%s1660 + $0x80] sm:$0xff]
      %v1678 = vld [vmem:[%s1660 + $0x88] sm:$0xff]
      %v1679 = vld [vmem:[%s1660 + $0x90] sm:$0xff]
      %v1680 = vld [vmem:[%s1660 + $0x98] sm:$0xff]
      %v1681 = vld [vmem:[%s1660 + $0xa0] sm:$0xff]
      %v1682 = vld [vmem:[%s1660 + $0xa8] sm:$0xff]
      %v1683 = vld [vmem:[%s1660 + $0xb0] sm:$0xff]
      %v1684 = vld [vmem:[%s1660 + $0xb8] sm:$0xff]
      %s1685 = scalar_lea.vmem %s4, 384
      %v1686 = vld [vmem:[%s1685] sm:$0xf]
      %v1687 = vld [vmem:[%s1685 + $0x4] sm:$0xf]
      %v1688 = vld [vmem:[%s1685 + $0x8] sm:$0xf]
      %v1689 = vld [vmem:[%s1685 + $0xc] sm:$0xf]
      %v1690 = vld [vmem:[%s1685 + $0x10] sm:$0xf]
      %v1691 = vld [vmem:[%s1685 + $0x14] sm:$0xf]
      %v1692 = vld [vmem:[%s1685 + $0x18] sm:$0xf]
      %v1693 = vld [vmem:[%s1685 + $0x1c] sm:$0xf]
      %v1694 = vld [vmem:[%s1685 + $0x20] sm:$0xf]
      %v1695 = vld [vmem:[%s1685 + $0x24] sm:$0xf]
      %v1696 = vld [vmem:[%s1685 + $0x28] sm:$0xf]
      %v1697 = vld [vmem:[%s1685 + $0x2c] sm:$0xf]
      %v1698 = vld [vmem:[%s1685 + $0x30] sm:$0xf]
      %v1699 = vld [vmem:[%s1685 + $0x34] sm:$0xf]
      %v1700 = vld [vmem:[%s1685 + $0x38] sm:$0xf]
      %v1701 = vld [vmem:[%s1685 + $0x3c] sm:$0xf]
      %v1702 = vld [vmem:[%s1685 + $0x40] sm:$0xf]
      %v1703 = vld [vmem:[%s1685 + $0x44] sm:$0xf]
      %v1704 = vld [vmem:[%s1685 + $0x48] sm:$0xf]
      %v1705 = vld [vmem:[%s1685 + $0x4c] sm:$0xf]
      %v1706 = vld [vmem:[%s1685 + $0x50] sm:$0xf]
      %v1707 = vld [vmem:[%s1685 + $0x54] sm:$0xf]
      %v1708 = vld [vmem:[%s1685 + $0x58] sm:$0xf]
      %v1709 = vld [vmem:[%s1685 + $0x5c] sm:$0xf]
      %v1710 = vld [vmem:[%s1685 + $0x60] sm:$0xf]
      %v1711 = vld [vmem:[%s1685 + $0x64] sm:$0xf]
      %v1712 = vld [vmem:[%s1685 + $0x68] sm:$0xf]
      %v1713 = vld [vmem:[%s1685 + $0x6c] sm:$0xf]
      %v1714 = vld [vmem:[%s1685 + $0x70] sm:$0xf]
      %v1715 = vld [vmem:[%s1685 + $0x74] sm:$0xf]
      %v1716 = vld [vmem:[%s1685 + $0x78] sm:$0xf]
      %v1717 = vld [vmem:[%s1685 + $0x7c] sm:$0xf]
      %v1718 = vld [vmem:[%s1685 + $0x80] sm:$0xf]
      %v1719 = vld [vmem:[%s1685 + $0x84] sm:$0xf]
      %v1720 = vld [vmem:[%s1685 + $0x88] sm:$0xf]
      %v1721 = vld [vmem:[%s1685 + $0x8c] sm:$0xf]
      %v1722 = vld [vmem:[%s1685 + $0x90] sm:$0xf]
      %v1723 = vld [vmem:[%s1685 + $0x94] sm:$0xf]
      %v1724 = vld [vmem:[%s1685 + $0x98] sm:$0xf]
      %v1725 = vld [vmem:[%s1685 + $0x9c] sm:$0xf]
      %v1726 = vld [vmem:[%s1685 + $0xa0] sm:$0xf]
      %v1727 = vld [vmem:[%s1685 + $0xa4] sm:$0xf]
      %v1728 = vld [vmem:[%s1685 + $0xa8] sm:$0xf]
      %v1729 = vld [vmem:[%s1685 + $0xac] sm:$0xf]
      %v1730 = vld [vmem:[%s1685 + $0xb0] sm:$0xf]
      %v1731 = vld [vmem:[%s1685 + $0xb4] sm:$0xf]
      %v1732 = vld [vmem:[%s1685 + $0xb8] sm:$0xf]
      %v1733 = vld [vmem:[%s1685 + $0xbc] sm:$0xf]
      %v1782 = vunpack.c.l.b16 %v1686
      %v1783 = vunpack.c.l.b16 %v1687
      %v1784 = vunpack.c.l.b16 %v1688
      %v1785 = vunpack.c.l.b16 %v1689
      %v1786 = vunpack.c.l.b16 %v1690
      %v1787 = vunpack.c.l.b16 %v1691
      %v1788 = vunpack.c.l.b16 %v1692
      %v1789 = vunpack.c.l.b16 %v1693
      %v1790 = vunpack.c.l.b16 %v1694
      %v1791 = vunpack.c.l.b16 %v1695
      %v1792 = vunpack.c.l.b16 %v1696
      %v1793 = vunpack.c.l.b16 %v1697
      %v1794 = vunpack.c.l.b16 %v1698
      %v1795 = vunpack.c.l.b16 %v1699
      %v1796 = vunpack.c.l.b16 %v1700
      %v1797 = vunpack.c.l.b16 %v1701
      %v1798 = vunpack.c.l.b16 %v1702
      %v1799 = vunpack.c.l.b16 %v1703
      %v1800 = vunpack.c.l.b16 %v1704
      %v1801 = vunpack.c.l.b16 %v1705
      %v1802 = vunpack.c.l.b16 %v1706
      %v1803 = vunpack.c.l.b16 %v1707
      %v1804 = vunpack.c.l.b16 %v1708
      %v1805 = vunpack.c.l.b16 %v1709
      %v1806 = vunpack.c.l.b16 %v1710
      %v1807 = vunpack.c.l.b16 %v1711
      %v1808 = vunpack.c.l.b16 %v1712
      %v1809 = vunpack.c.l.b16 %v1713
      %v1810 = vunpack.c.l.b16 %v1714
      %v1811 = vunpack.c.l.b16 %v1715
      %v1812 = vunpack.c.l.b16 %v1716
      %v1813 = vunpack.c.l.b16 %v1717
      %v1814 = vunpack.c.l.b16 %v1718
      %v1815 = vunpack.c.l.b16 %v1719
      %v1816 = vunpack.c.l.b16 %v1720
      %v1817 = vunpack.c.l.b16 %v1721
      %v1818 = vunpack.c.l.b16 %v1722
      %v1819 = vunpack.c.l.b16 %v1723
      %v1820 = vunpack.c.l.b16 %v1724
      %v1821 = vunpack.c.l.b16 %v1725
      %v1822 = vunpack.c.l.b16 %v1726
      %v1823 = vunpack.c.l.b16 %v1727
      %v1824 = vunpack.c.l.b16 %v1728
      %v1825 = vunpack.c.l.b16 %v1729
      %v1826 = vunpack.c.l.b16 %v1730
      %v1827 = vunpack.c.l.b16 %v1731
      %v1828 = vunpack.c.l.b16 %v1732
      %v1829 = vunpack.c.l.b16 %v1733
      %v1830 = vpack.c.b16 %v1783, %v1782
      %v1831 = vpack.c.b16 %v1785, %v1784
      %v1832 = vpack.c.b16 %v1787, %v1786
      %v1833 = vpack.c.b16 %v1789, %v1788
      %v1834 = vpack.c.b16 %v1791, %v1790
      %v1835 = vpack.c.b16 %v1793, %v1792
      %v1836 = vpack.c.b16 %v1795, %v1794
      %v1837 = vpack.c.b16 %v1797, %v1796
      %v1838 = vpack.c.b16 %v1799, %v1798
      %v1839 = vpack.c.b16 %v1801, %v1800
      %v1840 = vpack.c.b16 %v1803, %v1802
      %v1841 = vpack.c.b16 %v1805, %v1804
      %v1842 = vpack.c.b16 %v1807, %v1806
      %v1843 = vpack.c.b16 %v1809, %v1808
      %v1844 = vpack.c.b16 %v1811, %v1810
      %v1845 = vpack.c.b16 %v1813, %v1812
      %v1846 = vpack.c.b16 %v1815, %v1814
      %v1847 = vpack.c.b16 %v1817, %v1816
      %v1848 = vpack.c.b16 %v1819, %v1818
      %v1849 = vpack.c.b16 %v1821, %v1820
      %v1850 = vpack.c.b16 %v1823, %v1822
      %v1851 = vpack.c.b16 %v1825, %v1824
      %v1852 = vpack.c.b16 %v1827, %v1826
      %v1853 = vpack.c.b16 %v1829, %v1828
      %1878 = vmatprep.subr.bf16.mxu0 0
      %1879 = vmatpush1.bf16.msra.mxu0 %v1830
      %1880 = vmatprep.subr.bf16.mxu0 0
      %1881 = vmatpush1.bf16.msra.mxu0 %v1831
      %1882 = vmatprep.subr.bf16.mxu0 0
      %1883 = vmatpush1.bf16.msra.mxu0 %v1832
      %1884 = vmatprep.subr.bf16.mxu0 0
      %1885 = vmatpush1.bf16.msra.mxu0 %v1833
      %1886 = vmatprep.subr.bf16.mxu0 0
      %1887 = vmatpush1.bf16.msra.mxu0 %v1834
      %1888 = vmatprep.subr.bf16.mxu0 0
      %1889 = vmatpush1.bf16.msra.mxu0 %v1835
      %1890 = vmatprep.subr.bf16.mxu0 0
      %1891 = vmatpush1.bf16.msra.mxu0 %v1836
      %1892 = vmatprep.subr.bf16.mxu0 0
      %1893 = vmatpush1.bf16.msra.mxu0 %v1837
      %1894 = vmatprep.subr.bf16.mxu0 0
      %1895 = vmatpush1.bf16.msra.mxu0 %v1838
      %1896 = vmatprep.subr.bf16.mxu0 0
      %1897 = vmatpush1.bf16.msra.mxu0 %v1839
      %1898 = vmatprep.subr.bf16.mxu0 0
      %1899 = vmatpush1.bf16.msra.mxu0 %v1840
      %1900 = vmatprep.subr.bf16.mxu0 0
      %1901 = vmatpush1.bf16.msra.mxu0 %v1841
      %1902 = vmatprep.subr.bf16.mxu0 0
      %1903 = vmatpush1.bf16.msra.mxu0 %v1842
      %1904 = vmatprep.subr.bf16.mxu0 0
      %1905 = vmatpush1.bf16.msra.mxu0 %v1843
      %1906 = vmatprep.subr.bf16.mxu0 0
      %1907 = vmatpush1.bf16.msra.mxu0 %v1844
      %1908 = vmatprep.subr.bf16.mxu0 0
      %1909 = vmatpush1.bf16.msra.mxu0 %v1845
      %1910 = vmatprep.mubr.bf16.mxu0 %v1662
      %1911 = vmatmul.mubr.bf16.gmra.mrb[0].mxu0 %v1661
      %v1912 = vpop.f32.mrb[0].mxu0
      %v1913 = vadd.f32 0.0, %v1912
      %v1914 = vpop.f32.mrb[0].mxu0
      %v1915 = vpop.f32.mrb[0].mxu0
      %v1916 = vadd.f32 0.0, %v1915
      %v1917 = vpop.f32.mrb[0].mxu0
      %1918 = vmatprep.mubr.bf16.mxu0 %v1665
      %1919 = vmatmul.mubr.bf16.gmra.mrb[0].mxu0 %v1664
      %v1920 = vpop.f32.mrb[0].mxu0
      %v1921 = vadd.f32 0.0, %v1920
      %v1922 = vpop.f32.mrb[0].mxu0
      %v1923 = vpop.f32.mrb[0].mxu0
      %v1924 = vadd.f32 0.0, %v1923
      %v1925 = vpop.f32.mrb[0].mxu0
      %1926 = vmatprep.mubr.bf16.mxu0 %v1668
      %1927 = vmatmul.mubr.bf16.gmra.mrb[0].mxu0 %v1667
      %v1928 = vpop.f32.mrb[0].mxu0
      %v1929 = vadd.f32 0.0, %v1928
      %v1930 = vpop.f32.mrb[0].mxu0
      %v1931 = vpop.f32.mrb[0].mxu0
      %v1932 = vadd.f32 0.0, %v1931
      %v1933 = vpop.f32.mrb[0].mxu0
      %1934 = vmatprep.mubr.bf16.mxu0 %v1671
      %1935 = vmatmul.mubr.bf16.gmra.mrb[0].mxu0 %v1670
      %v1936 = vpop.f32.mrb[0].mxu0
      %v1937 = vadd.f32 0.0, %v1936
      %v1938 = vpop.f32.mrb[0].mxu0
      %v1939 = vpop.f32.mrb[0].mxu0
      %v1940 = vadd.f32 0.0, %v1939
      %v1941 = vpop.f32.mrb[0].mxu0
      %1942 = vmatprep.mubr.bf16.mxu0 %v1674
      %1943 = vmatmul.mubr.bf16.gmra.mrb[0].mxu0 %v1673
      %v1944 = vpop.f32.mrb[0].mxu0
      %v1945 = vadd.f32 0.0, %v1944
      %v1946 = vpop.f32.mrb[0].mxu0
      %v1947 = vpop.f32.mrb[0].mxu0
      %v1948 = vadd.f32 0.0, %v1947
      %v1949 = vpop.f32.mrb[0].mxu0
      %1950 = vmatprep.mubr.bf16.mxu0 %v1677
      %1951 = vmatmul.mubr.bf16.gmra.mrb[0].mxu0 %v1676
      %v1952 = vpop.f32.mrb[0].mxu0
      %v1953 = vadd.f32 0.0, %v1952
      %v1954 = vpop.f32.mrb[0].mxu0
      %v1955 = vpop.f32.mrb[0].mxu0
      %v1956 = vadd.f32 0.0, %v1955
      %v1957 = vpop.f32.mrb[0].mxu0
      %1958 = vmatprep.mubr.bf16.mxu0 %v1680
      %1959 = vmatmul.mubr.bf16.gmra.mrb[0].mxu0 %v1679
      %v1960 = vpop.f32.mrb[0].mxu0
      %v1961 = vadd.f32 0.0, %v1960
      %v1962 = vpop.f32.mrb[0].mxu0
      %v1963 = vpop.f32.mrb[0].mxu0
      %v1964 = vadd.f32 0.0, %v1963
      %v1965 = vpop.f32.mrb[0].mxu0
      %1966 = vmatprep.mubr.bf16.mxu0 %v1683
      %1967 = vmatmul.mubr.bf16.gmra.mrb[0].mxu0 %v1682
      %v1968 = vpop.f32.mrb[0].mxu0
      %v1969 = vadd.f32 0.0, %v1968
      %v1970 = vpop.f32.mrb[0].mxu0
      %v1971 = vpop.f32.mrb[0].mxu0
      %v1972 = vadd.f32 0.0, %v1971
      %v1973 = vpop.f32.mrb[0].mxu0
      %1974 = vdwg.mxu0
      %1975 = vmatprep.subr.bf16.mxu0 0
      %1976 = vmatpush1.bf16.msra.mxu0 %v1846
      %1977 = vmatprep.subr.bf16.mxu0 0
      %1978 = vmatpush1.bf16.msra.mxu0 %v1847
      %1979 = vmatprep.subr.bf16.mxu0 0
      %1980 = vmatpush1.bf16.msra.mxu0 %v1848
      %1981 = vmatprep.subr.bf16.mxu0 0
      %1982 = vmatpush1.bf16.msra.mxu0 %v1849
      %1983 = vmatprep.subr.bf16.mxu0 0
      %1984 = vmatpush1.bf16.msra.mxu0 %v1850
      %1985 = vmatprep.subr.bf16.mxu0 0
      %1986 = vmatpush1.bf16.msra.mxu0 %v1851
      %1987 = vmatprep.subr.bf16.mxu0 0
      %1988 = vmatpush1.bf16.msra.mxu0 %v1852
      %1989 = vmatprep.subr.bf16.mxu0 0
      %1990 = vmatpush1.bf16.msra.mxu0 %v1853
      %1991 = vmatprep.subr.bf16.mxu0 0
      %1992 = vmatpush1.bf16.msra.mxu0 0
      %1993 = vmatprep.subr.bf16.mxu0 0
      %1994 = vmatpush1.bf16.msra.mxu0 0
      %1995 = vmatprep.subr.bf16.mxu0 0
      %1996 = vmatpush1.bf16.msra.mxu0 0
      %1997 = vmatprep.subr.bf16.mxu0 0
      %1998 = vmatpush1.bf16.msra.mxu0 0
      %1999 = vmatprep.subr.bf16.mxu0 0
      %2000 = vmatpush1.bf16.msra.mxu0 0
      %2001 = vmatprep.subr.bf16.mxu0 0
      %2002 = vmatpush1.bf16.msra.mxu0 0
      %2003 = vmatprep.subr.bf16.mxu0 0
      %2004 = vmatpush1.bf16.msra.mxu0 0
      %2005 = vmatprep.subr.bf16.mxu0 0
      %2006 = vmatpush1.bf16.msra.mxu0 0
      %2007 = vmatprep.mubr.bf16.mxu0 0
      %2008 = vmatmul.mubr.bf16.gmra.mrb[0].mxu0 %v1663
      %v2009 = vpop.f32.mrb[0].mxu0
      %v2010 = vadd.f32 %v1913, %v2009
      %v2011 = vpop.f32.mrb[0].mxu0
      %v2012 = vpop.f32.mrb[0].mxu0
      %v2013 = vadd.f32 %v1916, %v2012
      %v2014 = vpop.f32.mrb[0].mxu0
      %2015 = vmatprep.mubr.bf16.mxu0 0
      %2016 = vmatmul.mubr.bf16.gmra.mrb[0].mxu0 %v1666
      %v2017 = vpop.f32.mrb[0].mxu0
      %v2018 = vadd.f32 %v1921, %v2017
      %v2019 = vpop.f32.mrb[0].mxu0
      %v2020 = vpop.f32.mrb[0].mxu0
      %v2021 = vadd.f32 %v1924, %v2020
      %v2022 = vpop.f32.mrb[0].mxu0
      %2023 = vmatprep.mubr.bf16.mxu0 0
      %2024 = vmatmul.mubr.bf16.gmra.mrb[0].mxu0 %v1669
      %v2025 = vpop.f32.mrb[0].mxu0
      %v2026 = vadd.f32 %v1929, %v2025
      %v2027 = vpop.f32.mrb[0].mxu0
      %v2028 = vpop.f32.mrb[0].mxu0
      %v2029 = vadd.f32 %v1932, %v2028
      %v2030 = vpop.f32.mrb[0].mxu0
      %2031 = vmatprep.mubr.bf16.mxu0 0
      %2032 = vmatmul.mubr.bf16.gmra.mrb[0].mxu0 %v1672
      %v2033 = vpop.f32.mrb[0].mxu0
      %v2034 = vadd.f32 %v1937, %v2033
      %v2035 = vpop.f32.mrb[0].mxu0
      %v2036 = vpop.f32.mrb[0].mxu0
      %v2037 = vadd.f32 %v1940, %v2036
      %v2038 = vpop.f32.mrb[0].mxu0
      %2039 = vmatprep.mubr.bf16.mxu0 0
      %2040 = vmatmul.mubr.bf16.gmra.mrb[0].mxu0 %v1675
      %v2041 = vpop.f32.mrb[0].mxu0
      %v2042 = vadd.f32 %v1945, %v2041
      %v2043 = vpop.f32.mrb[0].mxu0
      %v2044 = vpop.f32.mrb[0].mxu0
      %v2045 = vadd.f32 %v1948, %v2044
      %v2046 = vpop.f32.mrb[0].mxu0
      %2047 = vmatprep.mubr.bf16.mxu0 0
      %2048 = vmatmul.mubr.bf16.gmra.mrb[0].mxu0 %v1678
      %v2049 = vpop.f32.mrb[0].mxu0
      %v2050 = vadd.f32 %v1953, %v2049
      %v2051 = vpop.f32.mrb[0].mxu0
      %v2052 = vpop.f32.mrb[0].mxu0
      %v2053 = vadd.f32 %v1956, %v2052
      %v2054 = vpop.f32.mrb[0].mxu0
      %2055 = vmatprep.mubr.bf16.mxu0 0
      %2056 = vmatmul.mubr.bf16.gmra.mrb[0].mxu0 %v1681
      %v2057 = vpop.f32.mrb[0].mxu0
      %v2058 = vadd.f32 %v1961, %v2057
      %v2059 = vpop.f32.mrb[0].mxu0
      %v2060 = vpop.f32.mrb[0].mxu0
      %v2061 = vadd.f32 %v1964, %v2060
      %v2062 = vpop.f32.mrb[0].mxu0
      %2063 = vmatprep.mubr.bf16.mxu0 0
      %2064 = vmatmul.mubr.bf16.gmra.mrb[0].mxu0 %v1684
      %v2065 = vpop.f32.mrb[0].mxu0
      %v2066 = vadd.f32 %v1969, %v2065
      %v2067 = vpop.f32.mrb[0].mxu0
      %v2068 = vpop.f32.mrb[0].mxu0
      %v2069 = vadd.f32 %v1972, %v2068
      %v2070 = vpop.f32.mrb[0].mxu0
      %2071 = vdwg.mxu0
      %v2072 = vadd.f32 %v1644, %v2010
      %v2073 = vadd.f32 %v1645, %v2013
      %v2074 = vadd.f32 %v1646, %v2018
      %v2075 = vadd.f32 %v1647, %v2021
      %v2076 = vadd.f32 %v1648, %v2026
      %v2077 = vadd.f32 %v1649, %v2029
      %v2078 = vadd.f32 %v1650, %v2034
      %v2079 = vadd.f32 %v1651, %v2037
      %v2080 = vadd.f32 %v1652, %v2042
      %v2081 = vadd.f32 %v1653, %v2045
      %v2082 = vadd.f32 %v1654, %v2050
      %v2083 = vadd.f32 %v1655, %v2053
      %v2084 = vadd.f32 %v1656, %v2058
      %v2085 = vadd.f32 %v1657, %v2061
      %v2086 = vadd.f32 %v1658, %v2066
      %v2087 = vadd.f32 %v1659, %v2069
      %2088 = vst [vmem:[#allocation3] sm:$0xff] %v2072
      %2089 = vst [vmem:[#allocation3 + $0x8] sm:$0xff] %v2073
      %2090 = vst [vmem:[#allocation3 + $0x10] sm:$0xff] %v2074
      %2091 = vst [vmem:[#allocation3 + $0x18] sm:$0xff] %v2075
      %2092 = vst [vmem:[#allocation3 + $0x20] sm:$0xff] %v2076
      %2093 = vst [vmem:[#allocation3 + $0x28] sm:$0xff] %v2077
      %2094 = vst [vmem:[#allocation3 + $0x30] sm:$0xff] %v2078
      %2095 = vst [vmem:[#allocation3 + $0x38] sm:$0xff] %v2079
      %2096 = vst [vmem:[#allocation3 + $0x40] sm:$0xff] %v2080
      %2097 = vst [vmem:[#allocation3 + $0x48] sm:$0xff] %v2081
      %2098 = vst [vmem:[#allocation3 + $0x50] sm:$0xff] %v2082
      %2099 = vst [vmem:[#allocation3 + $0x58] sm:$0xff] %v2083
      %2100 = vst [vmem:[#allocation3 + $0x60] sm:$0xff] %v2084
      %2101 = vst [vmem:[#allocation3 + $0x68] sm:$0xff] %v2085
      %2102 = vst [vmem:[#allocation3 + $0x70] sm:$0xff] %v2086
      %2103 = vst [vmem:[#allocation3 + $0x78] sm:$0xff] %v2087
      %v2104 = vld [vmem:[#allocation3] sm:$0xff]
      %v2105 = vld [vmem:[#allocation3 + $0x8] sm:$0xff]
      %v2106 = vld [vmem:[#allocation3 + $0x10] sm:$0xff]
      %v2107 = vld [vmem:[#allocation3 + $0x18] sm:$0xff]
      %v2108 = vld [vmem:[#allocation3 + $0x20] sm:$0xff]
      %v2109 = vld [vmem:[#allocation3 + $0x28] sm:$0xff]
      %v2110 = vld [vmem:[#allocation3 + $0x30] sm:$0xff]
      %v2111 = vld [vmem:[#allocation3 + $0x38] sm:$0xff]
      %v2112 = vld [vmem:[#allocation3 + $0x40] sm:$0xff]
      %v2113 = vld [vmem:[#allocation3 + $0x48] sm:$0xff]
      %v2114 = vld [vmem:[#allocation3 + $0x50] sm:$0xff]
      %v2115 = vld [vmem:[#allocation3 + $0x58] sm:$0xff]
      %v2116 = vld [vmem:[#allocation3 + $0x60] sm:$0xff]
      %v2117 = vld [vmem:[#allocation3 + $0x68] sm:$0xff]
      %v2118 = vld [vmem:[#allocation3 + $0x70] sm:$0xff]
      %v2119 = vld [vmem:[#allocation3 + $0x78] sm:$0xff]
      %v2120 = vpack.c.bf16 %v2105, %v2104
      %v2121 = vpack.c.bf16 %v2107, %v2106
      %v2122 = vpack.c.bf16 %v2109, %v2108
      %v2123 = vpack.c.bf16 %v2111, %v2110
      %v2124 = vpack.c.bf16 %v2113, %v2112
      %v2125 = vpack.c.bf16 %v2115, %v2114
      %v2126 = vpack.c.bf16 %v2117, %v2116
      %v2127 = vpack.c.bf16 %v2119, %v2118
      %v2136 = vunpack.c.l.b16 %v2120
      %v2137 = vunpack.c.h.b16 %v2120
      %v2138 = vunpack.c.l.b16 %v2121
      %v2139 = vunpack.c.h.b16 %v2121
      %v2140 = vunpack.c.l.b16 %v2122
      %v2141 = vunpack.c.h.b16 %v2122
      %v2142 = vunpack.c.l.b16 %v2123
      %v2143 = vunpack.c.h.b16 %v2123
      %v2144 = vunpack.c.l.b16 %v2124
      %v2145 = vunpack.c.h.b16 %v2124
      %v2146 = vunpack.c.l.b16 %v2125
      %v2147 = vunpack.c.h.b16 %v2125
      %v2148 = vunpack.c.l.b16 %v2126
      %v2149 = vunpack.c.h.b16 %v2126
      %v2150 = vunpack.c.l.b16 %v2127
      %v2151 = vunpack.c.h.b16 %v2127
      %v2152 = vpack.c.b16 %v2136, %v2136
      %v2153 = vpack.c.b16 %v2137, %v2137
      %v2154 = vpack.c.b16 %v2138, %v2138
      %v2155 = vpack.c.b16 %v2139, %v2139
      %v2156 = vpack.c.b16 %v2140, %v2140
      %v2157 = vpack.c.b16 %v2141, %v2141
      %v2158 = vpack.c.b16 %v2142, %v2142
      %v2159 = vpack.c.b16 %v2143, %v2143
      %v2160 = vpack.c.b16 %v2144, %v2144
      %v2161 = vpack.c.b16 %v2145, %v2145
      %v2162 = vpack.c.b16 %v2146, %v2146
      %v2163 = vpack.c.b16 %v2147, %v2147
      %v2164 = vpack.c.b16 %v2148, %v2148
      %v2165 = vpack.c.b16 %v2149, %v2149
      %v2166 = vpack.c.b16 %v2150, %v2150
      %v2167 = vpack.c.b16 %v2151, %v2151
      %2184 = vst [vmem:[%s431] sm:$0xf] %v2152
      %2185 = vst [vmem:[%s431 + $0x4] sm:$0xf] %v2153
      %2186 = vst [vmem:[%s431 + $0x8] sm:$0xf] %v2154
      %2187 = vst [vmem:[%s431 + $0xc] sm:$0xf] %v2155
      %2188 = vst [vmem:[%s431 + $0x10] sm:$0xf] %v2156
      %2189 = vst [vmem:[%s431 + $0x14] sm:$0xf] %v2157
      %2190 = vst [vmem:[%s431 + $0x18] sm:$0xf] %v2158
      %2191 = vst [vmem:[%s431 + $0x1c] sm:$0xf] %v2159
      %2192 = vst [vmem:[%s431 + $0x20] sm:$0xf] %v2160
      %2193 = vst [vmem:[%s431 + $0x24] sm:$0xf] %v2161
      %2194 = vst [vmem:[%s431 + $0x28] sm:$0xf] %v2162
      %2195 = vst [vmem:[%s431 + $0x2c] sm:$0xf] %v2163
      %2196 = vst [vmem:[%s431 + $0x30] sm:$0xf] %v2164
      %2197 = vst [vmem:[%s431 + $0x34] sm:$0xf] %v2165
      %2198 = vst [vmem:[%s431 + $0x38] sm:$0xf] %v2166
      %2199 = vst [vmem:[%s431 + $0x3c] sm:$0xf] %v2167
      %v2200 = vadd.f32 %v2104, %v2105
      %v2201 = vadd.f32 %v2200, %v2106
      %v2202 = vadd.f32 %v2201, %v2107
      %v2203 = vadd.f32 %v2202, %v2108
      %v2204 = vadd.f32 %v2203, %v2109
      %v2205 = vadd.f32 %v2204, %v2110
      %v2206 = vadd.f32 %v2205, %v2111
      %v2207 = vadd.f32 %v2206, %v2112
      %v2208 = vadd.f32 %v2207, %v2113
      %v2209 = vadd.f32 %v2208, %v2114
      %v2210 = vadd.f32 %v2209, %v2115
      %v2211 = vadd.f32 %v2210, %v2116
      %v2212 = vadd.f32 %v2211, %v2117
      %v2213 = vadd.f32 %v2212, %v2118
      %v2214 = vadd.f32 %v2213, %v2119
      %v2215 = vrot.slane %v2214, 4
      %v2216 = vadd.f32 %v2214, %v2215
      %v2217 = vrot.slane %v2216, 2
      %v2218 = vadd.f32 %v2216, %v2217
      %v2219 = vrot.slane %v2218, 1
      %v2220 = vadd.f32 %v2218, %v2219
      %v2221 = vmul.f32 %v2104, %v2104
      %v2222 = vmul.f32 %v2105, %v2105
      %v2223 = vmul.f32 %v2106, %v2106
      %v2224 = vmul.f32 %v2107, %v2107
      %v2225 = vmul.f32 %v2108, %v2108
      %v2226 = vmul.f32 %v2109, %v2109
      %v2227 = vmul.f32 %v2110, %v2110
      %v2228 = vmul.f32 %v2111, %v2111
      %v2229 = vmul.f32 %v2112, %v2112
      %v2230 = vmul.f32 %v2113, %v2113
      %v2231 = vmul.f32 %v2114, %v2114
      %v2232 = vmul.f32 %v2115, %v2115
      %v2233 = vmul.f32 %v2116, %v2116
      %v2234 = vmul.f32 %v2117, %v2117
      %v2235 = vmul.f32 %v2118, %v2118
      %v2236 = vmul.f32 %v2119, %v2119
      %v2237 = vadd.f32 %v2221, %v2222
      %v2238 = vadd.f32 %v2237, %v2223
      %v2239 = vadd.f32 %v2238, %v2224
      %v2240 = vadd.f32 %v2239, %v2225
      %v2241 = vadd.f32 %v2240, %v2226
      %v2242 = vadd.f32 %v2241, %v2227
      %v2243 = vadd.f32 %v2242, %v2228
      %v2244 = vadd.f32 %v2243, %v2229
      %v2245 = vadd.f32 %v2244, %v2230
      %v2246 = vadd.f32 %v2245, %v2231
      %v2247 = vadd.f32 %v2246, %v2232
      %v2248 = vadd.f32 %v2247, %v2233
      %v2249 = vadd.f32 %v2248, %v2234
      %v2250 = vadd.f32 %v2249, %v2235
      %v2251 = vadd.f32 %v2250, %v2236
      %v2252 = vrot.slane %v2251, 4
      %v2253 = vadd.f32 %v2251, %v2252
      %v2254 = vrot.slane %v2253, 2
      %v2255 = vadd.f32 %v2253, %v2254
      %v2256 = vrot.slane %v2255, 1
      %v2257 = vadd.f32 %v2255, %v2256
      %vm2258 = vcmask 1040384
      %v2259 = vsel %vm2258, %v2220, %v2257
      %2260 = vst [vmem:[%s440] sm:$0x3] %v2259
      %s2261 = smul.u32 8, %s23
      %p2262 = scmp.lt.s32.totalorder %s22, 1
      %s2263 = scalar_select %p2262, %s22, 1
      %p2264 = scmp.lt.s32.totalorder %s2261, 15
      %s2265 = scalar_select %p2264, %s2261, 15
      %s2266 = smul.addr %s2265, 2
      %s2267 = smul.addr %s2263, 32
      %s2268 = sadd.s32 %s2266, %s2267
      %s2269 = smul.addr %s2268, 4
      %s2270 = scalar_lea.vmem %s5, %s2269
      %p2271 = scmp.lt.s32.totalorder %s22, 1
      %s2272 = scalar_select %p2271, %s22, 1
      %p2273 = scmp.lt.s32.totalorder %s23, 1
      %s2274 = scalar_select %p2273, %s23, 1
      %s2275 = smul.addr %s2272, 2
      %s2276 = sadd.s32 %s2274, %s2275
      %s2277 = smul.addr %s2276, 2
      %s2278 = scalar_lea.vmem %s6, %s2277
      // Predicated region
      $region57: #{bottleneck_forward.5} parent=39 // pred_check
        %p2279 = pneg %p192
      $region58: #{bottleneck_forward.5} parent=39 // pred_check_branch
        %2281 = sbr.rel (%p2279) target = $region60
      $region59: #{bottleneck_forward.5} parent=39 // pred_region
        %s2282 = smul.u32 8, %s23
      $region60: #{bottleneck_forward.5} parent=39 // pred_fallthru
        _
      // Predicated region
      $region61: #{bottleneck_forward.5} parent=39 // pred_check
        %p2283 = pneg %p220
      $region62: #{bottleneck_forward.5} parent=39 // pred_check_branch
        %2285 = sbr.rel (%p2283) target = $region64
      $region63: #{bottleneck_forward.5} parent=39 // pred_region
        _
      $region64: #{bottleneck_forward.5} parent=39 // pred_fallthru
        _
    $region40: #{bottleneck_forward.5} parent=5 // pred_fallthru
      _
    %p2286 = scmp.le.s32.totalorder 2, %s13
    // Predicated region
    $region65: #{bottleneck_forward.5} parent=5 // pred_check
      %p2287 = pneg %p2286
    $region66: #{bottleneck_forward.5} parent=5 // pred_check_branch
      %2289 = sbr.rel (%p2287) target = $region68
    $region67: #{bottleneck_forward.5} parent=5 // pred_region
      %s2290 = ssub.s32 %s13, 2
      // Predicated region
      $region69: #{bottleneck_forward.5} parent=67 // pred_check
        %p2291 = pneg %p198
      $region70: #{bottleneck_forward.5} parent=67 // pred_check_branch
        %2293 = sbr.rel (%p2291) target = $region72
      $region71: #{bottleneck_forward.5} parent=67 // pred_region
        %s2294 = smul.u32 8, %s25
        %p2295 = scmp.lt.s32.totalorder %s24, 1
        %s2296 = scalar_select %p2295, %s24, 1
        %p2297 = scmp.lt.s32.totalorder %s2294, 15
        %s2298 = scalar_select %p2297, %s2294, 15
        %s2299 = smul.addr %s2298, 2
        %s2300 = smul.addr %s2296, 32
        %s2301 = sadd.s32 %s2299, %s2300
        %s2302 = smul.addr %s2301, 4
        %s2303 = scalar_lea.vmem %s5, %s2302
      $region72: #{bottleneck_forward.5} parent=67 // pred_fallthru
        _
      // Predicated region
      $region73: #{bottleneck_forward.5} parent=67 // pred_check
        %p2304 = pneg %p226
      $region74: #{bottleneck_forward.5} parent=67 // pred_check_branch
        %2306 = sbr.rel (%p2304) target = $region76
      $region75: #{bottleneck_forward.5} parent=67 // pred_region
        %p2307 = scmp.lt.s32.totalorder %s24, 1
        %s2308 = scalar_select %p2307, %s24, 1
        %p2309 = scmp.lt.s32.totalorder %s25, 1
        %s2310 = scalar_select %p2309, %s25, 1
        %s2311 = smul.addr %s2308, 2
        %s2312 = sadd.s32 %s2310, %s2311
        %s2313 = smul.addr %s2312, 2
        %s2314 = scalar_lea.vmem %s6, %s2313
      $region76: #{bottleneck_forward.5} parent=67 // pred_fallthru
        _
    $region68: #{bottleneck_forward.5} parent=5 // pred_fallthru
      _
  $region6: #{bottleneck_forward.5} parent=0 // loop_footer
    %s17 = sadd.s32 1, %s13
  $region7: #{bottleneck_forward.5} parent=0 // loop_footer_branch
    %12 = sbr.rel target = $region3
  $region8: #{bottleneck_forward.5} parent=0 // loop_exit
    _

</llo_original>
